<compile_context>
chip_gen: v6e
topology: v6e:2x2x1
jax: 0.10.0
libtpu: 0.0.40
codegen_flags: <defaults>
</compile_context>

<pallas_src>
import functools

import jax
import jax.numpy as jnp
from jax.experimental import pallas as pl
from jax.experimental.pallas import tpu as pltpu


# ------------------------------ kernels --------------------------------------


def _front_kernel(*refs, depth, n_mlp_layers):
    """Both VAEs + batched coef/bias MLPs + depth mix, feature-major (F, N)."""
    n_in = 24 + 2 * n_mlp_layers
    xT, yT, epsx, epsy = refs[0:4]
    vx = refs[4:14]
    vy = refs[14:24]
    mlp = refs[24:n_in]
    (oxT_ref, zx_ref, mx_ref, varx_ref, lvx_ref,
     oyT_ref, zy_ref, my_ref, vary_ref, lvy_ref, zmix_ref) = refs[n_in:]

    def vae(inT_ref, eps_ref, p):
        we, be, wm, bm, wv, bv, c, g, wdT, bd = p
        h = jnp.dot(we[...], inT_ref[...], preferred_element_type=jnp.float32)
        h = jnp.maximum(h + be[...], 0.0)                               # (H, N)
        mean = jnp.dot(wm[...], h, preferred_element_type=jnp.float32) + bm[...]
        logv = jnp.dot(wv[...], h, preferred_element_type=jnp.float32) + bv[...]
        var = jnp.exp(logv)
        z = mean + jnp.exp(0.5 * logv) * eps_ref[...]                   # (1, N)
        diff = z - c[...]                                               # (H, N)
        phi = jnp.exp(-g[...] * diff * diff)
        outT = jnp.dot(wdT[...], phi, preferred_element_type=jnp.float32) + bd[...]
        return outT, z, mean, var, logv

    ox, zx, mx, vax, lvx = vae(xT, epsx, vx)
    oy, zy, my, vay, lvy = vae(yT, epsy, vy)
    oxT_ref[...] = ox
    zx_ref[...] = zx
    mx_ref[...] = mx
    varx_ref[...] = vax
    lvx_ref[...] = lvx
    oyT_ref[...] = oy
    zy_ref[...] = zy
    my_ref[...] = my
    vary_ref[...] = vay
    lvy_ref[...] = lvy

    # 2*depth coefficient/bias MLPs fused: one matmul per layer level.
    h = xT[...]
    for l in range(n_mlp_layers):
        w = mlp[2 * l][...]
        b = mlp[2 * l + 1][...]
        h = jnp.dot(w, h, preferred_element_type=jnp.float32) + b
        if l < n_mlp_layers - 1:
            h = jnp.maximum(h, 0.0)
    heads = h                                            # (2*depth, N) lane-dense

    # z = z_y; for i: z1 = relu(coef_i*z + bias_i);
    #          if i < depth-1: z = coef_{i+1}*z1 + bias_{i+1} + z
    z = zy
    for i in range(depth):
        coef_i = heads[i:i + 1, :]
        bias_i = heads[depth + i:depth + i + 1, :]
        z1 = jnp.maximum(coef_i * z + bias_i, 0.0)
        if i < depth - 1:
            coef_n = heads[i + 1:i + 2, :]
            bias_n = heads[depth + i + 1:depth + i + 2, :]
            z = coef_n * z1 + bias_n + z
    zmix_ref[...] = z


def _idw_decode_kernel(xb_ref, xfT_ref, sqf_ref, pw_ref, rhs_ref,
                       cy_ref, gy_ref, wd_ref, bd_ref,
                       k_ref, zint_ref, yhat_ref, *, power_is_two):
    """One row block: ARD IDW kernel tile -> K, K@[z,1] on the MXU ->
    L1-normalized z_int, fused RBF decode -> y_hat."""
    xb = xb_ref[...]                                    # (tm, Dx), pre ARD-scaled
    sq_b = jnp.sum(xb * xb, axis=1, keepdims=True)      # (tm, 1)
    gram = jnp.dot(xb, xfT_ref[...], preferred_element_type=jnp.float32)  # (tm, N)
    d2 = jnp.maximum(sq_b + sqf_ref[...] - 2.0 * gram, 0.0)

    if power_is_two:
        dist_p = d2                        # static p==2: no exp/log on N^2 elems
    else:
        p = pw_ref[0, 0]
        dist_p = jnp.where(d2 > 0.0,
                           jnp.exp(0.5 * p * jnp.log(jnp.maximum(d2, 1e-30))),
                           0.0)

    denom = dist_p + 1e-6
    k = pl.reciprocal(denom, approx=True)               # EUP slot
    k = k * (2.0 - denom * k)                           # 1 Newton step -> ~exact
    k_ref[...] = k

    # Row L1 normalizer and K@z in one MXU contraction against [z, 1].
    sums = jnp.dot(k, rhs_ref[...], preferred_element_type=jnp.float32)  # (tm, 2)
    z_int = sums[:, 0:1] / sums[:, 1:2]                 # exact per-row divide
    zint_ref[...] = z_int

    # Fused RBF decoder of the y-VAE on z_int.
    diff = z_int - cy_ref[...]                          # (tm, Hy)
    phi = jnp.exp(-gy_ref[...] * diff * diff)
    yhat_ref[...] = jnp.dot(phi, wd_ref[...],
                            preferred_element_type=jnp.float32) + bd_ref[...]


# ---------------------------- kernel wrappers ---------------------------------


def front_forward(params, x, y, eps_x, eps_y, depth):
    n, dx = x.shape
    dy = y.shape[1]
    px, py = params["vae_x"], params["vae_y"]
    stacked = params["coef_bias_stacked"]
    n_mlp_layers = len(stacked)

    inputs = [x.T, y.T, eps_x.reshape(1, n), eps_y.reshape(1, n)]
    for p in (px, py):
        inputs += [p["wenc"], p["benc"], p["wm"], p["bm"], p["wv"], p["bv"],
                   p["centers"], p["gamma"], p["wdecT"], p["bdec"]]
    for w, b in stacked:
        inputs += [w, b]

    tn = n if n <= 4096 else 4096            # lane-axis blocking for large N
    grid = (pl.cdiv(n, tn),)

    def col_spec(rows):
        return pl.BlockSpec((rows, tn), lambda j: (0, j))

    def const_spec(arr):
        return pl.BlockSpec(arr.shape, lambda j: (0,) * arr.ndim)

    in_specs = [col_spec(dx), col_spec(dy), col_spec(1), col_spec(1)]
    in_specs += [const_spec(a) for a in inputs[4:]]

    out_shape = (
        jax.ShapeDtypeStruct((dx, n), jnp.float32),   # output_x^T
        jax.ShapeDtypeStruct((1, n), jnp.float32),    # z_x
        jax.ShapeDtypeStruct((1, n), jnp.float32),    # mean_x
        jax.ShapeDtypeStruct((1, n), jnp.float32),    # var_x
        jax.ShapeDtypeStruct((1, n), jnp.float32),    # log_var_x
        jax.ShapeDtypeStruct((dy, n), jnp.float32),   # output_y^T
        jax.ShapeDtypeStruct((1, n), jnp.float32),    # z_y
        jax.ShapeDtypeStruct((1, n), jnp.float32),    # mean_y
        jax.ShapeDtypeStruct((1, n), jnp.float32),    # var_y
        jax.ShapeDtypeStruct((1, n), jnp.float32),    # log_var_y
        jax.ShapeDtypeStruct((1, n), jnp.float32),    # z after depth mix
    )
    out_specs = tuple(col_spec(s.shape[0]) for s in out_shape)

    return pl.pallas_call(
        functools.partial(_front_kernel, depth=depth, n_mlp_layers=n_mlp_layers),
        out_shape=out_shape,
        grid=grid,
        in_specs=in_specs,
        out_specs=out_specs,
        compiler_params=pltpu.CompilerParams(
            dimension_semantics=("parallel",)),
    )(*inputs)


def _vmem_budget_bytes():
    try:
        cap = int(pltpu.get_tpu_info().vmem_capacity_bytes)
    except Exception:
        cap = 64 << 20                       # be conservative (v7x) if query fails
    # Leave headroom below physical VMEM (never hand the whole capacity to one
    # kernel); ~48 MiB on 64 MiB parts (v7x), capped at 100 MiB on 128 MiB parts.
    return int(min(max(cap - (16 << 20), 24 << 20), 100 << 20))


def _choose_tm(n, budget):
    """Row-tile for the (tm, n) f32 K tile, derived from the VMEM budget."""
    if n <= 256:
        return n
    # Resident (constant index_map) inputs, double-buffered:
    #   [z, 1] rhs (n, 2) lane-pads to (n, 128): 512*n B; x^T + sq_f: ~64*n B.
    resident = 2 * (512 * n + 64 * n) + (4 << 20)
    avail = max(budget - resident, 8 << 20)
    # Double-buffered K output tile plus ~3 live (tm, n) f32 temporaries
    # (gram / d2 / reciprocal chain) inside the body.
    tm = avail // ((2 + 3) * 4 * n)
    tm = int(min(tm, 1024, n))
    tm = max(8, (tm // 8) * 8)
    if tm >= n:
        # Whole K would fit in one block: still split in two for megacore (v7x).
        tm = max(8, ((n + 1) // 2 + 7) // 8 * 8)
        if tm >= n:
            return n
    nblk = -(-n // tm)
    if nblk > 1 and nblk % 2 == 1:           # prefer an even number of row blocks
        nblk += 1
    tm = max(8, (-(-n // nblk) + 7) // 8 * 8)
    return min(tm, n)


def idw_decode(x, lengthscale, power, power_is_two, z_row, dec_y):
    """K = 1/(ARD_dist^p + 1e-6); z_int = L1-rownorm(K) @ z; y_hat = RBF_dec_y(z_int)."""
    n, dx = x.shape
    hy = dec_y["centers"].shape[0]
    dy = dec_y["wdecT"].shape[0]

    # Hoisted column-side invariants (done once, outside the row-block loop).
    xs = x * (1.0 / lengthscale)                          # (n, dx) ARD-scaled
    xsT = jnp.transpose(xs)                               # (dx, n) feature-major
    sqf = jnp.sum(xs * xs, axis=1).reshape(1, n)          # (1, n) lane-dense
    rhs = jnp.concatenate([z_row.reshape(n, 1),
                           jnp.ones((n, 1), jnp.float32)], axis=1)   # (n, 2)

    cy = jnp.transpose(dec_y["centers"])                  # (1, hy)
    gy = jnp.transpose(dec_y["gamma"])                    # (1, hy)
    wd = jnp.transpose(dec_y["wdecT"])                    # (hy, dy)
    bd = jnp.transpose(dec_y["bdec"])                     # (1, dy)
    power_arr = jnp.reshape(jnp.asarray(power, jnp.float32), (1, 1))

    budget = _vmem_budget_bytes()
    tm = _choose_tm(n, budget)
    grid = (pl.cdiv(n, tm),)
    power_is_two = bool(power_is_two)

    flops = 2 * n * n * (dx + 2) + 10 * n * n
    transc = (1 if power_is_two else 3) * n * n
    byt = 4 * (n * n + n * (2 * dx + dy + 8))

    return pl.pallas_call(
        functools.partial(_idw_decode_kernel, power_is_two=power_is_two),
        out_shape=(jax.ShapeDtypeStruct((n, n), jnp.float32),
                   jax.ShapeDtypeStruct((n, 1), jnp.float32),
                   jax.ShapeDtypeStruct((n, dy), jnp.float32)),
        grid=grid,
        in_specs=[
            pl.BlockSpec((tm, dx), lambda i: (i, 0)),     # x row block (scaled)
            pl.BlockSpec((dx, n), lambda i: (0, 0)),      # x^T columns (scaled)
            pl.BlockSpec((1, n), lambda i: (0, 0)),       # per-column sq norms
            pl.BlockSpec((1, 1), lambda i: (0, 0),
                         memory_space=pltpu.MemorySpace.SMEM),  # power scalar
            pl.BlockSpec((n, 2), lambda i: (0, 0)),       # [z, 1] MXU rhs
            pl.BlockSpec((1, hy), lambda i: (0, 0)),      # RBF centers (y dec)
            pl.BlockSpec((1, hy), lambda i: (0, 0)),      # RBF gamma
            pl.BlockSpec((hy, dy), lambda i: (0, 0)),     # decoder W
            pl.BlockSpec((1, dy), lambda i: (0, 0)),      # decoder b
        ],
        out_specs=(
            pl.BlockSpec((tm, n), lambda i: (i, 0)),      # K row tile
            pl.BlockSpec((tm, 1), lambda i: (i, 0)),      # z_int rows
            pl.BlockSpec((tm, dy), lambda i: (i, 0)),     # y_hat rows
        ),
        compiler_params=pltpu.CompilerParams(
            dimension_semantics=("parallel",),
            vmem_limit_bytes=budget),
        cost_estimate=pl.CostEstimate(flops=flops, transcendentals=transc,
                                      bytes_accessed=byt),
    )(xs, xsT, sqf, power_arr, rhs, cy, gy, wd, bd)


# ------------------------------ parameter init --------------------------------


def _init_linear_fm(key, din, dout):
    """Feature-major Linear: W^T of shape (dout, din), bias (dout, 1)."""
    kw, kb = jax.random.split(key)
    bound = 1.0 / float(din) ** 0.5
    w = jax.random.uniform(kw, (dout, din), jnp.float32, -bound, bound)
    b = jax.random.uniform(kb, (dout, 1), jnp.float32, -bound, bound)
    return w, b


def _init_vae_fm(key, din, hidden):
    ks = jax.random.split(key, 6)
    wenc, benc = _init_linear_fm(ks[0], din, hidden)
    wm, bm = _init_linear_fm(ks[1], hidden, 1)
    wv, bv = _init_linear_fm(ks[2], hidden, 1)
    wdecT, bdec = _init_linear_fm(ks[3], hidden, din)
    centers = jax.random.normal(ks[4], (hidden, 1), jnp.float32)
    gamma = 0.5 + jnp.abs(jax.random.normal(ks[5], (hidden, 1), jnp.float32))
    return dict(wenc=wenc, benc=benc, wm=wm, bm=bm, wv=wv, bv=bv,
                centers=centers, gamma=gamma, wdecT=wdecT, bdec=bdec)


def _block_diag(mats):
    rows = sum(m.shape[0] for m in mats)
    cols = sum(m.shape[1] for m in mats)
    out = jnp.zeros((rows, cols), jnp.float32)
    r = c = 0
    for m in mats:
        out = out.at[r:r + m.shape[0], c:c + m.shape[1]].set(m)
        r += m.shape[0]
        c += m.shape[1]
    return out


def _init_stacked_coef_nets(key, din, hidden, num_layers, depth):
    """2*depth MLPs (coef nets then bias nets), each [din->H]+[H->H]*(L-1)+[H->1],
    pre-stacked per layer level so the kernel runs one matmul per level
    (hidden/head levels are block-diagonal).  Built once at init time."""
    nnet = 2 * depth
    dims = [din] + [hidden] * num_layers + [1]
    per_net = []
    for _ in range(nnet):
        key, sub = jax.random.split(key)
        layers = []
        for a, b in zip(dims[:-1], dims[1:]):
            sub, lk = jax.random.split(sub)
            layers.append(_init_linear_fm(lk, a, b))
        per_net.append(layers)
    stacked = []
    for l in range(len(dims) - 1):
        ws = [per_net[i][l][0] for i in range(nnet)]
        bs = [per_net[i][l][1] for i in range(nnet)]
        w = jnp.concatenate(ws, axis=0) if l == 0 else _block_diag(ws)
        b = jnp.concatenate(bs, axis=0)
        stacked.append((w, b))
    return stacked


def init_params(key, dx, dy, hidden_dim, num_layers, depth):
    kx, ky, kc, kl = jax.random.split(key, 4)
    return dict(
        vae_x=_init_vae_fm(kx, dx, 3),        # hidden_dim_x=3, latent_dim_x=1
        vae_y=_init_vae_fm(ky, dy, 4),        # hidden_dim_y=4, latent_dim_y=1
        coef_bias_stacked=_init_stacked_coef_nets(kc, dx, hidden_dim,
                                                  num_layers, depth),
        lengthscale=0.5 + jnp.abs(jax.random.normal(kl, (1, dx), jnp.float32)),
        power=jnp.array(2.0, jnp.float32),    # learnable; p==2 path is static cfg
    )


# --------------------------------- forward ------------------------------------


def deep_idw_forward(params, x, y, eps_x, eps_y, *, depth, power_is_two):
    n = x.shape[0]
    (oxT, zx, mx, vax, lvx,
     oyT, zy, my, vay, lvy, zmix) = front_forward(params, x, y, eps_x, eps_y, depth)

    covar, z_int, y_hat = idw_decode(x, params["lengthscale"], params["power"],
                                     power_is_two, zmix, params["vae_y"])

    return (y_hat, z_int.reshape(-1), covar, zmix.reshape(-1),
            oxT.T, zx.reshape(n, 1), mx.reshape(n, 1), vax.reshape(n, 1),
            lvx.reshape(n, 1),
            oyT.T, zy.reshape(n, 1), my.reshape(n, 1), vay.reshape(n, 1),
            lvy.reshape(n, 1))


# ---------------------------------- driver ------------------------------------

if __name__ == "__main__":
    N, Dx, Dy = 8, 3, 2
    hidden_dim, num_layers, depth = 32, 2, 3

    key = jax.random.PRNGKey(0)
    k_param, k_x, k_y, k_ex, k_ey = jax.random.split(key, 5)

    params = init_params(k_param, Dx, Dy, hidden_dim, num_layers, depth)
    x = jax.random.normal(k_x, (N, Dx), jnp.float32)
    y = jax.random.normal(k_y, (N, Dy), jnp.float32)
    # Deterministic reparameterization noise (host-side, like torch.randn_like).
    eps_x = jax.random.normal(k_ex, (N, 1), jnp.float32)
    eps_y = jax.random.normal(k_ey, (N, 1), jnp.float32)

    # depth and the p==2 decision are static model config (stay static under jit).
    fwd = jax.jit(functools.partial(deep_idw_forward, depth=depth,
                                    power_is_two=True))
    outs = fwd(params, x, y, eps_x, eps_y)
    outs = jax.tree_util.tree_map(jax.block_until_ready, outs)

    y_hat, z_int, covar, z = outs[0], outs[1], outs[2], outs[3]
    output_x, output_y = outs[4], outs[9]
    assert y_hat.shape == (N, Dy)
    assert z_int.shape == (N,)
    assert covar.shape == (N, N)
    assert z.shape == (N,)
    assert output_x.shape == (N, Dx) and output_y.shape == (N, Dy)
    assert bool(jnp.all(jnp.isfinite(y_hat)))
    assert bool(jnp.all(jnp.isfinite(covar)))
    assert bool(jnp.all(jnp.isfinite(z_int)))
    print("KERNEL_OK")
</pallas_src>

<mosaic_0001>
module attributes {stable_mosaic.version = 11 : i64} {
  func.func @_front_kernel(%arg0: i32, %arg1: memref<3x8xf32, #tpu.memory_space<vmem>>, %arg2: memref<2x8xf32, #tpu.memory_space<vmem>>, %arg3: memref<1x8xf32, #tpu.memory_space<vmem>>, %arg4: memref<1x8xf32, #tpu.memory_space<vmem>>, %arg5: memref<3x3xf32, #tpu.memory_space<vmem>>, %arg6: memref<3x1xf32, #tpu.memory_space<vmem>>, %arg7: memref<1x3xf32, #tpu.memory_space<vmem>>, %arg8: memref<1x1xf32, #tpu.memory_space<vmem>>, %arg9: memref<1x3xf32, #tpu.memory_space<vmem>>, %arg10: memref<1x1xf32, #tpu.memory_space<vmem>>, %arg11: memref<3x1xf32, #tpu.memory_space<vmem>>, %arg12: memref<3x1xf32, #tpu.memory_space<vmem>>, %arg13: memref<3x3xf32, #tpu.memory_space<vmem>>, %arg14: memref<3x1xf32, #tpu.memory_space<vmem>>, %arg15: memref<4x2xf32, #tpu.memory_space<vmem>>, %arg16: memref<4x1xf32, #tpu.memory_space<vmem>>, %arg17: memref<1x4xf32, #tpu.memory_space<vmem>>, %arg18: memref<1x1xf32, #tpu.memory_space<vmem>>, %arg19: memref<1x4xf32, #tpu.memory_space<vmem>>, %arg20: memref<1x1xf32, #tpu.memory_space<vmem>>, %arg21: memref<4x1xf32, #tpu.memory_space<vmem>>, %arg22: memref<4x1xf32, #tpu.memory_space<vmem>>, %arg23: memref<2x4xf32, #tpu.memory_space<vmem>>, %arg24: memref<2x1xf32, #tpu.memory_space<vmem>>, %arg25: memref<192x3xf32, #tpu.memory_space<vmem>>, %arg26: memref<192x1xf32, #tpu.memory_space<vmem>>, %arg27: memref<192x192xf32, #tpu.memory_space<vmem>>, %arg28: memref<192x1xf32, #tpu.memory_space<vmem>>, %arg29: memref<6x192xf32, #tpu.memory_space<vmem>>, %arg30: memref<6x1xf32, #tpu.memory_space<vmem>>, %arg31: memref<3x8xf32, #tpu.memory_space<vmem>>, %arg32: memref<1x8xf32, #tpu.memory_space<vmem>>, %arg33: memref<1x8xf32, #tpu.memory_space<vmem>>, %arg34: memref<1x8xf32, #tpu.memory_space<vmem>>, %arg35: memref<1x8xf32, #tpu.memory_space<vmem>>, %arg36: memref<2x8xf32, #tpu.memory_space<vmem>>, %arg37: memref<1x8xf32, #tpu.memory_space<vmem>>, %arg38: memref<1x8xf32, #tpu.memory_space<vmem>>, %arg39: memref<1x8xf32, #tpu.memory_space<vmem>>, %arg40: memref<1x8xf32, #tpu.memory_space<vmem>>, %arg41: memref<1x8xf32, #tpu.memory_space<vmem>>) attributes {dimension_semantics = [#tpu.dimension_semantics<parallel>], iteration_bounds = array<i64: 1>, scalar_prefetch = 0 : i64, scratch_operands = 0 : i64, tpu.core_type = #tpu.core_type<tc>, window_params = [{transform_indices = @transform_0, window_bounds = array<i64: 3, 8>}, {transform_indices = @transform_1, window_bounds = array<i64: 2, 8>}, {transform_indices = @transform_2, window_bounds = array<i64: 1, 8>}, {transform_indices = @transform_3, window_bounds = array<i64: 1, 8>}, {pipeline_mode = #tpu.pipeline_mode<synchronous>, transform_indices = @transform_4, window_bounds = array<i64: 3, 3>}, {pipeline_mode = #tpu.pipeline_mode<synchronous>, transform_indices = @transform_5, window_bounds = array<i64: 3, 1>}, {pipeline_mode = #tpu.pipeline_mode<synchronous>, transform_indices = @transform_6, window_bounds = array<i64: 1, 3>}, {pipeline_mode = #tpu.pipeline_mode<synchronous>, transform_indices = @transform_7, window_bounds = array<i64: 1, 1>}, {pipeline_mode = #tpu.pipeline_mode<synchronous>, transform_indices = @transform_8, window_bounds = array<i64: 1, 3>}, {pipeline_mode = #tpu.pipeline_mode<synchronous>, transform_indices = @transform_9, window_bounds = array<i64: 1, 1>}, {pipeline_mode = #tpu.pipeline_mode<synchronous>, transform_indices = @transform_10, window_bounds = array<i64: 3, 1>}, {pipeline_mode = #tpu.pipeline_mode<synchronous>, transform_indices = @transform_11, window_bounds = array<i64: 3, 1>}, {pipeline_mode = #tpu.pipeline_mode<synchronous>, transform_indices = @transform_12, window_bounds = array<i64: 3, 3>}, {pipeline_mode = #tpu.pipeline_mode<synchronous>, transform_indices = @transform_13, window_bounds = array<i64: 3, 1>}, {pipeline_mode = #tpu.pipeline_mode<synchronous>, transform_indices = @transform_14, window_bounds = array<i64: 4, 2>}, {pipeline_mode = #tpu.pipeline_mode<synchronous>, transform_indices = @transform_15, window_bounds = array<i64: 4, 1>}, {pipeline_mode = #tpu.pipeline_mode<synchronous>, transform_indices = @transform_16, window_bounds = array<i64: 1, 4>}, {pipeline_mode = #tpu.pipeline_mode<synchronous>, transform_indices = @transform_17, window_bounds = array<i64: 1, 1>}, {pipeline_mode = #tpu.pipeline_mode<synchronous>, transform_indices = @transform_18, window_bounds = array<i64: 1, 4>}, {pipeline_mode = #tpu.pipeline_mode<synchronous>, transform_indices = @transform_19, window_bounds = array<i64: 1, 1>}, {pipeline_mode = #tpu.pipeline_mode<synchronous>, transform_indices = @transform_20, window_bounds = array<i64: 4, 1>}, {pipeline_mode = #tpu.pipeline_mode<synchronous>, transform_indices = @transform_21, window_bounds = array<i64: 4, 1>}, {pipeline_mode = #tpu.pipeline_mode<synchronous>, transform_indices = @transform_22, window_bounds = array<i64: 2, 4>}, {pipeline_mode = #tpu.pipeline_mode<synchronous>, transform_indices = @transform_23, window_bounds = array<i64: 2, 1>}, {pipeline_mode = #tpu.pipeline_mode<synchronous>, transform_indices = @transform_24, window_bounds = array<i64: 192, 3>}, {pipeline_mode = #tpu.pipeline_mode<synchronous>, transform_indices = @transform_25, window_bounds = array<i64: 192, 1>}, {pipeline_mode = #tpu.pipeline_mode<synchronous>, transform_indices = @transform_26, window_bounds = array<i64: 192, 192>}, {pipeline_mode = #tpu.pipeline_mode<synchronous>, transform_indices = @transform_27, window_bounds = array<i64: 192, 1>}, {pipeline_mode = #tpu.pipeline_mode<synchronous>, transform_indices = @transform_28, window_bounds = array<i64: 6, 192>}, {pipeline_mode = #tpu.pipeline_mode<synchronous>, transform_indices = @transform_29, window_bounds = array<i64: 6, 1>}, {transform_indices = @transform_30, window_bounds = array<i64: 3, 8>}, {transform_indices = @transform_31, window_bounds = array<i64: 1, 8>}, {transform_indices = @transform_32, window_bounds = array<i64: 1, 8>}, {transform_indices = @transform_33, window_bounds = array<i64: 1, 8>}, {transform_indices = @transform_34, window_bounds = array<i64: 1, 8>}, {transform_indices = @transform_35, window_bounds = array<i64: 2, 8>}, {transform_indices = @transform_36, window_bounds = array<i64: 1, 8>}, {transform_indices = @transform_37, window_bounds = array<i64: 1, 8>}, {transform_indices = @transform_38, window_bounds = array<i64: 1, 8>}, {transform_indices = @transform_39, window_bounds = array<i64: 1, 8>}, {transform_indices = @transform_40, window_bounds = array<i64: 1, 8>}]} {
    %c0 = arith.constant 0 : index
    %c0_0 = arith.constant 0 : index
    %0 = vector.load %arg5[%c0, %c0_0] : memref<3x3xf32, #tpu.memory_space<vmem>>, vector<3x3xf32>
    %c0_1 = arith.constant 0 : index
    %c0_2 = arith.constant 0 : index
    %1 = vector.load %arg1[%c0_1, %c0_2] : memref<3x8xf32, #tpu.memory_space<vmem>>, vector<3x8xf32>
    %cst = arith.constant dense<0.000000e+00> : vector<3x8xf32>
    %2 = tpu.matmul %0, %1, %cst {dimension_numbers = #tpu.dot_dimension_numbers<[1], [0], [0], [1], [0, 0, 1, 1], [], []>} : vector<3x3xf32>, vector<3x8xf32>, vector<3x8xf32> -> vector<3x8xf32>
    %c0_3 = arith.constant 0 : index
    %c0_4 = arith.constant 0 : index
    %3 = vector.load %arg6[%c0_3, %c0_4] : memref<3x1xf32, #tpu.memory_space<vmem>>, vector<3x1xf32>
    %4 = vector.broadcast %3 : vector<3x1xf32> to vector<3x8xf32>
    %5 = arith.addf %2, %4 : vector<3x8xf32>
    %cst_5 = arith.constant 0.000000e+00 : f32
    %6 = vector.broadcast %cst_5 : f32 to vector<3x8xf32>
    %7 = arith.maximumf %5, %6 : vector<3x8xf32>
    %c0_6 = arith.constant 0 : index
    %c0_7 = arith.constant 0 : index
    %8 = vector.load %arg7[%c0_6, %c0_7] : memref<1x3xf32, #tpu.memory_space<vmem>>, vector<1x3xf32>
    %cst_8 = arith.constant dense<0.000000e+00> : vector<1x8xf32>
    %9 = tpu.matmul %8, %7, %cst_8 {dimension_numbers = #tpu.dot_dimension_numbers<[1], [0], [0], [1], [0, 0, 1, 1], [], []>} : vector<1x3xf32>, vector<3x8xf32>, vector<1x8xf32> -> vector<1x8xf32>
    %c0_9 = arith.constant 0 : index
    %c0_10 = arith.constant 0 : index
    %10 = vector.load %arg8[%c0_9, %c0_10] : memref<1x1xf32, #tpu.memory_space<vmem>>, vector<1x1xf32>
    %11 = vector.broadcast %10 : vector<1x1xf32> to vector<1x8xf32>
    %12 = arith.addf %9, %11 : vector<1x8xf32>
    %c0_11 = arith.constant 0 : index
    %c0_12 = arith.constant 0 : index
    %13 = vector.load %arg9[%c0_11, %c0_12] : memref<1x3xf32, #tpu.memory_space<vmem>>, vector<1x3xf32>
    %cst_13 = arith.constant dense<0.000000e+00> : vector<1x8xf32>
    %14 = tpu.matmul %13, %7, %cst_13 {dimension_numbers = #tpu.dot_dimension_numbers<[1], [0], [0], [1], [0, 0, 1, 1], [], []>} : vector<1x3xf32>, vector<3x8xf32>, vector<1x8xf32> -> vector<1x8xf32>
    %c0_14 = arith.constant 0 : index
    %c0_15 = arith.constant 0 : index
    %15 = vector.load %arg10[%c0_14, %c0_15] : memref<1x1xf32, #tpu.memory_space<vmem>>, vector<1x1xf32>
    %16 = vector.broadcast %15 : vector<1x1xf32> to vector<1x8xf32>
    %17 = arith.addf %14, %16 : vector<1x8xf32>
    %18 = math.exp %17 : vector<1x8xf32>
    %cst_16 = arith.constant 5.000000e-01 : f32
    %19 = vector.broadcast %cst_16 : f32 to vector<1x8xf32>
    %20 = arith.mulf %19, %17 : vector<1x8xf32>
    %21 = math.exp %20 : vector<1x8xf32>
    %c0_17 = arith.constant 0 : index
    %c0_18 = arith.constant 0 : index
    %22 = vector.load %arg3[%c0_17, %c0_18] : memref<1x8xf32, #tpu.memory_space<vmem>>, vector<1x8xf32>
    %23 = arith.mulf %21, %22 : vector<1x8xf32>
    %24 = arith.addf %12, %23 : vector<1x8xf32>
    %c0_19 = arith.constant 0 : index
    %c0_20 = arith.constant 0 : index
    %25 = vector.load %arg11[%c0_19, %c0_20] : memref<3x1xf32, #tpu.memory_space<vmem>>, vector<3x1xf32>
    %26 = vector.broadcast %24 : vector<1x8xf32> to vector<3x8xf32>
    %27 = vector.broadcast %25 : vector<3x1xf32> to vector<3x8xf32>
    %28 = arith.subf %26, %27 : vector<3x8xf32>
    %c0_21 = arith.constant 0 : index
    %c0_22 = arith.constant 0 : index
    %29 = vector.load %arg12[%c0_21, %c0_22] : memref<3x1xf32, #tpu.memory_space<vmem>>, vector<3x1xf32>
    %cst_23 = arith.constant 0.000000e+00 : f32
    %30 = vector.broadcast %cst_23 : f32 to vector<3x1xf32>
    %31 = arith.subf %30, %29 : vector<3x1xf32>
    %32 = vector.broadcast %31 : vector<3x1xf32> to vector<3x8xf32>
    %33 = arith.mulf %32, %28 : vector<3x8xf32>
    %34 = arith.mulf %33, %28 : vector<3x8xf32>
    %35 = math.exp %34 : vector<3x8xf32>
    %c0_24 = arith.constant 0 : index
    %c0_25 = arith.constant 0 : index
    %36 = vector.load %arg13[%c0_24, %c0_25] : memref<3x3xf32, #tpu.memory_space<vmem>>, vector<3x3xf32>
    %cst_26 = arith.constant dense<0.000000e+00> : vector<3x8xf32>
    %37 = tpu.matmul %36, %35, %cst_26 {dimension_numbers = #tpu.dot_dimension_numbers<[1], [0], [0], [1], [0, 0, 1, 1], [], []>} : vector<3x3xf32>, vector<3x8xf32>, vector<3x8xf32> -> vector<3x8xf32>
    %c0_27 = arith.constant 0 : index
    %c0_28 = arith.constant 0 : index
    %38 = vector.load %arg14[%c0_27, %c0_28] : memref<3x1xf32, #tpu.memory_space<vmem>>, vector<3x1xf32>
    %39 = vector.broadcast %38 : vector<3x1xf32> to vector<3x8xf32>
    %40 = arith.addf %37, %39 : vector<3x8xf32>
    %c0_29 = arith.constant 0 : index
    %c0_30 = arith.constant 0 : index
    %41 = vector.load %arg15[%c0_29, %c0_30] : memref<4x2xf32, #tpu.memory_space<vmem>>, vector<4x2xf32>
    %c0_31 = arith.constant 0 : index
    %c0_32 = arith.constant 0 : index
    %42 = vector.load %arg2[%c0_31, %c0_32] : memref<2x8xf32, #tpu.memory_space<vmem>>, vector<2x8xf32>
    %cst_33 = arith.constant dense<0.000000e+00> : vector<4x8xf32>
    %43 = tpu.matmul %41, %42, %cst_33 {dimension_numbers = #tpu.dot_dimension_numbers<[1], [0], [0], [1], [0, 0, 1, 1], [], []>} : vector<4x2xf32>, vector<2x8xf32>, vector<4x8xf32> -> vector<4x8xf32>
    %c0_34 = arith.constant 0 : index
    %c0_35 = arith.constant 0 : index
    %44 = vector.load %arg16[%c0_34, %c0_35] : memref<4x1xf32, #tpu.memory_space<vmem>>, vector<4x1xf32>
    %45 = vector.broadcast %44 : vector<4x1xf32> to vector<4x8xf32>
    %46 = arith.addf %43, %45 : vector<4x8xf32>
    %cst_36 = arith.constant 0.000000e+00 : f32
    %47 = vector.broadcast %cst_36 : f32 to vector<4x8xf32>
    %48 = arith.maximumf %46, %47 : vector<4x8xf32>
    %c0_37 = arith.constant 0 : index
    %c0_38 = arith.constant 0 : index
    %49 = vector.load %arg17[%c0_37, %c0_38] : memref<1x4xf32, #tpu.memory_space<vmem>>, vector<1x4xf32>
    %cst_39 = arith.constant dense<0.000000e+00> : vector<1x8xf32>
    %50 = tpu.matmul %49, %48, %cst_39 {dimension_numbers = #tpu.dot_dimension_numbers<[1], [0], [0], [1], [0, 0, 1, 1], [], []>} : vector<1x4xf32>, vector<4x8xf32>, vector<1x8xf32> -> vector<1x8xf32>
    %c0_40 = arith.constant 0 : index
    %c0_41 = arith.constant 0 : index
    %51 = vector.load %arg18[%c0_40, %c0_41] : memref<1x1xf32, #tpu.memory_space<vmem>>, vector<1x1xf32>
    %52 = vector.broadcast %51 : vector<1x1xf32> to vector<1x8xf32>
    %53 = arith.addf %50, %52 : vector<1x8xf32>
    %c0_42 = arith.constant 0 : index
    %c0_43 = arith.constant 0 : index
    %54 = vector.load %arg19[%c0_42, %c0_43] : memref<1x4xf32, #tpu.memory_space<vmem>>, vector<1x4xf32>
    %cst_44 = arith.constant dense<0.000000e+00> : vector<1x8xf32>
    %55 = tpu.matmul %54, %48, %cst_44 {dimension_numbers = #tpu.dot_dimension_numbers<[1], [0], [0], [1], [0, 0, 1, 1], [], []>} : vector<1x4xf32>, vector<4x8xf32>, vector<1x8xf32> -> vector<1x8xf32>
    %c0_45 = arith.constant 0 : index
    %c0_46 = arith.constant 0 : index
    %56 = vector.load %arg20[%c0_45, %c0_46] : memref<1x1xf32, #tpu.memory_space<vmem>>, vector<1x1xf32>
    %57 = vector.broadcast %56 : vector<1x1xf32> to vector<1x8xf32>
    %58 = arith.addf %55, %57 : vector<1x8xf32>
    %59 = math.exp %58 : vector<1x8xf32>
    %cst_47 = arith.constant 5.000000e-01 : f32
    %60 = vector.broadcast %cst_47 : f32 to vector<1x8xf32>
    %61 = arith.mulf %60, %58 : vector<1x8xf32>
    %62 = math.exp %61 : vector<1x8xf32>
    %c0_48 = arith.constant 0 : index
    %c0_49 = arith.constant 0 : index
    %63 = vector.load %arg4[%c0_48, %c0_49] : memref<1x8xf32, #tpu.memory_space<vmem>>, vector<1x8xf32>
    %64 = arith.mulf %62, %63 : vector<1x8xf32>
    %65 = arith.addf %53, %64 : vector<1x8xf32>
    %c0_50 = arith.constant 0 : index
    %c0_51 = arith.constant 0 : index
    %66 = vector.load %arg21[%c0_50, %c0_51] : memref<4x1xf32, #tpu.memory_space<vmem>>, vector<4x1xf32>
    %67 = vector.broadcast %65 : vector<1x8xf32> to vector<4x8xf32>
    %68 = vector.broadcast %66 : vector<4x1xf32> to vector<4x8xf32>
    %69 = arith.subf %67, %68 : vector<4x8xf32>
    %c0_52 = arith.constant 0 : index
    %c0_53 = arith.constant 0 : index
    %70 = vector.load %arg22[%c0_52, %c0_53] : memref<4x1xf32, #tpu.memory_space<vmem>>, vector<4x1xf32>
    %cst_54 = arith.constant 0.000000e+00 : f32
    %71 = vector.broadcast %cst_54 : f32 to vector<4x1xf32>
    %72 = arith.subf %71, %70 : vector<4x1xf32>
    %73 = vector.broadcast %72 : vector<4x1xf32> to vector<4x8xf32>
    %74 = arith.mulf %73, %69 : vector<4x8xf32>
    %75 = arith.mulf %74, %69 : vector<4x8xf32>
    %76 = math.exp %75 : vector<4x8xf32>
    %c0_55 = arith.constant 0 : index
    %c0_56 = arith.constant 0 : index
    %77 = vector.load %arg23[%c0_55, %c0_56] : memref<2x4xf32, #tpu.memory_space<vmem>>, vector<2x4xf32>
    %cst_57 = arith.constant dense<0.000000e+00> : vector<2x8xf32>
    %78 = tpu.matmul %77, %76, %cst_57 {dimension_numbers = #tpu.dot_dimension_numbers<[1], [0], [0], [1], [0, 0, 1, 1], [], []>} : vector<2x4xf32>, vector<4x8xf32>, vector<2x8xf32> -> vector<2x8xf32>
    %c0_58 = arith.constant 0 : index
    %c0_59 = arith.constant 0 : index
    %79 = vector.load %arg24[%c0_58, %c0_59] : memref<2x1xf32, #tpu.memory_space<vmem>>, vector<2x1xf32>
    %80 = vector.broadcast %79 : vector<2x1xf32> to vector<2x8xf32>
    %81 = arith.addf %78, %80 : vector<2x8xf32>
    %c0_60 = arith.constant 0 : index
    %c0_61 = arith.constant 0 : index
    %82 = vector.load %arg31[%c0_60, %c0_61] : memref<3x8xf32, #tpu.memory_space<vmem>>, vector<3x8xf32>
    tpu.vector_store %arg31[%c0_60, %c0_61], %40 {strides = array<i32>} : memref<3x8xf32, #tpu.memory_space<vmem>>, vector<3x8xf32>,
    %c0_62 = arith.constant 0 : index
    %c0_63 = arith.constant 0 : index
    %83 = vector.load %arg32[%c0_62, %c0_63] : memref<1x8xf32, #tpu.memory_space<vmem>>, vector<1x8xf32>
    tpu.vector_store %arg32[%c0_62, %c0_63], %24 {strides = array<i32>} : memref<1x8xf32, #tpu.memory_space<vmem>>, vector<1x8xf32>,
    %c0_64 = arith.constant 0 : index
    %c0_65 = arith.constant 0 : index
    %84 = vector.load %arg33[%c0_64, %c0_65] : memref<1x8xf32, #tpu.memory_space<vmem>>, vector<1x8xf32>
    tpu.vector_store %arg33[%c0_64, %c0_65], %12 {strides = array<i32>} : memref<1x8xf32, #tpu.memory_space<vmem>>, vector<1x8xf32>,
    %c0_66 = arith.constant 0 : index
    %c0_67 = arith.constant 0 : index
    %85 = vector.load %arg34[%c0_66, %c0_67] : memref<1x8xf32, #tpu.memory_space<vmem>>, vector<1x8xf32>
    tpu.vector_store %arg34[%c0_66, %c0_67], %18 {strides = array<i32>} : memref<1x8xf32, #tpu.memory_space<vmem>>, vector<1x8xf32>,
    %c0_68 = arith.constant 0 : index
    %c0_69 = arith.constant 0 : index
    %86 = vector.load %arg35[%c0_68, %c0_69] : memref<1x8xf32, #tpu.memory_space<vmem>>, vector<1x8xf32>
    tpu.vector_store %arg35[%c0_68, %c0_69], %17 {strides = array<i32>} : memref<1x8xf32, #tpu.memory_space<vmem>>, vector<1x8xf32>,
    %c0_70 = arith.constant 0 : index
    %c0_71 = arith.constant 0 : index
    %87 = vector.load %arg36[%c0_70, %c0_71] : memref<2x8xf32, #tpu.memory_space<vmem>>, vector<2x8xf32>
    tpu.vector_store %arg36[%c0_70, %c0_71], %81 {strides = array<i32>} : memref<2x8xf32, #tpu.memory_space<vmem>>, vector<2x8xf32>,
    %c0_72 = arith.constant 0 : index
    %c0_73 = arith.constant 0 : index
    %88 = vector.load %arg37[%c0_72, %c0_73] : memref<1x8xf32, #tpu.memory_space<vmem>>, vector<1x8xf32>
    tpu.vector_store %arg37[%c0_72, %c0_73], %65 {strides = array<i32>} : memref<1x8xf32, #tpu.memory_space<vmem>>, vector<1x8xf32>,
    %c0_74 = arith.constant 0 : index
    %c0_75 = arith.constant 0 : index
    %89 = vector.load %arg38[%c0_74, %c0_75] : memref<1x8xf32, #tpu.memory_space<vmem>>, vector<1x8xf32>
    tpu.vector_store %arg38[%c0_74, %c0_75], %53 {strides = array<i32>} : memref<1x8xf32, #tpu.memory_space<vmem>>, vector<1x8xf32>,
    %c0_76 = arith.constant 0 : index
    %c0_77 = arith.constant 0 : index
    %90 = vector.load %arg39[%c0_76, %c0_77] : memref<1x8xf32, #tpu.memory_space<vmem>>, vector<1x8xf32>
    tpu.vector_store %arg39[%c0_76, %c0_77], %59 {strides = array<i32>} : memref<1x8xf32, #tpu.memory_space<vmem>>, vector<1x8xf32>,
    %c0_78 = arith.constant 0 : index
    %c0_79 = arith.constant 0 : index
    %91 = vector.load %arg40[%c0_78, %c0_79] : memref<1x8xf32, #tpu.memory_space<vmem>>, vector<1x8xf32>
    tpu.vector_store %arg40[%c0_78, %c0_79], %58 {strides = array<i32>} : memref<1x8xf32, #tpu.memory_space<vmem>>, vector<1x8xf32>,
    %c0_80 = arith.constant 0 : index
    %c0_81 = arith.constant 0 : index
    %92 = vector.load %arg1[%c0_80, %c0_81] : memref<3x8xf32, #tpu.memory_space<vmem>>, vector<3x8xf32>
    %c0_82 = arith.constant 0 : index
    %c0_83 = arith.constant 0 : index
    %93 = vector.load %arg25[%c0_82, %c0_83] : memref<192x3xf32, #tpu.memory_space<vmem>>, vector<192x3xf32>
    %c0_84 = arith.constant 0 : index
    %c0_85 = arith.constant 0 : index
    %94 = vector.load %arg26[%c0_84, %c0_85] : memref<192x1xf32, #tpu.memory_space<vmem>>, vector<192x1xf32>
    %cst_86 = arith.constant dense<0.000000e+00> : vector<192x8xf32>
    %95 = tpu.matmul %93, %92, %cst_86 {dimension_numbers = #tpu.dot_dimension_numbers<[1], [0], [0], [1], [0, 0, 1, 1], [], []>} : vector<192x3xf32>, vector<3x8xf32>, vector<192x8xf32> -> vector<192x8xf32>
    %96 = vector.broadcast %94 : vector<192x1xf32> to vector<192x8xf32>
    %97 = arith.addf %95, %96 : vector<192x8xf32>
    %cst_87 = arith.constant 0.000000e+00 : f32
    %98 = vector.broadcast %cst_87 : f32 to vector<192x8xf32>
    %99 = arith.maximumf %97, %98 : vector<192x8xf32>
    %c0_88 = arith.constant 0 : index
    %c0_89 = arith.constant 0 : index
    %100 = vector.load %arg27[%c0_88, %c0_89] : memref<192x192xf32, #tpu.memory_space<vmem>>, vector<192x192xf32>
    %c0_90 = arith.constant 0 : index
    %c0_91 = arith.constant 0 : index
    %101 = vector.load %arg28[%c0_90, %c0_91] : memref<192x1xf32, #tpu.memory_space<vmem>>, vector<192x1xf32>
    %cst_92 = arith.constant dense<0.000000e+00> : vector<192x8xf32>
    %102 = tpu.matmul %100, %99, %cst_92 {dimension_numbers = #tpu.dot_dimension_numbers<[1], [0], [0], [1], [0, 0, 1, 1], [], []>} : vector<192x192xf32>, vector<192x8xf32>, vector<192x8xf32> -> vector<192x8xf32>
    %103 = vector.broadcast %101 : vector<192x1xf32> to vector<192x8xf32>
    %104 = arith.addf %102, %103 : vector<192x8xf32>
    %cst_93 = arith.constant 0.000000e+00 : f32
    %105 = vector.broadcast %cst_93 : f32 to vector<192x8xf32>
    %106 = arith.maximumf %104, %105 : vector<192x8xf32>
    %c0_94 = arith.constant 0 : index
    %c0_95 = arith.constant 0 : index
    %107 = vector.load %arg29[%c0_94, %c0_95] : memref<6x192xf32, #tpu.memory_space<vmem>>, vector<6x192xf32>
    %c0_96 = arith.constant 0 : index
    %c0_97 = arith.constant 0 : index
    %108 = vector.load %arg30[%c0_96, %c0_97] : memref<6x1xf32, #tpu.memory_space<vmem>>, vector<6x1xf32>
    %cst_98 = arith.constant dense<0.000000e+00> : vector<6x8xf32>
    %109 = tpu.matmul %107, %106, %cst_98 {dimension_numbers = #tpu.dot_dimension_numbers<[1], [0], [0], [1], [0, 0, 1, 1], [], []>} : vector<6x192xf32>, vector<192x8xf32>, vector<6x8xf32> -> vector<6x8xf32>
    %110 = vector.broadcast %108 : vector<6x1xf32> to vector<6x8xf32>
    %111 = arith.addf %109, %110 : vector<6x8xf32>
    %112 = vector.extract_strided_slice %111 {offsets = [0, 0], sizes = [1, 8], strides = [1, 1]} : vector<6x8xf32> to vector<1x8xf32>
    %113 = vector.extract_strided_slice %111 {offsets = [3, 0], sizes = [1, 8], strides = [1, 1]} : vector<6x8xf32> to vector<1x8xf32>
    %114 = arith.mulf %112, %65 : vector<1x8xf32>
    %115 = arith.addf %114, %113 : vector<1x8xf32>
    %cst_99 = arith.constant 0.000000e+00 : f32
    %116 = vector.broadcast %cst_99 : f32 to vector<1x8xf32>
    %117 = arith.maximumf %115, %116 : vector<1x8xf32>
    %118 = vector.extract_strided_slice %111 {offsets = [1, 0], sizes = [1, 8], strides = [1, 1]} : vector<6x8xf32> to vector<1x8xf32>
    %119 = vector.extract_strided_slice %111 {offsets = [4, 0], sizes = [1, 8], strides = [1, 1]} : vector<6x8xf32> to vector<1x8xf32>
    %120 = arith.mulf %118, %117 : vector<1x8xf32>
    %121 = arith.addf %120, %119 : vector<1x8xf32>
    %122 = arith.addf %121, %65 : vector<1x8xf32>
    %123 = vector.extract_strided_slice %111 {offsets = [1, 0], sizes = [1, 8], strides = [1, 1]} : vector<6x8xf32> to vector<1x8xf32>
    %124 = vector.extract_strided_slice %111 {offsets = [4, 0], sizes = [1, 8], strides = [1, 1]} : vector<6x8xf32> to vector<1x8xf32>
    %125 = arith.mulf %123, %122 : vector<1x8xf32>
    %126 = arith.addf %125, %124 : vector<1x8xf32>
    %cst_100 = arith.constant 0.000000e+00 : f32
    %127 = vector.broadcast %cst_100 : f32 to vector<1x8xf32>
    %128 = arith.maximumf %126, %127 : vector<1x8xf32>
    %129 = vector.extract_strided_slice %111 {offsets = [2, 0], sizes = [1, 8], strides = [1, 1]} : vector<6x8xf32> to vector<1x8xf32>
    %130 = vector.extract_strided_slice %111 {offsets = [5, 0], sizes = [1, 8], strides = [1, 1]} : vector<6x8xf32> to vector<1x8xf32>
    %131 = arith.mulf %129, %128 : vector<1x8xf32>
    %132 = arith.addf %131, %130 : vector<1x8xf32>
    %133 = arith.addf %132, %122 : vector<1x8xf32>
    %c0_101 = arith.constant 0 : index
    %c0_102 = arith.constant 0 : index
    %134 = vector.load %arg41[%c0_101, %c0_102] : memref<1x8xf32, #tpu.memory_space<vmem>>, vector<1x8xf32>
    tpu.vector_store %arg41[%c0_101, %c0_102], %133 {strides = array<i32>} : memref<1x8xf32, #tpu.memory_space<vmem>>, vector<1x8xf32>,
    return
  }
  func.func @transform_0(%arg0: i32) -> (i32, i32) {
    %c0_i32 = arith.constant 0 : i32
    %c0_i32_0 = arith.constant 0 : i32
    return %c0_i32, %arg0 : i32, i32
  }
  func.func @transform_1(%arg0: i32) -> (i32, i32) {
    %c0_i32 = arith.constant 0 : i32
    %c0_i32_0 = arith.constant 0 : i32
    return %c0_i32, %arg0 : i32, i32
  }
  func.func @transform_2(%arg0: i32) -> (i32, i32) {
    %c0_i32 = arith.constant 0 : i32
    %c0_i32_0 = arith.constant 0 : i32
    return %c0_i32, %arg0 : i32, i32
  }
  func.func @transform_3(%arg0: i32) -> (i32, i32) {
    %c0_i32 = arith.constant 0 : i32
    %c0_i32_0 = arith.constant 0 : i32
    return %c0_i32, %arg0 : i32, i32
  }
  func.func @transform_4(%arg0: i32) -> (i32, i32) {
    %c0_i32 = arith.constant 0 : i32
    %c0_i32_0 = arith.constant 0 : i32
    %c0_i32_1 = arith.constant 0 : i32
    return %c0_i32, %c0_i32_0 : i32, i32
  }
  func.func @transform_5(%arg0: i32) -> (i32, i32) {
    %c0_i32 = arith.constant 0 : i32
    %c0_i32_0 = arith.constant 0 : i32
    %c0_i32_1 = arith.constant 0 : i32
    return %c0_i32, %c0_i32_0 : i32, i32
  }
  func.func @transform_6(%arg0: i32) -> (i32, i32) {
    %c0_i32 = arith.constant 0 : i32
    %c0_i32_0 = arith.constant 0 : i32
    %c0_i32_1 = arith.constant 0 : i32
    return %c0_i32, %c0_i32_0 : i32, i32
  }
  func.func @transform_7(%arg0: i32) -> (i32, i32) {
    %c0_i32 = arith.constant 0 : i32
    %c0_i32_0 = arith.constant 0 : i32
    %c0_i32_1 = arith.constant 0 : i32
    return %c0_i32, %c0_i32_0 : i32, i32
  }
  func.func @transform_8(%arg0: i32) -> (i32, i32) {
    %c0_i32 = arith.constant 0 : i32
    %c0_i32_0 = arith.constant 0 : i32
    %c0_i32_1 = arith.constant 0 : i32
    return %c0_i32, %c0_i32_0 : i32, i32
  }
  func.func @transform_9(%arg0: i32) -> (i32, i32) {
    %c0_i32 = arith.constant 0 : i32
    %c0_i32_0 = arith.constant 0 : i32
    %c0_i32_1 = arith.constant 0 : i32
    return %c0_i32, %c0_i32_0 : i32, i32
  }
  func.func @transform_10(%arg0: i32) -> (i32, i32) {
    %c0_i32 = arith.constant 0 : i32
    %c0_i32_0 = arith.constant 0 : i32
    %c0_i32_1 = arith.constant 0 : i32
    return %c0_i32, %c0_i32_0 : i32, i32
  }
  func.func @transform_11(%arg0: i32) -> (i32, i32) {
    %c0_i32 = arith.constant 0 : i32
    %c0_i32_0 = arith.constant 0 : i32
    %c0_i32_1 = arith.constant 0 : i32
    return %c0_i32, %c0_i32_0 : i32, i32
  }
  func.func @transform_12(%arg0: i32) -> (i32, i32) {
    %c0_i32 = arith.constant 0 : i32
    %c0_i32_0 = arith.constant 0 : i32
    %c0_i32_1 = arith.constant 0 : i32
    return %c0_i32, %c0_i32_0 : i32, i32
  }
  func.func @transform_13(%arg0: i32) -> (i32, i32) {
    %c0_i32 = arith.constant 0 : i32
    %c0_i32_0 = arith.constant 0 : i32
    %c0_i32_1 = arith.constant 0 : i32
    return %c0_i32, %c0_i32_0 : i32, i32
  }
  func.func @transform_14(%arg0: i32) -> (i32, i32) {
    %c0_i32 = arith.constant 0 : i32
    %c0_i32_0 = arith.constant 0 : i32
    %c0_i32_1 = arith.constant 0 : i32
    return %c0_i32, %c0_i32_0 : i32, i32
  }
  func.func @transform_15(%arg0: i32) -> (i32, i32) {
    %c0_i32 = arith.constant 0 : i32
    %c0_i32_0 = arith.constant 0 : i32
    %c0_i32_1 = arith.constant 0 : i32
    return %c0_i32, %c0_i32_0 : i32, i32
  }
  func.func @transform_16(%arg0: i32) -> (i32, i32) {
    %c0_i32 = arith.constant 0 : i32
    %c0_i32_0 = arith.constant 0 : i32
    %c0_i32_1 = arith.constant 0 : i32
    return %c0_i32, %c0_i32_0 : i32, i32
  }
  func.func @transform_17(%arg0: i32) -> (i32, i32) {
    %c0_i32 = arith.constant 0 : i32
    %c0_i32_0 = arith.constant 0 : i32
    %c0_i32_1 = arith.constant 0 : i32
    return %c0_i32, %c0_i32_0 : i32, i32
  }
  func.func @transform_18(%arg0: i32) -> (i32, i32) {
    %c0_i32 = arith.constant 0 : i32
    %c0_i32_0 = arith.constant 0 : i32
    %c0_i32_1 = arith.constant 0 : i32
    return %c0_i32, %c0_i32_0 : i32, i32
  }
  func.func @transform_19(%arg0: i32) -> (i32, i32) {
    %c0_i32 = arith.constant 0 : i32
    %c0_i32_0 = arith.constant 0 : i32
    %c0_i32_1 = arith.constant 0 : i32
    return %c0_i32, %c0_i32_0 : i32, i32
  }
  func.func @transform_20(%arg0: i32) -> (i32, i32) {
    %c0_i32 = arith.constant 0 : i32
    %c0_i32_0 = arith.constant 0 : i32
    %c0_i32_1 = arith.constant 0 : i32
    return %c0_i32, %c0_i32_0 : i32, i32
  }
  func.func @transform_21(%arg0: i32) -> (i32, i32) {
    %c0_i32 = arith.constant 0 : i32
    %c0_i32_0 = arith.constant 0 : i32
    %c0_i32_1 = arith.constant 0 : i32
    return %c0_i32, %c0_i32_0 : i32, i32
  }
  func.func @transform_22(%arg0: i32) -> (i32, i32) {
    %c0_i32 = arith.constant 0 : i32
    %c0_i32_0 = arith.constant 0 : i32
    %c0_i32_1 = arith.constant 0 : i32
    return %c0_i32, %c0_i32_0 : i32, i32
  }
  func.func @transform_23(%arg0: i32) -> (i32, i32) {
    %c0_i32 = arith.constant 0 : i32
    %c0_i32_0 = arith.constant 0 : i32
    %c0_i32_1 = arith.constant 0 : i32
    return %c0_i32, %c0_i32_0 : i32, i32
  }
  func.func @transform_24(%arg0: i32) -> (i32, i32) {
    %c0_i32 = arith.constant 0 : i32
    %c0_i32_0 = arith.constant 0 : i32
    %c0_i32_1 = arith.constant 0 : i32
    return %c0_i32, %c0_i32_0 : i32, i32
  }
  func.func @transform_25(%arg0: i32) -> (i32, i32) {
    %c0_i32 = arith.constant 0 : i32
    %c0_i32_0 = arith.constant 0 : i32
    %c0_i32_1 = arith.constant 0 : i32
    return %c0_i32, %c0_i32_0 : i32, i32
  }
  func.func @transform_26(%arg0: i32) -> (i32, i32) {
    %c0_i32 = arith.constant 0 : i32
    %c0_i32_0 = arith.constant 0 : i32
    %c0_i32_1 = arith.constant 0 : i32
    return %c0_i32, %c0_i32_0 : i32, i32
  }
  func.func @transform_27(%arg0: i32) -> (i32, i32) {
    %c0_i32 = arith.constant 0 : i32
    %c0_i32_0 = arith.constant 0 : i32
    %c0_i32_1 = arith.constant 0 : i32
    return %c0_i32, %c0_i32_0 : i32, i32
  }
  func.func @transform_28(%arg0: i32) -> (i32, i32) {
    %c0_i32 = arith.constant 0 : i32
    %c0_i32_0 = arith.constant 0 : i32
    %c0_i32_1 = arith.constant 0 : i32
    return %c0_i32, %c0_i32_0 : i32, i32
  }
  func.func @transform_29(%arg0: i32) -> (i32, i32) {
    %c0_i32 = arith.constant 0 : i32
    %c0_i32_0 = arith.constant 0 : i32
    %c0_i32_1 = arith.constant 0 : i32
    return %c0_i32, %c0_i32_0 : i32, i32
  }
  func.func @transform_30(%arg0: i32) -> (i32, i32) {
    %c0_i32 = arith.constant 0 : i32
    %c0_i32_0 = arith.constant 0 : i32
    return %c0_i32, %arg0 : i32, i32
  }
  func.func @transform_31(%arg0: i32) -> (i32, i32) {
    %c0_i32 = arith.constant 0 : i32
    %c0_i32_0 = arith.constant 0 : i32
    return %c0_i32, %arg0 : i32, i32
  }
  func.func @transform_32(%arg0: i32) -> (i32, i32) {
    %c0_i32 = arith.constant 0 : i32
    %c0_i32_0 = arith.constant 0 : i32
    return %c0_i32, %arg0 : i32, i32
  }
  func.func @transform_33(%arg0: i32) -> (i32, i32) {
    %c0_i32 = arith.constant 0 : i32
    %c0_i32_0 = arith.constant 0 : i32
    return %c0_i32, %arg0 : i32, i32
  }
  func.func @transform_34(%arg0: i32) -> (i32, i32) {
    %c0_i32 = arith.constant 0 : i32
    %c0_i32_0 = arith.constant 0 : i32
    return %c0_i32, %arg0 : i32, i32
  }
  func.func @transform_35(%arg0: i32) -> (i32, i32) {
    %c0_i32 = arith.constant 0 : i32
    %c0_i32_0 = arith.constant 0 : i32
    return %c0_i32, %arg0 : i32, i32
  }
  func.func @transform_36(%arg0: i32) -> (i32, i32) {
    %c0_i32 = arith.constant 0 : i32
    %c0_i32_0 = arith.constant 0 : i32
    return %c0_i32, %arg0 : i32, i32
  }
  func.func @transform_37(%arg0: i32) -> (i32, i32) {
    %c0_i32 = arith.constant 0 : i32
    %c0_i32_0 = arith.constant 0 : i32
    return %c0_i32, %arg0 : i32, i32
  }
  func.func @transform_38(%arg0: i32) -> (i32, i32) {
    %c0_i32 = arith.constant 0 : i32
    %c0_i32_0 = arith.constant 0 : i32
    return %c0_i32, %arg0 : i32, i32
  }
  func.func @transform_39(%arg0: i32) -> (i32, i32) {
    %c0_i32 = arith.constant 0 : i32
    %c0_i32_0 = arith.constant 0 : i32
    return %c0_i32, %arg0 : i32, i32
  }
  func.func @transform_40(%arg0: i32) -> (i32, i32) {
    %c0_i32 = arith.constant 0 : i32
    %c0_i32_0 = arith.constant 0 : i32
    return %c0_i32, %arg0 : i32, i32
  }
}

module attributes {stable_mosaic.version = 11 : i64} {
  func.func @_idw_decode_kernel(%arg0: i32, %arg1: memref<8x3xf32, #tpu.memory_space<vmem>>, %arg2: memref<3x8xf32, #tpu.memory_space<vmem>>, %arg3: memref<1x8xf32, #tpu.memory_space<vmem>>, %arg4: memref<1x1xf32, #tpu.memory_space<smem>>, %arg5: memref<8x2xf32, #tpu.memory_space<vmem>>, %arg6: memref<1x4xf32, #tpu.memory_space<vmem>>, %arg7: memref<1x4xf32, #tpu.memory_space<vmem>>, %arg8: memref<4x2xf32, #tpu.memory_space<vmem>>, %arg9: memref<1x2xf32, #tpu.memory_space<vmem>>, %arg10: memref<8x8xf32, #tpu.memory_space<vmem>>, %arg11: memref<8x1xf32, #tpu.memory_space<vmem>>, %arg12: memref<8x2xf32, #tpu.memory_space<vmem>>) attributes {dimension_semantics = [#tpu.dimension_semantics<parallel>], iteration_bounds = array<i64: 1>, scalar_prefetch = 0 : i64, scratch_operands = 0 : i64, tpu.core_type = #tpu.core_type<tc>, window_params = [{transform_indices = @transform_0, window_bounds = array<i64: 8, 3>}, {pipeline_mode = #tpu.pipeline_mode<synchronous>, transform_indices = @transform_1, window_bounds = array<i64: 3, 8>}, {pipeline_mode = #tpu.pipeline_mode<synchronous>, transform_indices = @transform_2, window_bounds = array<i64: 1, 8>}, {transform_indices = @transform_3, window_bounds = array<i64: 1, 1>}, {pipeline_mode = #tpu.pipeline_mode<synchronous>, transform_indices = @transform_4, window_bounds = array<i64: 8, 2>}, {pipeline_mode = #tpu.pipeline_mode<synchronous>, transform_indices = @transform_5, window_bounds = array<i64: 1, 4>}, {pipeline_mode = #tpu.pipeline_mode<synchronous>, transform_indices = @transform_6, window_bounds = array<i64: 1, 4>}, {pipeline_mode = #tpu.pipeline_mode<synchronous>, transform_indices = @transform_7, window_bounds = array<i64: 4, 2>}, {pipeline_mode = #tpu.pipeline_mode<synchronous>, transform_indices = @transform_8, window_bounds = array<i64: 1, 2>}, {transform_indices = @transform_9, window_bounds = array<i64: 8, 8>}, {transform_indices = @transform_10, window_bounds = array<i64: 8, 1>}, {transform_indices = @transform_11, window_bounds = array<i64: 8, 2>}]} {
    %c0 = arith.constant 0 : index
    %c0_0 = arith.constant 0 : index
    %0 = vector.load %arg1[%c0, %c0_0] : memref<8x3xf32, #tpu.memory_space<vmem>>, vector<8x3xf32>
    %1 = arith.mulf %0, %0 : vector<8x3xf32>
    %cst = arith.constant dense<0.000000e+00> : vector<8xf32>
    %2 = vector.multi_reduction <add>, %1, %cst [1] : vector<8x3xf32> to vector<8xf32>
    %3 = vector.shape_cast %2 : vector<8xf32> to vector<8x1xf32>
    %c0_1 = arith.constant 0 : index
    %c0_2 = arith.constant 0 : index
    %4 = vector.load %arg2[%c0_1, %c0_2] : memref<3x8xf32, #tpu.memory_space<vmem>>, vector<3x8xf32>
    %cst_3 = arith.constant dense<0.000000e+00> : vector<8x8xf32>
    %5 = tpu.matmul %0, %4, %cst_3 {dimension_numbers = #tpu.dot_dimension_numbers<[1], [0], [0], [1], [0, 0, 1, 1], [], []>} : vector<8x3xf32>, vector<3x8xf32>, vector<8x8xf32> -> vector<8x8xf32>
    %c0_4 = arith.constant 0 : index
    %c0_5 = arith.constant 0 : index
    %6 = vector.load %arg3[%c0_4, %c0_5] : memref<1x8xf32, #tpu.memory_space<vmem>>, vector<1x8xf32>
    %7 = vector.broadcast %3 : vector<8x1xf32> to vector<8x8xf32>
    %8 = vector.broadcast %6 : vector<1x8xf32> to vector<8x8xf32>
    %9 = arith.addf %7, %8 : vector<8x8xf32>
    %cst_6 = arith.constant 2.000000e+00 : f32
    %10 = vector.broadcast %cst_6 : f32 to vector<8x8xf32>
    %11 = arith.mulf %10, %5 : vector<8x8xf32>
    %12 = arith.subf %9, %11 : vector<8x8xf32>
    %cst_7 = arith.constant 0.000000e+00 : f32
    %13 = vector.broadcast %cst_7 : f32 to vector<8x8xf32>
    %14 = arith.maximumf %12, %13 : vector<8x8xf32>
    %cst_8 = arith.constant 9.99999997E-7 : f32
    %15 = vector.broadcast %cst_8 : f32 to vector<8x8xf32>
    %16 = arith.addf %14, %15 : vector<8x8xf32>
    %17 = tpu.reciprocal %16 {approx = true} : vector<8x8xf32> -> vector<8x8xf32>
    %18 = arith.mulf %16, %17 : vector<8x8xf32>
    %cst_9 = arith.constant 2.000000e+00 : f32
    %19 = vector.broadcast %cst_9 : f32 to vector<8x8xf32>
    %20 = arith.subf %19, %18 : vector<8x8xf32>
    %21 = arith.mulf %17, %20 : vector<8x8xf32>
    %c0_10 = arith.constant 0 : index
    %c0_11 = arith.constant 0 : index
    %22 = vector.load %arg10[%c0_10, %c0_11] : memref<8x8xf32, #tpu.memory_space<vmem>>, vector<8x8xf32>
    tpu.vector_store %arg10[%c0_10, %c0_11], %21 {strides = array<i32>} : memref<8x8xf32, #tpu.memory_space<vmem>>, vector<8x8xf32>,
    %c0_12 = arith.constant 0 : index
    %c0_13 = arith.constant 0 : index
    %23 = vector.load %arg5[%c0_12, %c0_13] : memref<8x2xf32, #tpu.memory_space<vmem>>, vector<8x2xf32>
    %cst_14 = arith.constant dense<0.000000e+00> : vector<8x2xf32>
    %24 = tpu.matmul %21, %23, %cst_14 {dimension_numbers = #tpu.dot_dimension_numbers<[1], [0], [0], [1], [0, 0, 1, 1], [], []>} : vector<8x8xf32>, vector<8x2xf32>, vector<8x2xf32> -> vector<8x2xf32>
    %25 = vector.extract_strided_slice %24 {offsets = [0, 0], sizes = [8, 1], strides = [1, 1]} : vector<8x2xf32> to vector<8x1xf32>
    %26 = vector.extract_strided_slice %24 {offsets = [0, 1], sizes = [8, 1], strides = [1, 1]} : vector<8x2xf32> to vector<8x1xf32>
    %27 = arith.divf %25, %26 : vector<8x1xf32>
    %c0_15 = arith.constant 0 : index
    %c0_16 = arith.constant 0 : index
    %28 = vector.load %arg11[%c0_15, %c0_16] : memref<8x1xf32, #tpu.memory_space<vmem>>, vector<8x1xf32>
    tpu.vector_store %arg11[%c0_15, %c0_16], %27 {strides = array<i32>} : memref<8x1xf32, #tpu.memory_space<vmem>>, vector<8x1xf32>,
    %c0_17 = arith.constant 0 : index
    %c0_18 = arith.constant 0 : index
    %29 = vector.load %arg6[%c0_17, %c0_18] : memref<1x4xf32, #tpu.memory_space<vmem>>, vector<1x4xf32>
    %30 = vector.broadcast %27 : vector<8x1xf32> to vector<8x4xf32>
    %31 = vector.broadcast %29 : vector<1x4xf32> to vector<8x4xf32>
    %32 = arith.subf %30, %31 : vector<8x4xf32>
    %c0_19 = arith.constant 0 : index
    %c0_20 = arith.constant 0 : index
    %33 = vector.load %arg7[%c0_19, %c0_20] : memref<1x4xf32, #tpu.memory_space<vmem>>, vector<1x4xf32>
    %cst_21 = arith.constant 0.000000e+00 : f32
    %34 = vector.broadcast %cst_21 : f32 to vector<1x4xf32>
    %35 = arith.subf %34, %33 : vector<1x4xf32>
    %36 = vector.broadcast %35 : vector<1x4xf32> to vector<8x4xf32>
    %37 = arith.mulf %36, %32 : vector<8x4xf32>
    %38 = arith.mulf %37, %32 : vector<8x4xf32>
    %39 = math.exp %38 : vector<8x4xf32>
    %c0_22 = arith.constant 0 : index
    %c0_23 = arith.constant 0 : index
    %40 = vector.load %arg8[%c0_22, %c0_23] : memref<4x2xf32, #tpu.memory_space<vmem>>, vector<4x2xf32>
    %cst_24 = arith.constant dense<0.000000e+00> : vector<8x2xf32>
    %41 = tpu.matmul %39, %40, %cst_24 {dimension_numbers = #tpu.dot_dimension_numbers<[1], [0], [0], [1], [0, 0, 1, 1], [], []>} : vector<8x4xf32>, vector<4x2xf32>, vector<8x2xf32> -> vector<8x2xf32>
    %c0_25 = arith.constant 0 : index
    %c0_26 = arith.constant 0 : index
    %42 = vector.load %arg9[%c0_25, %c0_26] : memref<1x2xf32, #tpu.memory_space<vmem>>, vector<1x2xf32>
    %43 = vector.broadcast %42 : vector<1x2xf32> to vector<8x2xf32>
    %44 = arith.addf %41, %43 : vector<8x2xf32>
    %c0_27 = arith.constant 0 : index
    %c0_28 = arith.constant 0 : index
    %45 = vector.load %arg12[%c0_27, %c0_28] : memref<8x2xf32, #tpu.memory_space<vmem>>, vector<8x2xf32>
    tpu.vector_store %arg12[%c0_27, %c0_28], %44 {strides = array<i32>} : memref<8x2xf32, #tpu.memory_space<vmem>>, vector<8x2xf32>,
    return
  }
  func.func @transform_0(%arg0: i32) -> (i32, i32) {
    %c0_i32 = arith.constant 0 : i32
    %c0_i32_0 = arith.constant 0 : i32
    return %arg0, %c0_i32 : i32, i32
  }
  func.func @transform_1(%arg0: i32) -> (i32, i32) {
    %c0_i32 = arith.constant 0 : i32
    %c0_i32_0 = arith.constant 0 : i32
    %c0_i32_1 = arith.constant 0 : i32
    return %c0_i32, %c0_i32_0 : i32, i32
  }
  func.func @transform_2(%arg0: i32) -> (i32, i32) {
    %c0_i32 = arith.constant 0 : i32
    %c0_i32_0 = arith.constant 0 : i32
    %c0_i32_1 = arith.constant 0 : i32
    return %c0_i32, %c0_i32_0 : i32, i32
  }
  func.func @transform_3(%arg0: i32) -> (i32, i32) {
    %c0_i32 = arith.constant 0 : i32
    %c0_i32_0 = arith.constant 0 : i32
    %c0_i32_1 = arith.constant 0 : i32
    return %c0_i32, %c0_i32_0 : i32, i32
  }
  func.func @transform_4(%arg0: i32) -> (i32, i32) {
    %c0_i32 = arith.constant 0 : i32
    %c0_i32_0 = arith.constant 0 : i32
    %c0_i32_1 = arith.constant 0 : i32
    return %c0_i32, %c0_i32_0 : i32, i32
  }
  func.func @transform_5(%arg0: i32) -> (i32, i32) {
    %c0_i32 = arith.constant 0 : i32
    %c0_i32_0 = arith.constant 0 : i32
    %c0_i32_1 = arith.constant 0 : i32
    return %c0_i32, %c0_i32_0 : i32, i32
  }
  func.func @transform_6(%arg0: i32) -> (i32, i32) {
    %c0_i32 = arith.constant 0 : i32
    %c0_i32_0 = arith.constant 0 : i32
    %c0_i32_1 = arith.constant 0 : i32
    return %c0_i32, %c0_i32_0 : i32, i32
  }
  func.func @transform_7(%arg0: i32) -> (i32, i32) {
    %c0_i32 = arith.constant 0 : i32
    %c0_i32_0 = arith.constant 0 : i32
    %c0_i32_1 = arith.constant 0 : i32
    return %c0_i32, %c0_i32_0 : i32, i32
  }
  func.func @transform_8(%arg0: i32) -> (i32, i32) {
    %c0_i32 = arith.constant 0 : i32
    %c0_i32_0 = arith.constant 0 : i32
    %c0_i32_1 = arith.constant 0 : i32
    return %c0_i32, %c0_i32_0 : i32, i32
  }
  func.func @transform_9(%arg0: i32) -> (i32, i32) {
    %c0_i32 = arith.constant 0 : i32
    %c0_i32_0 = arith.constant 0 : i32
    return %arg0, %c0_i32 : i32, i32
  }
  func.func @transform_10(%arg0: i32) -> (i32, i32) {
    %c0_i32 = arith.constant 0 : i32
    %c0_i32_0 = arith.constant 0 : i32
    return %arg0, %c0_i32 : i32, i32
  }
  func.func @transform_11(%arg0: i32) -> (i32, i32) {
    %c0_i32 = arith.constant 0 : i32
    %c0_i32_0 = arith.constant 0 : i32
    return %arg0, %c0_i32 : i32, i32
  }
}

</mosaic_0001>

<llo_original>
// kernel: deep_idw_forward.3
$region0: #{deep_idw_forward.3}
  #allocation0 [shape = 'u32[]', space=smem, size = 0x4, offset = 0x4, fixed_abs, tag = 'smem constant byte address 0x4 - core index']
  #allocation1 [shape = 'u32[144,128]{1,0:T(1,128)}', space=vmem, size = 0x12000, scoped, tag = 'internal scratch']
  #allocation2 [shape = 'f32[1,1]{1,0:T(1,128)S(6)}', space=smem, size = 0x200, scoped, tag = 'scoped memory for deep_idw_forward.3']
  %s0 = inlined_call_operand.vmem [shape: f32[8,3], index: 0, kind: input, shape index: {}]
  %s1 = inlined_call_operand.vmem [shape: f32[3,8], index: 1, kind: input, shape index: {}]
  %s2 = inlined_call_operand.vmem [shape: f32[1,8], index: 2, kind: input, shape index: {}]
  %s3 = inlined_call_operand.<no memory space> [shape: f32[1,1], index: 3, kind: input, shape index: {}]
  %s4 = inlined_call_operand.vmem [shape: f32[8,2], index: 4, kind: input, shape index: {}]
  %s5 = inlined_call_operand.vmem [shape: f32[1,4], index: 5, kind: input, shape index: {}]
  %s6 = inlined_call_operand.vmem [shape: f32[1,4], index: 6, kind: input, shape index: {}]
  %s7 = inlined_call_operand.vmem [shape: f32[4,2], index: 7, kind: input, shape index: {}]
  %s8 = inlined_call_operand.vmem [shape: f32[1,2], index: 8, kind: input, shape index: {}]
  %s9 = inlined_call_operand.hbm [shape: f32[8,8], index: 9, kind: output, shape index: {0}]
  %s10 = inlined_call_operand.vmem [shape: f32[8,1], index: 10, kind: output, shape index: {1}]
  %s11 = inlined_call_operand.vmem [shape: f32[8,2], index: 11, kind: output, shape index: {2}]
  %12 = xla_tuple %s9, %s10, %s11
  %s13 = sld [smem:[#allocation0]]
  $region62: #{deep_idw_forward.3} parent=0
    _
  %s15 = ssub.s32 1, %s13
  %s16 = scalar_select 0, %s15, %s13
  %17 = sst [smem:[#allocation2]] %s3
  $region1: #{deep_idw_forward.3} parent=0
    #allocation3 [shape = 'u8[4096]{0}', space=vmem, size = 0x1000, scoped, tag = 'output window, operand 0, single buffered']
    #allocation4 [shape = 's32[1]{0}', space=sflag, size = 0x4, scoped, tag = 'scoped memory for deep_idw_forward.3']
    %18 = vsyncpa [#allocation4], 0
    // Predicated region
    $region2: #{deep_idw_forward.3} parent=1 // pred_check
      _
    $region3: #{deep_idw_forward.3} parent=1 // pred_check_branch
      %20 = sbr.rel (0) target = $region5
    $region4: #{deep_idw_forward.3} parent=1 // pred_region
      _
    $region5: #{deep_idw_forward.3} parent=1 // pred_fallthru
      _
    // Predicated region
    $region6: #{deep_idw_forward.3} parent=1 // pred_check
      _
    $region7: #{deep_idw_forward.3} parent=1 // pred_check_branch
      %22 = sbr.rel (0) target = $region9
    $region8: #{deep_idw_forward.3} parent=1 // pred_region
      _
    $region9: #{deep_idw_forward.3} parent=1 // pred_fallthru
      _
    // Predicated region
    $region10: #{deep_idw_forward.3} parent=1 // pred_check
      _
    $region11: #{deep_idw_forward.3} parent=1 // pred_check_branch
      %24 = sbr.rel (0) target = $region13
    $region12: #{deep_idw_forward.3} parent=1 // pred_region
      _
    $region13: #{deep_idw_forward.3} parent=1 // pred_fallthru
      _
    // Predicated region
    $region14: #{deep_idw_forward.3} parent=1 // pred_check
      _
    $region15: #{deep_idw_forward.3} parent=1 // pred_check_branch
      %26 = sbr.rel (0) target = $region17
    $region16: #{deep_idw_forward.3} parent=1 // pred_region
      _
    $region17: #{deep_idw_forward.3} parent=1 // pred_fallthru
      _
    // Predicated region
    $region18: #{deep_idw_forward.3} parent=1 // pred_check
      _
    $region19: #{deep_idw_forward.3} parent=1 // pred_check_branch
      %28 = sbr.rel (0) target = $region21
    $region20: #{deep_idw_forward.3} parent=1 // pred_region
      _
    $region21: #{deep_idw_forward.3} parent=1 // pred_fallthru
      _
    // Predicated region
    $region22: #{deep_idw_forward.3} parent=1 // pred_check
      _
    $region23: #{deep_idw_forward.3} parent=1 // pred_check_branch
      %30 = sbr.rel (0) target = $region25
    $region24: #{deep_idw_forward.3} parent=1 // pred_region
      _
    $region25: #{deep_idw_forward.3} parent=1 // pred_fallthru
      _
    // Predicated region
    $region26: #{deep_idw_forward.3} parent=1 // pred_check
      _
    $region27: #{deep_idw_forward.3} parent=1 // pred_check_branch
      %32 = sbr.rel (0) target = $region29
    $region28: #{deep_idw_forward.3} parent=1 // pred_region
      _
    $region29: #{deep_idw_forward.3} parent=1 // pred_fallthru
      _
    // Predicated region
    $region30: #{deep_idw_forward.3} parent=1 // pred_check
      _
    $region31: #{deep_idw_forward.3} parent=1 // pred_check_branch
      %34 = sbr.rel (0) target = $region33
    $region32: #{deep_idw_forward.3} parent=1 // pred_region
      _
    $region33: #{deep_idw_forward.3} parent=1 // pred_fallthru
      _
    // Predicated region
    $region34: #{deep_idw_forward.3} parent=1 // pred_check
      _
    $region35: #{deep_idw_forward.3} parent=1 // pred_check_branch
      %36 = sbr.rel (0) target = $region37
    $region36: #{deep_idw_forward.3} parent=1 // pred_region
      _
    $region37: #{deep_idw_forward.3} parent=1 // pred_fallthru
      _
    %v37 = vld [vmem:[%s0] sm:$0xff]
    %v38 = vmul.f32 %v37, %v37
    %vm39 = vcmask 23552
    %v40 = vsel %vm39, %v38, 0.0
    %41 = vadd.xlane.f32.xlu0 %v40
    %v42 = vpop.xlane.xlu0 %41
    %v43 = vld [vmem:[%s1] sm:$0x7]
    %v45 = vsel %vm39, %v37, 0
    %vm47 = vcmask 1042432
    %v49 = vsel %vm47, %v43, 0
    %51 = vmatprep.subr.mxu0 0.0
    %52 = vmatpush1.msra.mxu0 0.0
    %53 = vmatprep.subr.mxu0 0.0
    %54 = vmatpush1.msra.mxu0 0.0
    %55 = vmatprep.subr.mxu0 0.0
    %56 = vmatpush1.msra.mxu0 0.0
    %57 = vmatprep.subr.mxu0 0.0
    %58 = vmatpush1.msra.mxu0 0.0
    %59 = vmatprep.subr.mxu0 0.0
    %60 = vmatpush1.msra.mxu0 0.0
    %61 = vmatprep.subr.mxu0 0.0
    %62 = vmatpush1.msra.mxu0 0.0
    %63 = vmatprep.subr.mxu0 0.0
    %64 = vmatpush1.msra.mxu0 0.0
    %65 = vmatprep.subr.mxu0 0.0
    %66 = vmatpush1.msra.mxu0 0.0
    %67 = vmatprep.subr.mxu0 0.0
    %68 = vmatpush1.msra.mxu0 0.0
    %69 = vmatprep.subr.mxu0 0.0
    %70 = vmatpush1.msra.mxu0 0.0
    %71 = vmatprep.subr.mxu0 0.0
    %72 = vmatpush1.msra.mxu0 0.0
    %73 = vmatprep.subr.mxu0 0.0
    %74 = vmatpush1.msra.mxu0 0.0
    %75 = vmatprep.subr.mxu0 0.0
    %76 = vmatpush1.msra.mxu0 0.0
    %77 = vmatprep.subr.mxu0 0.0
    %78 = vmatpush1.msra.mxu0 0.0
    %79 = vmatprep.subr.mxu0 0.0
    %80 = vmatpush1.msra.mxu0 0.0
    %81 = vmatprep.subr.mxu0 0.0
    %82 = vmatpush1.msra.mxu0 %v49
    %83 = vmatprep.subr.mxu0 0.0
    %84 = vmatpush2.msra.mxu0 0.0
    %85 = vmatprep.subr.mxu0 0.0
    %86 = vmatpush2.msra.mxu0 0.0
    %87 = vmatprep.subr.mxu0 0.0
    %88 = vmatpush2.msra.mxu0 0.0
    %89 = vmatprep.subr.mxu0 0.0
    %90 = vmatpush2.msra.mxu0 0.0
    %91 = vmatprep.subr.mxu0 0.0
    %92 = vmatpush2.msra.mxu0 0.0
    %93 = vmatprep.subr.mxu0 0.0
    %94 = vmatpush2.msra.mxu0 0.0
    %95 = vmatprep.subr.mxu0 0.0
    %96 = vmatpush2.msra.mxu0 0.0
    %97 = vmatprep.subr.mxu0 0.0
    %98 = vmatpush2.msra.mxu0 0.0
    %99 = vmatprep.subr.mxu0 0.0
    %100 = vmatpush2.msra.mxu0 0.0
    %101 = vmatprep.subr.mxu0 0.0
    %102 = vmatpush2.msra.mxu0 0.0
    %103 = vmatprep.subr.mxu0 0.0
    %104 = vmatpush2.msra.mxu0 0.0
    %105 = vmatprep.subr.mxu0 0.0
    %106 = vmatpush2.msra.mxu0 0.0
    %107 = vmatprep.subr.mxu0 0.0
    %108 = vmatpush2.msra.mxu0 0.0
    %109 = vmatprep.subr.mxu0 0.0
    %110 = vmatpush2.msra.mxu0 0.0
    %111 = vmatprep.subr.mxu0 0.0
    %112 = vmatpush2.msra.mxu0 0.0
    %113 = vmatprep.subr.mxu0 0.0
    %114 = vmatpush2.msra.mxu0 0.0
    %115 = vmatprep.mubr.f32.mxu0 0.0
    %116 = vmatmul.mubr.f32.gmra.mxu0 %v45
    %v117 = vpop.f32.mrf.mxu0
    %v118 = vadd.f32 0.0, %v117
    %v119 = vpop.f32.mrf.mxu0
    %120 = vdwg.mxu0
    %v121 = vld [vmem:[%s2] sm:$0x1]
    %v123 = vlaneseq
    %v124 = vshrl.u32 %v123, 7
    %v125 = vsub.s32 0, %v124
    %v126 = vrot.slane %v121, %v125
    %v128 = vadd.f32 %v42, %v126
    %v129 = vmul.f32 %v118, 2.0
    %v130 = vsub.f32 %v128, %v129
    %v131 = vmax.f32 %v130, 0.0
    %v132 = vadd.f32 %v131, 1e-06
    %v133 = vrcp.pop %v132
    %v134 = vmul.f32 %v132, %v133
    %v135 = vsub.f32 2.0, %v134
    %v136 = vmul.f32 %v133, %v135
    %vm137 = vcmask 64512
    %138 = vst.msk [vmem:[#allocation3] sm:$0xff] %vm137, %v136
    %v139 = vld [vmem:[%s4] sm:$0xff]
    %v141 = vsel %vm137, %v136, 0
    %143 = vmatprep.subr.mxu0 0.0
    %144 = vmatpush1.msra.mxu0 0.0
    %145 = vmatprep.subr.mxu0 0.0
    %146 = vmatpush1.msra.mxu0 0.0
    %147 = vmatprep.subr.mxu0 0.0
    %148 = vmatpush1.msra.mxu0 0.0
    %149 = vmatprep.subr.mxu0 0.0
    %150 = vmatpush1.msra.mxu0 0.0
    %151 = vmatprep.subr.mxu0 0.0
    %152 = vmatpush1.msra.mxu0 0.0
    %153 = vmatprep.subr.mxu0 0.0
    %154 = vmatpush1.msra.mxu0 0.0
    %155 = vmatprep.subr.mxu0 0.0
    %156 = vmatpush1.msra.mxu0 0.0
    %157 = vmatprep.subr.mxu0 0.0
    %158 = vmatpush1.msra.mxu0 0.0
    %159 = vmatprep.subr.mxu0 0.0
    %160 = vmatpush1.msra.mxu0 0.0
    %161 = vmatprep.subr.mxu0 0.0
    %162 = vmatpush1.msra.mxu0 0.0
    %163 = vmatprep.subr.mxu0 0.0
    %164 = vmatpush1.msra.mxu0 0.0
    %165 = vmatprep.subr.mxu0 0.0
    %166 = vmatpush1.msra.mxu0 0.0
    %167 = vmatprep.subr.mxu0 0.0
    %168 = vmatpush1.msra.mxu0 0.0
    %169 = vmatprep.subr.mxu0 0.0
    %170 = vmatpush1.msra.mxu0 0.0
    %171 = vmatprep.subr.mxu0 0.0
    %172 = vmatpush1.msra.mxu0 0.0
    %173 = vmatprep.subr.mxu0 0.0
    %174 = vmatpush1.msra.mxu0 %v139
    %175 = vmatprep.subr.mxu0 0.0
    %176 = vmatpush2.msra.mxu0 0.0
    %177 = vmatprep.subr.mxu0 0.0
    %178 = vmatpush2.msra.mxu0 0.0
    %179 = vmatprep.subr.mxu0 0.0
    %180 = vmatpush2.msra.mxu0 0.0
    %181 = vmatprep.subr.mxu0 0.0
    %182 = vmatpush2.msra.mxu0 0.0
    %183 = vmatprep.subr.mxu0 0.0
    %184 = vmatpush2.msra.mxu0 0.0
    %185 = vmatprep.subr.mxu0 0.0
    %186 = vmatpush2.msra.mxu0 0.0
    %187 = vmatprep.subr.mxu0 0.0
    %188 = vmatpush2.msra.mxu0 0.0
    %189 = vmatprep.subr.mxu0 0.0
    %190 = vmatpush2.msra.mxu0 0.0
    %191 = vmatprep.subr.mxu0 0.0
    %192 = vmatpush2.msra.mxu0 0.0
    %193 = vmatprep.subr.mxu0 0.0
    %194 = vmatpush2.msra.mxu0 0.0
    %195 = vmatprep.subr.mxu0 0.0
    %196 = vmatpush2.msra.mxu0 0.0
    %197 = vmatprep.subr.mxu0 0.0
    %198 = vmatpush2.msra.mxu0 0.0
    %199 = vmatprep.subr.mxu0 0.0
    %200 = vmatpush2.msra.mxu0 0.0
    %201 = vmatprep.subr.mxu0 0.0
    %202 = vmatpush2.msra.mxu0 0.0
    %203 = vmatprep.subr.mxu0 0.0
    %204 = vmatpush2.msra.mxu0 0.0
    %205 = vmatprep.subr.mxu0 0.0
    %206 = vmatpush2.msra.mxu0 0.0
    %207 = vmatprep.mubr.f32.mxu0 0.0
    %208 = vmatmul.mubr.f32.gmra.mxu0 %v141
    %v209 = vpop.f32.mrf.mxu0
    %v210 = vadd.f32 0.0, %v209
    %v211 = vpop.f32.mrf.mxu0
    %212 = vdwg.mxu0
    %214 = vrot.lane.b32.xlu0 %v210, 127
    %v215 = vpop.permute.xlu0 %214
    %v217 = vrcp.pop %v215
    %v218 = vmul.f32 %v210, %v217
    %vm219 = vcmask 7168
    %220 = vst.msk [vmem:[%s10] sm:$0xff] %vm219, %v218
    %v221 = vld [vmem:[%s5] sm:$0x1]
    %223 = vset.pattern.permute.xlu0 0
    %224 = vperm.xlu0 %223, %v218
    %v225 = vpop.permute.xlu0 %224
    %v228 = vlaneseq
    %v229 = vshrl.u32 %v228, 7
    %v230 = vsub.s32 0, %v229
    %v231 = vrot.slane %v221, %v230
    %v233 = vsub.f32 %v225, %v231
    %v234 = vld [vmem:[%s6] sm:$0x1]
    %v235 = vsub.f32 0.0, %v234
    %v237 = vlaneseq
    %v238 = vshrl.u32 %v237, 7
    %v239 = vsub.s32 0, %v238
    %v240 = vrot.slane %v235, %v239
    %v242 = vmul.f32 %v240, %v233
    %v243 = vmul.f32 %v242, %v233
    %v244 = vmul.f32 %v243, 1.442695
    %v245 = vpow.pop %v244
    %v246 = vld [vmem:[%s7] sm:$0xf]
    %v247 = vld [vmem:[%s8] sm:$0x1]
    %v249 = vlaneseq
    %v250 = vshrl.u32 %v249, 7
    %v251 = vsub.s32 0, %v250
    %v252 = vrot.slane %v247, %v251
    %vm254 = vcmask 31744
    %v256 = vsel %vm254, %v245, 0
    %vm258 = vcmask 1043456
    %v260 = vsel %vm258, %v246, 0
    %262 = vmatprep.subr.mxu0 0.0
    %263 = vmatpush1.msra.mxu0 0.0
    %264 = vmatprep.subr.mxu0 0.0
    %265 = vmatpush1.msra.mxu0 0.0
    %266 = vmatprep.subr.mxu0 0.0
    %267 = vmatpush1.msra.mxu0 0.0
    %268 = vmatprep.subr.mxu0 0.0
    %269 = vmatpush1.msra.mxu0 0.0
    %270 = vmatprep.subr.mxu0 0.0
    %271 = vmatpush1.msra.mxu0 0.0
    %272 = vmatprep.subr.mxu0 0.0
    %273 = vmatpush1.msra.mxu0 0.0
    %274 = vmatprep.subr.mxu0 0.0
    %275 = vmatpush1.msra.mxu0 0.0
    %276 = vmatprep.subr.mxu0 0.0
    %277 = vmatpush1.msra.mxu0 0.0
    %278 = vmatprep.subr.mxu0 0.0
    %279 = vmatpush1.msra.mxu0 0.0
    %280 = vmatprep.subr.mxu0 0.0
    %281 = vmatpush1.msra.mxu0 0.0
    %282 = vmatprep.subr.mxu0 0.0
    %283 = vmatpush1.msra.mxu0 0.0
    %284 = vmatprep.subr.mxu0 0.0
    %285 = vmatpush1.msra.mxu0 0.0
    %286 = vmatprep.subr.mxu0 0.0
    %287 = vmatpush1.msra.mxu0 0.0
    %288 = vmatprep.subr.mxu0 0.0
    %289 = vmatpush1.msra.mxu0 0.0
    %290 = vmatprep.subr.mxu0 0.0
    %291 = vmatpush1.msra.mxu0 0.0
    %292 = vmatprep.subr.mxu0 0.0
    %293 = vmatpush1.msra.mxu0 %v260
    %294 = vmatprep.subr.mxu0 0.0
    %295 = vmatpush2.msra.mxu0 0.0
    %296 = vmatprep.subr.mxu0 0.0
    %297 = vmatpush2.msra.mxu0 0.0
    %298 = vmatprep.subr.mxu0 0.0
    %299 = vmatpush2.msra.mxu0 0.0
    %300 = vmatprep.subr.mxu0 0.0
    %301 = vmatpush2.msra.mxu0 0.0
    %302 = vmatprep.subr.mxu0 0.0
    %303 = vmatpush2.msra.mxu0 0.0
    %304 = vmatprep.subr.mxu0 0.0
    %305 = vmatpush2.msra.mxu0 0.0
    %306 = vmatprep.subr.mxu0 0.0
    %307 = vmatpush2.msra.mxu0 0.0
    %308 = vmatprep.subr.mxu0 0.0
    %309 = vmatpush2.msra.mxu0 0.0
    %310 = vmatprep.subr.mxu0 0.0
    %311 = vmatpush2.msra.mxu0 0.0
    %312 = vmatprep.subr.mxu0 0.0
    %313 = vmatpush2.msra.mxu0 0.0
    %314 = vmatprep.subr.mxu0 0.0
    %315 = vmatpush2.msra.mxu0 0.0
    %316 = vmatprep.subr.mxu0 0.0
    %317 = vmatpush2.msra.mxu0 0.0
    %318 = vmatprep.subr.mxu0 0.0
    %319 = vmatpush2.msra.mxu0 0.0
    %320 = vmatprep.subr.mxu0 0.0
    %321 = vmatpush2.msra.mxu0 0.0
    %322 = vmatprep.subr.mxu0 0.0
    %323 = vmatpush2.msra.mxu0 0.0
    %324 = vmatprep.subr.mxu0 0.0
    %325 = vmatpush2.msra.mxu0 0.0
    %326 = vmatprep.mubr.f32.mxu0 0.0
    %327 = vmatmul.mubr.f32.gmra.mxu0 %v256
    %v328 = vpop.f32.mrf.mxu0
    %v329 = vadd.f32 %v252, %v328
    %v330 = vpop.f32.mrf.mxu0
    %331 = vdwg.mxu0
    %vm332 = vcmask 15360
    %333 = vst.msk [vmem:[%s11] sm:$0xff] %vm332, %v329
    // Predicated region
    $region38: #{deep_idw_forward.3} parent=1 // pred_check
      _
    $region39: #{deep_idw_forward.3} parent=1 // pred_check_branch
      %335 = sbr.rel (0) target = $region41
    $region40: #{deep_idw_forward.3} parent=1 // pred_region
      %s337 = ssub.s32 128, 128
      %338 = vsyncadd [#allocation4], %s337
      %s340 = sshll.u32 [#allocation3], 4
      %s341 = int_to_ptr.vmem [resolvable:$true] %s340
      %343 = dma.vmem_to_hbm [thread:$0]  %s341, 128, %s9, [#allocation4]
    $region41: #{deep_idw_forward.3} parent=1 // pred_fallthru
      _
    // Predicated region
    $region42: #{deep_idw_forward.3} parent=1 // pred_check
      _
    $region43: #{deep_idw_forward.3} parent=1 // pred_check_branch
      %345 = sbr.rel (0) target = $region45
    $region44: #{deep_idw_forward.3} parent=1 // pred_region
      _
    $region45: #{deep_idw_forward.3} parent=1 // pred_fallthru
      _
    // Predicated region
    $region46: #{deep_idw_forward.3} parent=1 // pred_check
      _
    $region47: #{deep_idw_forward.3} parent=1 // pred_check_branch
      %347 = sbr.rel (0) target = $region49
    $region48: #{deep_idw_forward.3} parent=1 // pred_region
      _
    $region49: #{deep_idw_forward.3} parent=1 // pred_fallthru
      _
    // Predicated region
    $region50: #{deep_idw_forward.3} parent=1 // pred_check
      _
    $region51: #{deep_idw_forward.3} parent=1 // pred_check_branch
      %349 = sbr.rel (0) target = $region53
    $region52: #{deep_idw_forward.3} parent=1 // pred_region
      %350 = dma.done [#allocation4], 128
    $region53: #{deep_idw_forward.3} parent=1 // pred_fallthru
      _
    // Predicated region
    $region54: #{deep_idw_forward.3} parent=1 // pred_check
      _
    $region55: #{deep_idw_forward.3} parent=1 // pred_check_branch
      %352 = sbr.rel (0) target = $region57
    $region56: #{deep_idw_forward.3} parent=1 // pred_region
      _
    $region57: #{deep_idw_forward.3} parent=1 // pred_fallthru
      _
    // Predicated region
    $region58: #{deep_idw_forward.3} parent=1 // pred_check
      _
    $region59: #{deep_idw_forward.3} parent=1 // pred_check_branch
      %354 = sbr.rel (0) target = $region61
    $region60: #{deep_idw_forward.3} parent=1 // pred_region
      _
    $region61: #{deep_idw_forward.3} parent=1 // pred_fallthru
      _
    %355 = vsyncpa [#allocation4], 1

// kernel: deep_idw_forward.2
$region0: #{deep_idw_forward.2}
  #allocation0 [shape = 'u32[]', space=smem, size = 0x4, offset = 0x4, fixed_abs, tag = 'smem constant byte address 0x4 - core index']
  #allocation1 [shape = 'u32[144,128]{1,0:T(1,128)}', space=vmem, size = 0x12000, scoped, tag = 'internal scratch']
  #allocation2 [shape = 'f32[1,1]{1,0:T(1,128)S(1)}', space=vmem, size = 0x200, scoped, tag = 'scoped memory for deep_idw_forward.2']
  #allocation3 [shape = 'f32[1,1]{1,0:T(1,128)S(1)}', space=vmem, size = 0x200, scoped, tag = 'scoped memory for deep_idw_forward.2']
  #allocation4 [shape = 'f32[1,1]{1,0:T(1,128)S(1)}', space=vmem, size = 0x200, scoped, tag = 'scoped memory for deep_idw_forward.2']
  #allocation5 [shape = 'f32[1,1]{1,0:T(1,128)S(1)}', space=vmem, size = 0x200, scoped, tag = 'scoped memory for deep_idw_forward.2']
  %s0 = inlined_call_operand.smem [shape: u32[41], index: -1, kind: input, shape index: {}]
  %s1 = sld [smem:[%s0]]
  %s2 = scalar_lea.smem %s0, 1
  %s3 = sld [smem:[%s2]]
  %s4 = scalar_lea.smem %s0, 2
  %s5 = sld [smem:[%s4]]
  %s6 = scalar_lea.smem %s0, 3
  %s7 = sld [smem:[%s6]]
  %s8 = scalar_lea.smem %s0, 4
  %s9 = sld [smem:[%s8]]
  %s10 = scalar_lea.smem %s0, 5
  %s11 = sld [smem:[%s10]]
  %s12 = scalar_lea.smem %s0, 6
  %s13 = sld [smem:[%s12]]
  %s14 = scalar_lea.smem %s0, 7
  %s15 = sld [smem:[%s14]]
  %s16 = scalar_lea.smem %s0, 8
  %s17 = sld [smem:[%s16]]
  %s18 = scalar_lea.smem %s0, 9
  %s19 = sld [smem:[%s18]]
  %s20 = scalar_lea.smem %s0, 10
  %s21 = sld [smem:[%s20]]
  %s22 = scalar_lea.smem %s0, 11
  %s23 = sld [smem:[%s22]]
  %s24 = scalar_lea.smem %s0, 12
  %s25 = sld [smem:[%s24]]
  %s26 = scalar_lea.smem %s0, 13
  %s27 = sld [smem:[%s26]]
  %s28 = scalar_lea.smem %s0, 14
  %s29 = sld [smem:[%s28]]
  %s30 = scalar_lea.smem %s0, 15
  %s31 = sld [smem:[%s30]]
  %s32 = scalar_lea.smem %s0, 16
  %s33 = sld [smem:[%s32]]
  %s34 = scalar_lea.smem %s0, 17
  %s35 = sld [smem:[%s34]]
  %s36 = scalar_lea.smem %s0, 18
  %s37 = sld [smem:[%s36]]
  %s38 = scalar_lea.smem %s0, 19
  %s39 = sld [smem:[%s38]]
  %s40 = scalar_lea.smem %s0, 20
  %s41 = sld [smem:[%s40]]
  %s42 = scalar_lea.smem %s0, 21
  %s43 = sld [smem:[%s42]]
  %s44 = scalar_lea.smem %s0, 22
  %s45 = sld [smem:[%s44]]
  %s46 = scalar_lea.smem %s0, 23
  %s47 = sld [smem:[%s46]]
  %s48 = scalar_lea.smem %s0, 24
  %s49 = sld [smem:[%s48]]
  %s50 = scalar_lea.smem %s0, 25
  %s51 = sld [smem:[%s50]]
  %s52 = scalar_lea.smem %s0, 26
  %s53 = sld [smem:[%s52]]
  %s54 = scalar_lea.smem %s0, 27
  %s55 = sld [smem:[%s54]]
  %s56 = scalar_lea.smem %s0, 28
  %s57 = sld [smem:[%s56]]
  %s58 = scalar_lea.smem %s0, 29
  %s59 = sld [smem:[%s58]]
  %s60 = scalar_lea.smem %s0, 30
  %s61 = sld [smem:[%s60]]
  %s62 = scalar_lea.smem %s0, 31
  %s63 = sld [smem:[%s62]]
  %s64 = scalar_lea.smem %s0, 32
  %s65 = sld [smem:[%s64]]
  %s66 = scalar_lea.smem %s0, 33
  %s67 = sld [smem:[%s66]]
  %s68 = scalar_lea.smem %s0, 34
  %s69 = sld [smem:[%s68]]
  %s70 = scalar_lea.smem %s0, 35
  %s71 = sld [smem:[%s70]]
  %s72 = scalar_lea.smem %s0, 36
  %s73 = sld [smem:[%s72]]
  %s74 = scalar_lea.smem %s0, 37
  %s75 = sld [smem:[%s74]]
  %s76 = scalar_lea.smem %s0, 38
  %s77 = sld [smem:[%s76]]
  %s78 = scalar_lea.smem %s0, 39
  %s79 = sld [smem:[%s78]]
  %s80 = scalar_lea.smem %s0, 40
  %s81 = sld [smem:[%s80]]
  %82 = xla_tuple %s61, %s63, %s65, %s67, %s69, %s71, %s73, %s75, %s77, %s79, %s81
  %s83 = sld [smem:[#allocation0]]
  $region210: #{deep_idw_forward.2} parent=0
    _
  %s85 = ssub.s32 1, %s83
  %s86 = scalar_select 0, %s85, %s83
  %v87 = vstv %s15
  %88 = vst [vmem:[#allocation2] sm:$0x1] %v87
  %v89 = vstv %s19
  %90 = vst [vmem:[#allocation3] sm:$0x1] %v89
  %v91 = vstv %s35
  %92 = vst [vmem:[#allocation4] sm:$0x1] %v91
  %v93 = vstv %s39
  %94 = vst [vmem:[#allocation5] sm:$0x1] %v93
  $region1: #{deep_idw_forward.2} parent=0
    #allocation6 [shape = 'u8[2048]{0}', space=vmem, size = 0x800, scoped, tag = 'output window, operand 0, single buffered']
    #allocation7 [shape = 's32[1]{0}', space=sflag, size = 0x4, scoped, tag = 'scoped memory for deep_idw_forward.2']
    #allocation8 [shape = 'u8[512]{0}', space=vmem, size = 0x400, scoped, tag = 'output window, operand 1, single buffered']
    #allocation9 [shape = 's32[1]{0}', space=sflag, size = 0x4, scoped, tag = 'scoped memory for deep_idw_forward.2']
    #allocation10 [shape = 'u8[512]{0}', space=vmem, size = 0x400, scoped, tag = 'output window, operand 2, single buffered']
    #allocation11 [shape = 'u8[512]{0}', space=vmem, size = 0x400, scoped, tag = 'output window, operand 3, single buffered']
    #allocation12 [shape = 's32[1]{0}', space=sflag, size = 0x4, scoped, tag = 'scoped memory for deep_idw_forward.2']
    #allocation13 [shape = 'u8[512]{0}', space=vmem, size = 0x400, scoped, tag = 'output window, operand 4, single buffered']
    #allocation14 [shape = 'u8[1024]{0}', space=vmem, size = 0x400, scoped, tag = 'output window, operand 5, single buffered']
    #allocation15 [shape = 's32[1]{0}', space=sflag, size = 0x4, scoped, tag = 'scoped memory for deep_idw_forward.2']
    #allocation16 [shape = 'u8[512]{0}', space=vmem, size = 0x400, scoped, tag = 'output window, operand 6, single buffered']
    #allocation17 [shape = 'u8[512]{0}', space=vmem, size = 0x400, scoped, tag = 'output window, operand 7, single buffered']
    #allocation18 [shape = 's32[1]{0}', space=sflag, size = 0x4, scoped, tag = 'scoped memory for deep_idw_forward.2']
    #allocation19 [shape = 'u8[512]{0}', space=vmem, size = 0x400, scoped, tag = 'output window, operand 8, single buffered']
    #allocation20 [shape = 'u8[512]{0}', space=vmem, size = 0x400, scoped, tag = 'output window, operand 9, single buffered']
    #allocation21 [shape = 's32[1]{0}', space=sflag, size = 0x4, scoped, tag = 'scoped memory for deep_idw_forward.2']
    %95 = vsyncpa [#allocation7], 0
    %96 = vsyncpa [#allocation9], 0
    %97 = vsyncpa [#allocation12], 0
    %98 = vsyncpa [#allocation15], 0
    %99 = vsyncpa [#allocation18], 0
    %100 = vsyncpa [#allocation21], 0
    // Predicated region
    $region2: #{deep_idw_forward.2} parent=1 // pred_check
      _
    $region3: #{deep_idw_forward.2} parent=1 // pred_check_branch
      %102 = sbr.rel (0) target = $region5
    $region4: #{deep_idw_forward.2} parent=1 // pred_region
      _
    $region5: #{deep_idw_forward.2} parent=1 // pred_fallthru
      _
    // Predicated region
    $region6: #{deep_idw_forward.2} parent=1 // pred_check
      _
    $region7: #{deep_idw_forward.2} parent=1 // pred_check_branch
      %104 = sbr.rel (0) target = $region9
    $region8: #{deep_idw_forward.2} parent=1 // pred_region
      _
    $region9: #{deep_idw_forward.2} parent=1 // pred_fallthru
      _
    // Predicated region
    $region10: #{deep_idw_forward.2} parent=1 // pred_check
      _
    $region11: #{deep_idw_forward.2} parent=1 // pred_check_branch
      %106 = sbr.rel (0) target = $region13
    $region12: #{deep_idw_forward.2} parent=1 // pred_region
      _
    $region13: #{deep_idw_forward.2} parent=1 // pred_fallthru
      _
    // Predicated region
    $region14: #{deep_idw_forward.2} parent=1 // pred_check
      _
    $region15: #{deep_idw_forward.2} parent=1 // pred_check_branch
      %108 = sbr.rel (0) target = $region17
    $region16: #{deep_idw_forward.2} parent=1 // pred_region
      _
    $region17: #{deep_idw_forward.2} parent=1 // pred_fallthru
      _
    // Predicated region
    $region18: #{deep_idw_forward.2} parent=1 // pred_check
      _
    $region19: #{deep_idw_forward.2} parent=1 // pred_check_branch
      %110 = sbr.rel (0) target = $region21
    $region20: #{deep_idw_forward.2} parent=1 // pred_region
      _
    $region21: #{deep_idw_forward.2} parent=1 // pred_fallthru
      _
    // Predicated region
    $region22: #{deep_idw_forward.2} parent=1 // pred_check
      _
    $region23: #{deep_idw_forward.2} parent=1 // pred_check_branch
      %112 = sbr.rel (0) target = $region25
    $region24: #{deep_idw_forward.2} parent=1 // pred_region
      _
    $region25: #{deep_idw_forward.2} parent=1 // pred_fallthru
      _
    // Predicated region
    $region26: #{deep_idw_forward.2} parent=1 // pred_check
      _
    $region27: #{deep_idw_forward.2} parent=1 // pred_check_branch
      %114 = sbr.rel (0) target = $region29
    $region28: #{deep_idw_forward.2} parent=1 // pred_region
      _
    $region29: #{deep_idw_forward.2} parent=1 // pred_fallthru
      _
    // Predicated region
    $region30: #{deep_idw_forward.2} parent=1 // pred_check
      _
    $region31: #{deep_idw_forward.2} parent=1 // pred_check_branch
      %116 = sbr.rel (0) target = $region33
    $region32: #{deep_idw_forward.2} parent=1 // pred_region
      _
    $region33: #{deep_idw_forward.2} parent=1 // pred_fallthru
      _
    // Predicated region
    $region34: #{deep_idw_forward.2} parent=1 // pred_check
      _
    $region35: #{deep_idw_forward.2} parent=1 // pred_check_branch
      %118 = sbr.rel (0) target = $region37
    $region36: #{deep_idw_forward.2} parent=1 // pred_region
      _
    $region37: #{deep_idw_forward.2} parent=1 // pred_fallthru
      _
    // Predicated region
    $region38: #{deep_idw_forward.2} parent=1 // pred_check
      _
    $region39: #{deep_idw_forward.2} parent=1 // pred_check_branch
      %120 = sbr.rel (0) target = $region41
    $region40: #{deep_idw_forward.2} parent=1 // pred_region
      _
    $region41: #{deep_idw_forward.2} parent=1 // pred_fallthru
      _
    // Predicated region
    $region42: #{deep_idw_forward.2} parent=1 // pred_check
      _
    $region43: #{deep_idw_forward.2} parent=1 // pred_check_branch
      %122 = sbr.rel (0) target = $region45
    $region44: #{deep_idw_forward.2} parent=1 // pred_region
      _
    $region45: #{deep_idw_forward.2} parent=1 // pred_fallthru
      _
    // Predicated region
    $region46: #{deep_idw_forward.2} parent=1 // pred_check
      _
    $region47: #{deep_idw_forward.2} parent=1 // pred_check_branch
      %124 = sbr.rel (0) target = $region49
    $region48: #{deep_idw_forward.2} parent=1 // pred_region
      _
    $region49: #{deep_idw_forward.2} parent=1 // pred_fallthru
      _
    // Predicated region
    $region50: #{deep_idw_forward.2} parent=1 // pred_check
      _
    $region51: #{deep_idw_forward.2} parent=1 // pred_check_branch
      %126 = sbr.rel (0) target = $region53
    $region52: #{deep_idw_forward.2} parent=1 // pred_region
      _
    $region53: #{deep_idw_forward.2} parent=1 // pred_fallthru
      _
    // Predicated region
    $region54: #{deep_idw_forward.2} parent=1 // pred_check
      _
    $region55: #{deep_idw_forward.2} parent=1 // pred_check_branch
      %128 = sbr.rel (0) target = $region57
    $region56: #{deep_idw_forward.2} parent=1 // pred_region
      _
    $region57: #{deep_idw_forward.2} parent=1 // pred_fallthru
      _
    // Predicated region
    $region58: #{deep_idw_forward.2} parent=1 // pred_check
      _
    $region59: #{deep_idw_forward.2} parent=1 // pred_check_branch
      %130 = sbr.rel (0) target = $region61
    $region60: #{deep_idw_forward.2} parent=1 // pred_region
      _
    $region61: #{deep_idw_forward.2} parent=1 // pred_fallthru
      _
    // Predicated region
    $region62: #{deep_idw_forward.2} parent=1 // pred_check
      _
    $region63: #{deep_idw_forward.2} parent=1 // pred_check_branch
      %132 = sbr.rel (0) target = $region65
    $region64: #{deep_idw_forward.2} parent=1 // pred_region
      _
    $region65: #{deep_idw_forward.2} parent=1 // pred_fallthru
      _
    // Predicated region
    $region66: #{deep_idw_forward.2} parent=1 // pred_check
      _
    $region67: #{deep_idw_forward.2} parent=1 // pred_check_branch
      %134 = sbr.rel (0) target = $region69
    $region68: #{deep_idw_forward.2} parent=1 // pred_region
      _
    $region69: #{deep_idw_forward.2} parent=1 // pred_fallthru
      _
    // Predicated region
    $region70: #{deep_idw_forward.2} parent=1 // pred_check
      _
    $region71: #{deep_idw_forward.2} parent=1 // pred_check_branch
      %136 = sbr.rel (0) target = $region73
    $region72: #{deep_idw_forward.2} parent=1 // pred_region
      _
    $region73: #{deep_idw_forward.2} parent=1 // pred_fallthru
      _
    // Predicated region
    $region74: #{deep_idw_forward.2} parent=1 // pred_check
      _
    $region75: #{deep_idw_forward.2} parent=1 // pred_check_branch
      %138 = sbr.rel (0) target = $region77
    $region76: #{deep_idw_forward.2} parent=1 // pred_region
      _
    $region77: #{deep_idw_forward.2} parent=1 // pred_fallthru
      _
    // Predicated region
    $region78: #{deep_idw_forward.2} parent=1 // pred_check
      _
    $region79: #{deep_idw_forward.2} parent=1 // pred_check_branch
      %140 = sbr.rel (0) target = $region81
    $region80: #{deep_idw_forward.2} parent=1 // pred_region
      _
    $region81: #{deep_idw_forward.2} parent=1 // pred_fallthru
      _
    // Predicated region
    $region82: #{deep_idw_forward.2} parent=1 // pred_check
      _
    $region83: #{deep_idw_forward.2} parent=1 // pred_check_branch
      %142 = sbr.rel (0) target = $region85
    $region84: #{deep_idw_forward.2} parent=1 // pred_region
      _
    $region85: #{deep_idw_forward.2} parent=1 // pred_fallthru
      _
    // Predicated region
    $region86: #{deep_idw_forward.2} parent=1 // pred_check
      _
    $region87: #{deep_idw_forward.2} parent=1 // pred_check_branch
      %144 = sbr.rel (0) target = $region89
    $region88: #{deep_idw_forward.2} parent=1 // pred_region
      _
    $region89: #{deep_idw_forward.2} parent=1 // pred_fallthru
      _
    // Predicated region
    $region90: #{deep_idw_forward.2} parent=1 // pred_check
      _
    $region91: #{deep_idw_forward.2} parent=1 // pred_check_branch
      %146 = sbr.rel (0) target = $region93
    $region92: #{deep_idw_forward.2} parent=1 // pred_region
      _
    $region93: #{deep_idw_forward.2} parent=1 // pred_fallthru
      _
    // Predicated region
    $region94: #{deep_idw_forward.2} parent=1 // pred_check
      _
    $region95: #{deep_idw_forward.2} parent=1 // pred_check_branch
      %148 = sbr.rel (0) target = $region97
    $region96: #{deep_idw_forward.2} parent=1 // pred_region
      _
    $region97: #{deep_idw_forward.2} parent=1 // pred_fallthru
      _
    // Predicated region
    $region98: #{deep_idw_forward.2} parent=1 // pred_check
      _
    $region99: #{deep_idw_forward.2} parent=1 // pred_check_branch
      %150 = sbr.rel (0) target = $region101
    $region100: #{deep_idw_forward.2} parent=1 // pred_region
      _
    $region101: #{deep_idw_forward.2} parent=1 // pred_fallthru
      _
    // Predicated region
    $region102: #{deep_idw_forward.2} parent=1 // pred_check
      _
    $region103: #{deep_idw_forward.2} parent=1 // pred_check_branch
      %152 = sbr.rel (0) target = $region105
    $region104: #{deep_idw_forward.2} parent=1 // pred_region
      _
    $region105: #{deep_idw_forward.2} parent=1 // pred_fallthru
      _
    // Predicated region
    $region106: #{deep_idw_forward.2} parent=1 // pred_check
      _
    $region107: #{deep_idw_forward.2} parent=1 // pred_check_branch
      %154 = sbr.rel (0) target = $region109
    $region108: #{deep_idw_forward.2} parent=1 // pred_region
      _
    $region109: #{deep_idw_forward.2} parent=1 // pred_fallthru
      _
    // Predicated region
    $region110: #{deep_idw_forward.2} parent=1 // pred_check
      _
    $region111: #{deep_idw_forward.2} parent=1 // pred_check_branch
      %156 = sbr.rel (0) target = $region113
    $region112: #{deep_idw_forward.2} parent=1 // pred_region
      _
    $region113: #{deep_idw_forward.2} parent=1 // pred_fallthru
      _
    // Predicated region
    $region114: #{deep_idw_forward.2} parent=1 // pred_check
      _
    $region115: #{deep_idw_forward.2} parent=1 // pred_check_branch
      %158 = sbr.rel (0) target = $region117
    $region116: #{deep_idw_forward.2} parent=1 // pred_region
      _
    $region117: #{deep_idw_forward.2} parent=1 // pred_fallthru
      _
    // Predicated region
    $region118: #{deep_idw_forward.2} parent=1 // pred_check
      _
    $region119: #{deep_idw_forward.2} parent=1 // pred_check_branch
      %160 = sbr.rel (0) target = $region121
    $region120: #{deep_idw_forward.2} parent=1 // pred_region
      _
    $region121: #{deep_idw_forward.2} parent=1 // pred_fallthru
      _
    %v161 = vld [vmem:[%s9] sm:$0x7]
    %v162 = vld [vmem:[%s1] sm:$0x7]
    %v163 = vld [vmem:[%s11] sm:$0x7]
    %165 = vset.pattern.permute.xlu0 0
    %166 = vperm.xlu0 %165, %v163
    %v167 = vpop.permute.xlu0 %166
    %vm169 = vcmask 23552
    %v171 = vsel %vm169, %v161, 0
    %vm173 = vcmask 1042432
    %v175 = vsel %vm173, %v162, 0
    %177 = vmatprep.subr.mxu0 0.0
    %178 = vmatpush1.msra.mxu0 0.0
    %179 = vmatprep.subr.mxu0 0.0
    %180 = vmatpush1.msra.mxu0 0.0
    %181 = vmatprep.subr.mxu0 0.0
    %182 = vmatpush1.msra.mxu0 0.0
    %183 = vmatprep.subr.mxu0 0.0
    %184 = vmatpush1.msra.mxu0 0.0
    %185 = vmatprep.subr.mxu0 0.0
    %186 = vmatpush1.msra.mxu0 0.0
    %187 = vmatprep.subr.mxu0 0.0
    %188 = vmatpush1.msra.mxu0 0.0
    %189 = vmatprep.subr.mxu0 0.0
    %190 = vmatpush1.msra.mxu0 0.0
    %191 = vmatprep.subr.mxu0 0.0
    %192 = vmatpush1.msra.mxu0 0.0
    %193 = vmatprep.subr.mxu0 0.0
    %194 = vmatpush1.msra.mxu0 0.0
    %195 = vmatprep.subr.mxu0 0.0
    %196 = vmatpush1.msra.mxu0 0.0
    %197 = vmatprep.subr.mxu0 0.0
    %198 = vmatpush1.msra.mxu0 0.0
    %199 = vmatprep.subr.mxu0 0.0
    %200 = vmatpush1.msra.mxu0 0.0
    %201 = vmatprep.subr.mxu0 0.0
    %202 = vmatpush1.msra.mxu0 0.0
    %203 = vmatprep.subr.mxu0 0.0
    %204 = vmatpush1.msra.mxu0 0.0
    %205 = vmatprep.subr.mxu0 0.0
    %206 = vmatpush1.msra.mxu0 0.0
    %207 = vmatprep.subr.mxu0 0.0
    %208 = vmatpush1.msra.mxu0 %v175
    %209 = vmatprep.subr.mxu0 0.0
    %210 = vmatpush2.msra.mxu0 0.0
    %211 = vmatprep.subr.mxu0 0.0
    %212 = vmatpush2.msra.mxu0 0.0
    %213 = vmatprep.subr.mxu0 0.0
    %214 = vmatpush2.msra.mxu0 0.0
    %215 = vmatprep.subr.mxu0 0.0
    %216 = vmatpush2.msra.mxu0 0.0
    %217 = vmatprep.subr.mxu0 0.0
    %218 = vmatpush2.msra.mxu0 0.0
    %219 = vmatprep.subr.mxu0 0.0
    %220 = vmatpush2.msra.mxu0 0.0
    %221 = vmatprep.subr.mxu0 0.0
    %222 = vmatpush2.msra.mxu0 0.0
    %223 = vmatprep.subr.mxu0 0.0
    %224 = vmatpush2.msra.mxu0 0.0
    %225 = vmatprep.subr.mxu0 0.0
    %226 = vmatpush2.msra.mxu0 0.0
    %227 = vmatprep.subr.mxu0 0.0
    %228 = vmatpush2.msra.mxu0 0.0
    %229 = vmatprep.subr.mxu0 0.0
    %230 = vmatpush2.msra.mxu0 0.0
    %231 = vmatprep.subr.mxu0 0.0
    %232 = vmatpush2.msra.mxu0 0.0
    %233 = vmatprep.subr.mxu0 0.0
    %234 = vmatpush2.msra.mxu0 0.0
    %235 = vmatprep.subr.mxu0 0.0
    %236 = vmatpush2.msra.mxu0 0.0
    %237 = vmatprep.subr.mxu0 0.0
    %238 = vmatpush2.msra.mxu0 0.0
    %239 = vmatprep.subr.mxu0 0.0
    %240 = vmatpush2.msra.mxu0 0.0
    %241 = vmatprep.mubr.f32.mxu0 0.0
    %242 = vmatmul.mubr.f32.gmra.mxu0 %v171
    %v243 = vpop.f32.mrf.mxu0
    %v244 = vadd.f32 %v167, %v243
    %v245 = vpop.f32.mrf.mxu0
    %246 = vdwg.mxu0
    %v247 = vmax.f32 %v244, 0.0
    %v248 = vld [vmem:[%s13] sm:$0x1]
    %v249 = vld [vmem:[#allocation2] sm:$0x1]
    %251 = vset.pattern.permute.xlu0 0
    %252 = vperm.xlu0 %251, %v249
    %v253 = vpop.permute.xlu0 %252
    %v255 = vlaneseq
    %v256 = vshrl.u32 %v255, 7
    %v257 = vsub.s32 0, %v256
    %v258 = vrot.slane %v253, %v257
    %v260 = vsel %vm169, %v248, 0
    %v263 = vsel %vm173, %v247, 0
    %265 = vmatprep.subr.mxu0 0.0
    %266 = vmatpush1.msra.mxu0 0.0
    %267 = vmatprep.subr.mxu0 0.0
    %268 = vmatpush1.msra.mxu0 0.0
    %269 = vmatprep.subr.mxu0 0.0
    %270 = vmatpush1.msra.mxu0 0.0
    %271 = vmatprep.subr.mxu0 0.0
    %272 = vmatpush1.msra.mxu0 0.0
    %273 = vmatprep.subr.mxu0 0.0
    %274 = vmatpush1.msra.mxu0 0.0
    %275 = vmatprep.subr.mxu0 0.0
    %276 = vmatpush1.msra.mxu0 0.0
    %277 = vmatprep.subr.mxu0 0.0
    %278 = vmatpush1.msra.mxu0 0.0
    %279 = vmatprep.subr.mxu0 0.0
    %280 = vmatpush1.msra.mxu0 0.0
    %281 = vmatprep.subr.mxu0 0.0
    %282 = vmatpush1.msra.mxu0 0.0
    %283 = vmatprep.subr.mxu0 0.0
    %284 = vmatpush1.msra.mxu0 0.0
    %285 = vmatprep.subr.mxu0 0.0
    %286 = vmatpush1.msra.mxu0 0.0
    %287 = vmatprep.subr.mxu0 0.0
    %288 = vmatpush1.msra.mxu0 0.0
    %289 = vmatprep.subr.mxu0 0.0
    %290 = vmatpush1.msra.mxu0 0.0
    %291 = vmatprep.subr.mxu0 0.0
    %292 = vmatpush1.msra.mxu0 0.0
    %293 = vmatprep.subr.mxu0 0.0
    %294 = vmatpush1.msra.mxu0 0.0
    %295 = vmatprep.subr.mxu0 0.0
    %296 = vmatpush1.msra.mxu0 %v263
    %297 = vmatprep.subr.mxu0 0.0
    %298 = vmatpush2.msra.mxu0 0.0
    %299 = vmatprep.subr.mxu0 0.0
    %300 = vmatpush2.msra.mxu0 0.0
    %301 = vmatprep.subr.mxu0 0.0
    %302 = vmatpush2.msra.mxu0 0.0
    %303 = vmatprep.subr.mxu0 0.0
    %304 = vmatpush2.msra.mxu0 0.0
    %305 = vmatprep.subr.mxu0 0.0
    %306 = vmatpush2.msra.mxu0 0.0
    %307 = vmatprep.subr.mxu0 0.0
    %308 = vmatpush2.msra.mxu0 0.0
    %309 = vmatprep.subr.mxu0 0.0
    %310 = vmatpush2.msra.mxu0 0.0
    %311 = vmatprep.subr.mxu0 0.0
    %312 = vmatpush2.msra.mxu0 0.0
    %313 = vmatprep.subr.mxu0 0.0
    %314 = vmatpush2.msra.mxu0 0.0
    %315 = vmatprep.subr.mxu0 0.0
    %316 = vmatpush2.msra.mxu0 0.0
    %317 = vmatprep.subr.mxu0 0.0
    %318 = vmatpush2.msra.mxu0 0.0
    %319 = vmatprep.subr.mxu0 0.0
    %320 = vmatpush2.msra.mxu0 0.0
    %321 = vmatprep.subr.mxu0 0.0
    %322 = vmatpush2.msra.mxu0 0.0
    %323 = vmatprep.subr.mxu0 0.0
    %324 = vmatpush2.msra.mxu0 0.0
    %325 = vmatprep.subr.mxu0 0.0
    %326 = vmatpush2.msra.mxu0 0.0
    %327 = vmatprep.subr.mxu0 0.0
    %328 = vmatpush2.msra.mxu0 0.0
    %329 = vmatprep.mubr.f32.mxu0 0.0
    %330 = vmatmul.mubr.f32.gmra.mxu0 %v260
    %v331 = vpop.f32.mrf.mxu0
    %v332 = vadd.f32 %v258, %v331
    %v333 = vpop.f32.mrf.mxu0
    %334 = vdwg.mxu0
    %v335 = vld [vmem:[%s17] sm:$0x1]
    %v336 = vld [vmem:[#allocation3] sm:$0x1]
    %338 = vset.pattern.permute.xlu0 0
    %339 = vperm.xlu0 %338, %v336
    %v340 = vpop.permute.xlu0 %339
    %v342 = vlaneseq
    %v343 = vshrl.u32 %v342, 7
    %v344 = vsub.s32 0, %v343
    %v345 = vrot.slane %v340, %v344
    %v347 = vsel %vm169, %v335, 0
    %349 = vmatprep.subr.mxu0 0.0
    %350 = vmatpush1.msra.mxu0 0.0
    %351 = vmatprep.subr.mxu0 0.0
    %352 = vmatpush1.msra.mxu0 0.0
    %353 = vmatprep.subr.mxu0 0.0
    %354 = vmatpush1.msra.mxu0 0.0
    %355 = vmatprep.subr.mxu0 0.0
    %356 = vmatpush1.msra.mxu0 0.0
    %357 = vmatprep.subr.mxu0 0.0
    %358 = vmatpush1.msra.mxu0 0.0
    %359 = vmatprep.subr.mxu0 0.0
    %360 = vmatpush1.msra.mxu0 0.0
    %361 = vmatprep.subr.mxu0 0.0
    %362 = vmatpush1.msra.mxu0 0.0
    %363 = vmatprep.subr.mxu0 0.0
    %364 = vmatpush1.msra.mxu0 0.0
    %365 = vmatprep.subr.mxu0 0.0
    %366 = vmatpush1.msra.mxu0 0.0
    %367 = vmatprep.subr.mxu0 0.0
    %368 = vmatpush1.msra.mxu0 0.0
    %369 = vmatprep.subr.mxu0 0.0
    %370 = vmatpush1.msra.mxu0 0.0
    %371 = vmatprep.subr.mxu0 0.0
    %372 = vmatpush1.msra.mxu0 0.0
    %373 = vmatprep.subr.mxu0 0.0
    %374 = vmatpush1.msra.mxu0 0.0
    %375 = vmatprep.subr.mxu0 0.0
    %376 = vmatpush1.msra.mxu0 0.0
    %377 = vmatprep.subr.mxu0 0.0
    %378 = vmatpush1.msra.mxu0 0.0
    %379 = vmatprep.subr.mxu0 0.0
    %380 = vmatpush1.msra.mxu0 %v263
    %381 = vmatprep.subr.mxu0 0.0
    %382 = vmatpush2.msra.mxu0 0.0
    %383 = vmatprep.subr.mxu0 0.0
    %384 = vmatpush2.msra.mxu0 0.0
    %385 = vmatprep.subr.mxu0 0.0
    %386 = vmatpush2.msra.mxu0 0.0
    %387 = vmatprep.subr.mxu0 0.0
    %388 = vmatpush2.msra.mxu0 0.0
    %389 = vmatprep.subr.mxu0 0.0
    %390 = vmatpush2.msra.mxu0 0.0
    %391 = vmatprep.subr.mxu0 0.0
    %392 = vmatpush2.msra.mxu0 0.0
    %393 = vmatprep.subr.mxu0 0.0
    %394 = vmatpush2.msra.mxu0 0.0
    %395 = vmatprep.subr.mxu0 0.0
    %396 = vmatpush2.msra.mxu0 0.0
    %397 = vmatprep.subr.mxu0 0.0
    %398 = vmatpush2.msra.mxu0 0.0
    %399 = vmatprep.subr.mxu0 0.0
    %400 = vmatpush2.msra.mxu0 0.0
    %401 = vmatprep.subr.mxu0 0.0
    %402 = vmatpush2.msra.mxu0 0.0
    %403 = vmatprep.subr.mxu0 0.0
    %404 = vmatpush2.msra.mxu0 0.0
    %405 = vmatprep.subr.mxu0 0.0
    %406 = vmatpush2.msra.mxu0 0.0
    %407 = vmatprep.subr.mxu0 0.0
    %408 = vmatpush2.msra.mxu0 0.0
    %409 = vmatprep.subr.mxu0 0.0
    %410 = vmatpush2.msra.mxu0 0.0
    %411 = vmatprep.subr.mxu0 0.0
    %412 = vmatpush2.msra.mxu0 0.0
    %413 = vmatprep.mubr.f32.mxu0 0.0
    %414 = vmatmul.mubr.f32.gmra.mxu0 %v347
    %v415 = vpop.f32.mrf.mxu0
    %v416 = vadd.f32 %v345, %v415
    %v417 = vpop.f32.mrf.mxu0
    %418 = vdwg.mxu0
    %v419 = vmul.f32 %v416, 1.442695
    %v420 = vpow.pop %v419
    %v421 = vmul.f32 %v416, 0.5
    %v422 = vmul.f32 %v421, 1.442695
    %v423 = vpow.pop %v422
    %v424 = vld [vmem:[%s5] sm:$0x1]
    %v425 = vmul.f32 %v423, %v424
    %v426 = vadd.f32 %v332, %v425
    %v427 = vld [vmem:[%s21] sm:$0x7]
    %v428 = vlaneseq
    %v429 = vshrl.u32 %v428, 7
    %v430 = vsub.s32 0, %v429
    %v431 = vrot.slane %v426, %v430
    %433 = vset.pattern.permute.xlu0 0
    %434 = vperm.xlu0 %433, %v427
    %v435 = vpop.permute.xlu0 %434
    %v437 = vsub.f32 %v431, %v435
    %v438 = vld [vmem:[%s23] sm:$0x7]
    %v439 = vsub.f32 0.0, %v438
    %441 = vset.pattern.permute.xlu0 0
    %442 = vperm.xlu0 %441, %v439
    %v443 = vpop.permute.xlu0 %442
    %v445 = vmul.f32 %v443, %v437
    %v446 = vmul.f32 %v445, %v437
    %v447 = vmul.f32 %v446, 1.442695
    %v448 = vpow.pop %v447
    %v449 = vld [vmem:[%s25] sm:$0x7]
    %v450 = vld [vmem:[%s27] sm:$0x7]
    %452 = vset.pattern.permute.xlu0 0
    %453 = vperm.xlu0 %452, %v450
    %v454 = vpop.permute.xlu0 %453
    %v457 = vsel %vm169, %v449, 0
    %v460 = vsel %vm173, %v448, 0
    %462 = vmatprep.subr.mxu0 0.0
    %463 = vmatpush1.msra.mxu0 0.0
    %464 = vmatprep.subr.mxu0 0.0
    %465 = vmatpush1.msra.mxu0 0.0
    %466 = vmatprep.subr.mxu0 0.0
    %467 = vmatpush1.msra.mxu0 0.0
    %468 = vmatprep.subr.mxu0 0.0
    %469 = vmatpush1.msra.mxu0 0.0
    %470 = vmatprep.subr.mxu0 0.0
    %471 = vmatpush1.msra.mxu0 0.0
    %472 = vmatprep.subr.mxu0 0.0
    %473 = vmatpush1.msra.mxu0 0.0
    %474 = vmatprep.subr.mxu0 0.0
    %475 = vmatpush1.msra.mxu0 0.0
    %476 = vmatprep.subr.mxu0 0.0
    %477 = vmatpush1.msra.mxu0 0.0
    %478 = vmatprep.subr.mxu0 0.0
    %479 = vmatpush1.msra.mxu0 0.0
    %480 = vmatprep.subr.mxu0 0.0
    %481 = vmatpush1.msra.mxu0 0.0
    %482 = vmatprep.subr.mxu0 0.0
    %483 = vmatpush1.msra.mxu0 0.0
    %484 = vmatprep.subr.mxu0 0.0
    %485 = vmatpush1.msra.mxu0 0.0
    %486 = vmatprep.subr.mxu0 0.0
    %487 = vmatpush1.msra.mxu0 0.0
    %488 = vmatprep.subr.mxu0 0.0
    %489 = vmatpush1.msra.mxu0 0.0
    %490 = vmatprep.subr.mxu0 0.0
    %491 = vmatpush1.msra.mxu0 0.0
    %492 = vmatprep.subr.mxu0 0.0
    %493 = vmatpush1.msra.mxu0 %v460
    %494 = vmatprep.subr.mxu0 0.0
    %495 = vmatpush2.msra.mxu0 0.0
    %496 = vmatprep.subr.mxu0 0.0
    %497 = vmatpush2.msra.mxu0 0.0
    %498 = vmatprep.subr.mxu0 0.0
    %499 = vmatpush2.msra.mxu0 0.0
    %500 = vmatprep.subr.mxu0 0.0
    %501 = vmatpush2.msra.mxu0 0.0
    %502 = vmatprep.subr.mxu0 0.0
    %503 = vmatpush2.msra.mxu0 0.0
    %504 = vmatprep.subr.mxu0 0.0
    %505 = vmatpush2.msra.mxu0 0.0
    %506 = vmatprep.subr.mxu0 0.0
    %507 = vmatpush2.msra.mxu0 0.0
    %508 = vmatprep.subr.mxu0 0.0
    %509 = vmatpush2.msra.mxu0 0.0
    %510 = vmatprep.subr.mxu0 0.0
    %511 = vmatpush2.msra.mxu0 0.0
    %512 = vmatprep.subr.mxu0 0.0
    %513 = vmatpush2.msra.mxu0 0.0
    %514 = vmatprep.subr.mxu0 0.0
    %515 = vmatpush2.msra.mxu0 0.0
    %516 = vmatprep.subr.mxu0 0.0
    %517 = vmatpush2.msra.mxu0 0.0
    %518 = vmatprep.subr.mxu0 0.0
    %519 = vmatpush2.msra.mxu0 0.0
    %520 = vmatprep.subr.mxu0 0.0
    %521 = vmatpush2.msra.mxu0 0.0
    %522 = vmatprep.subr.mxu0 0.0
    %523 = vmatpush2.msra.mxu0 0.0
    %524 = vmatprep.subr.mxu0 0.0
    %525 = vmatpush2.msra.mxu0 0.0
    %526 = vmatprep.mubr.f32.mxu0 0.0
    %527 = vmatmul.mubr.f32.gmra.mxu0 %v457
    %v528 = vpop.f32.mrf.mxu0
    %v529 = vadd.f32 %v454, %v528
    %v530 = vpop.f32.mrf.mxu0
    %531 = vdwg.mxu0
    %v532 = vld [vmem:[%s29] sm:$0xf]
    %v533 = vld [vmem:[%s3] sm:$0x3]
    %v534 = vld [vmem:[%s31] sm:$0xf]
    %536 = vset.pattern.permute.xlu0 0
    %537 = vperm.xlu0 %536, %v534
    %v538 = vpop.permute.xlu0 %537
    %vm540 = vcmask 15360
    %v542 = vsel %vm540, %v532, 0
    %vm544 = vcmask 1041408
    %v546 = vsel %vm544, %v533, 0
    %548 = vmatprep.subr.mxu0 0.0
    %549 = vmatpush1.msra.mxu0 0.0
    %550 = vmatprep.subr.mxu0 0.0
    %551 = vmatpush1.msra.mxu0 0.0
    %552 = vmatprep.subr.mxu0 0.0
    %553 = vmatpush1.msra.mxu0 0.0
    %554 = vmatprep.subr.mxu0 0.0
    %555 = vmatpush1.msra.mxu0 0.0
    %556 = vmatprep.subr.mxu0 0.0
    %557 = vmatpush1.msra.mxu0 0.0
    %558 = vmatprep.subr.mxu0 0.0
    %559 = vmatpush1.msra.mxu0 0.0
    %560 = vmatprep.subr.mxu0 0.0
    %561 = vmatpush1.msra.mxu0 0.0
    %562 = vmatprep.subr.mxu0 0.0
    %563 = vmatpush1.msra.mxu0 0.0
    %564 = vmatprep.subr.mxu0 0.0
    %565 = vmatpush1.msra.mxu0 0.0
    %566 = vmatprep.subr.mxu0 0.0
    %567 = vmatpush1.msra.mxu0 0.0
    %568 = vmatprep.subr.mxu0 0.0
    %569 = vmatpush1.msra.mxu0 0.0
    %570 = vmatprep.subr.mxu0 0.0
    %571 = vmatpush1.msra.mxu0 0.0
    %572 = vmatprep.subr.mxu0 0.0
    %573 = vmatpush1.msra.mxu0 0.0
    %574 = vmatprep.subr.mxu0 0.0
    %575 = vmatpush1.msra.mxu0 0.0
    %576 = vmatprep.subr.mxu0 0.0
    %577 = vmatpush1.msra.mxu0 0.0
    %578 = vmatprep.subr.mxu0 0.0
    %579 = vmatpush1.msra.mxu0 %v546
    %580 = vmatprep.subr.mxu0 0.0
    %581 = vmatpush2.msra.mxu0 0.0
    %582 = vmatprep.subr.mxu0 0.0
    %583 = vmatpush2.msra.mxu0 0.0
    %584 = vmatprep.subr.mxu0 0.0
    %585 = vmatpush2.msra.mxu0 0.0
    %586 = vmatprep.subr.mxu0 0.0
    %587 = vmatpush2.msra.mxu0 0.0
    %588 = vmatprep.subr.mxu0 0.0
    %589 = vmatpush2.msra.mxu0 0.0
    %590 = vmatprep.subr.mxu0 0.0
    %591 = vmatpush2.msra.mxu0 0.0
    %592 = vmatprep.subr.mxu0 0.0
    %593 = vmatpush2.msra.mxu0 0.0
    %594 = vmatprep.subr.mxu0 0.0
    %595 = vmatpush2.msra.mxu0 0.0
    %596 = vmatprep.subr.mxu0 0.0
    %597 = vmatpush2.msra.mxu0 0.0
    %598 = vmatprep.subr.mxu0 0.0
    %599 = vmatpush2.msra.mxu0 0.0
    %600 = vmatprep.subr.mxu0 0.0
    %601 = vmatpush2.msra.mxu0 0.0
    %602 = vmatprep.subr.mxu0 0.0
    %603 = vmatpush2.msra.mxu0 0.0
    %604 = vmatprep.subr.mxu0 0.0
    %605 = vmatpush2.msra.mxu0 0.0
    %606 = vmatprep.subr.mxu0 0.0
    %607 = vmatpush2.msra.mxu0 0.0
    %608 = vmatprep.subr.mxu0 0.0
    %609 = vmatpush2.msra.mxu0 0.0
    %610 = vmatprep.subr.mxu0 0.0
    %611 = vmatpush2.msra.mxu0 0.0
    %612 = vmatprep.mubr.f32.mxu0 0.0
    %613 = vmatmul.mubr.f32.gmra.mxu0 %v542
    %v614 = vpop.f32.mrf.mxu0
    %v615 = vadd.f32 %v538, %v614
    %v616 = vpop.f32.mrf.mxu0
    %617 = vdwg.mxu0
    %v618 = vmax.f32 %v615, 0.0
    %v619 = vld [vmem:[%s33] sm:$0x1]
    %v620 = vld [vmem:[#allocation4] sm:$0x1]
    %622 = vset.pattern.permute.xlu0 0
    %623 = vperm.xlu0 %622, %v620
    %v624 = vpop.permute.xlu0 %623
    %v626 = vlaneseq
    %v627 = vshrl.u32 %v626, 7
    %v628 = vsub.s32 0, %v627
    %v629 = vrot.slane %v624, %v628
    %vm630 = vcmask 31744
    %v632 = vsel %vm630, %v619, 0
    %vm634 = vcmask 1043456
    %v636 = vsel %vm634, %v618, 0
    %638 = vmatprep.subr.mxu0 0.0
    %639 = vmatpush1.msra.mxu0 0.0
    %640 = vmatprep.subr.mxu0 0.0
    %641 = vmatpush1.msra.mxu0 0.0
    %642 = vmatprep.subr.mxu0 0.0
    %643 = vmatpush1.msra.mxu0 0.0
    %644 = vmatprep.subr.mxu0 0.0
    %645 = vmatpush1.msra.mxu0 0.0
    %646 = vmatprep.subr.mxu0 0.0
    %647 = vmatpush1.msra.mxu0 0.0
    %648 = vmatprep.subr.mxu0 0.0
    %649 = vmatpush1.msra.mxu0 0.0
    %650 = vmatprep.subr.mxu0 0.0
    %651 = vmatpush1.msra.mxu0 0.0
    %652 = vmatprep.subr.mxu0 0.0
    %653 = vmatpush1.msra.mxu0 0.0
    %654 = vmatprep.subr.mxu0 0.0
    %655 = vmatpush1.msra.mxu0 0.0
    %656 = vmatprep.subr.mxu0 0.0
    %657 = vmatpush1.msra.mxu0 0.0
    %658 = vmatprep.subr.mxu0 0.0
    %659 = vmatpush1.msra.mxu0 0.0
    %660 = vmatprep.subr.mxu0 0.0
    %661 = vmatpush1.msra.mxu0 0.0
    %662 = vmatprep.subr.mxu0 0.0
    %663 = vmatpush1.msra.mxu0 0.0
    %664 = vmatprep.subr.mxu0 0.0
    %665 = vmatpush1.msra.mxu0 0.0
    %666 = vmatprep.subr.mxu0 0.0
    %667 = vmatpush1.msra.mxu0 0.0
    %668 = vmatprep.subr.mxu0 0.0
    %669 = vmatpush1.msra.mxu0 %v636
    %670 = vmatprep.subr.mxu0 0.0
    %671 = vmatpush2.msra.mxu0 0.0
    %672 = vmatprep.subr.mxu0 0.0
    %673 = vmatpush2.msra.mxu0 0.0
    %674 = vmatprep.subr.mxu0 0.0
    %675 = vmatpush2.msra.mxu0 0.0
    %676 = vmatprep.subr.mxu0 0.0
    %677 = vmatpush2.msra.mxu0 0.0
    %678 = vmatprep.subr.mxu0 0.0
    %679 = vmatpush2.msra.mxu0 0.0
    %680 = vmatprep.subr.mxu0 0.0
    %681 = vmatpush2.msra.mxu0 0.0
    %682 = vmatprep.subr.mxu0 0.0
    %683 = vmatpush2.msra.mxu0 0.0
    %684 = vmatprep.subr.mxu0 0.0
    %685 = vmatpush2.msra.mxu0 0.0
    %686 = vmatprep.subr.mxu0 0.0
    %687 = vmatpush2.msra.mxu0 0.0
    %688 = vmatprep.subr.mxu0 0.0
    %689 = vmatpush2.msra.mxu0 0.0
    %690 = vmatprep.subr.mxu0 0.0
    %691 = vmatpush2.msra.mxu0 0.0
    %692 = vmatprep.subr.mxu0 0.0
    %693 = vmatpush2.msra.mxu0 0.0
    %694 = vmatprep.subr.mxu0 0.0
    %695 = vmatpush2.msra.mxu0 0.0
    %696 = vmatprep.subr.mxu0 0.0
    %697 = vmatpush2.msra.mxu0 0.0
    %698 = vmatprep.subr.mxu0 0.0
    %699 = vmatpush2.msra.mxu0 0.0
    %700 = vmatprep.subr.mxu0 0.0
    %701 = vmatpush2.msra.mxu0 0.0
    %702 = vmatprep.mubr.f32.mxu0 0.0
    %703 = vmatmul.mubr.f32.gmra.mxu0 %v632
    %v704 = vpop.f32.mrf.mxu0
    %v705 = vadd.f32 %v629, %v704
    %v706 = vpop.f32.mrf.mxu0
    %707 = vdwg.mxu0
    %v708 = vld [vmem:[%s37] sm:$0x1]
    %v709 = vld [vmem:[#allocation5] sm:$0x1]
    %711 = vset.pattern.permute.xlu0 0
    %712 = vperm.xlu0 %711, %v709
    %v713 = vpop.permute.xlu0 %712
    %v715 = vlaneseq
    %v716 = vshrl.u32 %v715, 7
    %v717 = vsub.s32 0, %v716
    %v718 = vrot.slane %v713, %v717
    %v720 = vsel %vm630, %v708, 0
    %722 = vmatprep.subr.mxu0 0.0
    %723 = vmatpush1.msra.mxu0 0.0
    %724 = vmatprep.subr.mxu0 0.0
    %725 = vmatpush1.msra.mxu0 0.0
    %726 = vmatprep.subr.mxu0 0.0
    %727 = vmatpush1.msra.mxu0 0.0
    %728 = vmatprep.subr.mxu0 0.0
    %729 = vmatpush1.msra.mxu0 0.0
    %730 = vmatprep.subr.mxu0 0.0
    %731 = vmatpush1.msra.mxu0 0.0
    %732 = vmatprep.subr.mxu0 0.0
    %733 = vmatpush1.msra.mxu0 0.0
    %734 = vmatprep.subr.mxu0 0.0
    %735 = vmatpush1.msra.mxu0 0.0
    %736 = vmatprep.subr.mxu0 0.0
    %737 = vmatpush1.msra.mxu0 0.0
    %738 = vmatprep.subr.mxu0 0.0
    %739 = vmatpush1.msra.mxu0 0.0
    %740 = vmatprep.subr.mxu0 0.0
    %741 = vmatpush1.msra.mxu0 0.0
    %742 = vmatprep.subr.mxu0 0.0
    %743 = vmatpush1.msra.mxu0 0.0
    %744 = vmatprep.subr.mxu0 0.0
    %745 = vmatpush1.msra.mxu0 0.0
    %746 = vmatprep.subr.mxu0 0.0
    %747 = vmatpush1.msra.mxu0 0.0
    %748 = vmatprep.subr.mxu0 0.0
    %749 = vmatpush1.msra.mxu0 0.0
    %750 = vmatprep.subr.mxu0 0.0
    %751 = vmatpush1.msra.mxu0 0.0
    %752 = vmatprep.subr.mxu0 0.0
    %753 = vmatpush1.msra.mxu0 %v636
    %754 = vmatprep.subr.mxu0 0.0
    %755 = vmatpush2.msra.mxu0 0.0
    %756 = vmatprep.subr.mxu0 0.0
    %757 = vmatpush2.msra.mxu0 0.0
    %758 = vmatprep.subr.mxu0 0.0
    %759 = vmatpush2.msra.mxu0 0.0
    %760 = vmatprep.subr.mxu0 0.0
    %761 = vmatpush2.msra.mxu0 0.0
    %762 = vmatprep.subr.mxu0 0.0
    %763 = vmatpush2.msra.mxu0 0.0
    %764 = vmatprep.subr.mxu0 0.0
    %765 = vmatpush2.msra.mxu0 0.0
    %766 = vmatprep.subr.mxu0 0.0
    %767 = vmatpush2.msra.mxu0 0.0
    %768 = vmatprep.subr.mxu0 0.0
    %769 = vmatpush2.msra.mxu0 0.0
    %770 = vmatprep.subr.mxu0 0.0
    %771 = vmatpush2.msra.mxu0 0.0
    %772 = vmatprep.subr.mxu0 0.0
    %773 = vmatpush2.msra.mxu0 0.0
    %774 = vmatprep.subr.mxu0 0.0
    %775 = vmatpush2.msra.mxu0 0.0
    %776 = vmatprep.subr.mxu0 0.0
    %777 = vmatpush2.msra.mxu0 0.0
    %778 = vmatprep.subr.mxu0 0.0
    %779 = vmatpush2.msra.mxu0 0.0
    %780 = vmatprep.subr.mxu0 0.0
    %781 = vmatpush2.msra.mxu0 0.0
    %782 = vmatprep.subr.mxu0 0.0
    %783 = vmatpush2.msra.mxu0 0.0
    %784 = vmatprep.subr.mxu0 0.0
    %785 = vmatpush2.msra.mxu0 0.0
    %786 = vmatprep.mubr.f32.mxu0 0.0
    %787 = vmatmul.mubr.f32.gmra.mxu0 %v720
    %v788 = vpop.f32.mrf.mxu0
    %v789 = vadd.f32 %v718, %v788
    %v790 = vpop.f32.mrf.mxu0
    %791 = vdwg.mxu0
    %v792 = vmul.f32 %v789, 1.442695
    %v793 = vpow.pop %v792
    %v794 = vmul.f32 %v789, 0.5
    %v795 = vmul.f32 %v794, 1.442695
    %v796 = vpow.pop %v795
    %v797 = vld [vmem:[%s7] sm:$0x1]
    %v798 = vmul.f32 %v796, %v797
    %v799 = vadd.f32 %v705, %v798
    %v800 = vld [vmem:[%s41] sm:$0xf]
    %v801 = vlaneseq
    %v802 = vshrl.u32 %v801, 7
    %v803 = vsub.s32 0, %v802
    %v804 = vrot.slane %v799, %v803
    %806 = vset.pattern.permute.xlu0 0
    %807 = vperm.xlu0 %806, %v800
    %v808 = vpop.permute.xlu0 %807
    %v810 = vsub.f32 %v804, %v808
    %v811 = vld [vmem:[%s43] sm:$0xf]
    %v812 = vsub.f32 0.0, %v811
    %814 = vset.pattern.permute.xlu0 0
    %815 = vperm.xlu0 %814, %v812
    %v816 = vpop.permute.xlu0 %815
    %v818 = vmul.f32 %v816, %v810
    %v819 = vmul.f32 %v818, %v810
    %v820 = vmul.f32 %v819, 1.442695
    %v821 = vpow.pop %v820
    %v822 = vld [vmem:[%s45] sm:$0x3]
    %v823 = vld [vmem:[%s47] sm:$0x3]
    %825 = vset.pattern.permute.xlu0 0
    %826 = vperm.xlu0 %825, %v823
    %v827 = vpop.permute.xlu0 %826
    %v830 = vsel %vm630, %v822, 0
    %v833 = vsel %vm634, %v821, 0
    %835 = vmatprep.subr.mxu0 0.0
    %836 = vmatpush1.msra.mxu0 0.0
    %837 = vmatprep.subr.mxu0 0.0
    %838 = vmatpush1.msra.mxu0 0.0
    %839 = vmatprep.subr.mxu0 0.0
    %840 = vmatpush1.msra.mxu0 0.0
    %841 = vmatprep.subr.mxu0 0.0
    %842 = vmatpush1.msra.mxu0 0.0
    %843 = vmatprep.subr.mxu0 0.0
    %844 = vmatpush1.msra.mxu0 0.0
    %845 = vmatprep.subr.mxu0 0.0
    %846 = vmatpush1.msra.mxu0 0.0
    %847 = vmatprep.subr.mxu0 0.0
    %848 = vmatpush1.msra.mxu0 0.0
    %849 = vmatprep.subr.mxu0 0.0
    %850 = vmatpush1.msra.mxu0 0.0
    %851 = vmatprep.subr.mxu0 0.0
    %852 = vmatpush1.msra.mxu0 0.0
    %853 = vmatprep.subr.mxu0 0.0
    %854 = vmatpush1.msra.mxu0 0.0
    %855 = vmatprep.subr.mxu0 0.0
    %856 = vmatpush1.msra.mxu0 0.0
    %857 = vmatprep.subr.mxu0 0.0
    %858 = vmatpush1.msra.mxu0 0.0
    %859 = vmatprep.subr.mxu0 0.0
    %860 = vmatpush1.msra.mxu0 0.0
    %861 = vmatprep.subr.mxu0 0.0
    %862 = vmatpush1.msra.mxu0 0.0
    %863 = vmatprep.subr.mxu0 0.0
    %864 = vmatpush1.msra.mxu0 0.0
    %865 = vmatprep.subr.mxu0 0.0
    %866 = vmatpush1.msra.mxu0 %v833
    %867 = vmatprep.subr.mxu0 0.0
    %868 = vmatpush2.msra.mxu0 0.0
    %869 = vmatprep.subr.mxu0 0.0
    %870 = vmatpush2.msra.mxu0 0.0
    %871 = vmatprep.subr.mxu0 0.0
    %872 = vmatpush2.msra.mxu0 0.0
    %873 = vmatprep.subr.mxu0 0.0
    %874 = vmatpush2.msra.mxu0 0.0
    %875 = vmatprep.subr.mxu0 0.0
    %876 = vmatpush2.msra.mxu0 0.0
    %877 = vmatprep.subr.mxu0 0.0
    %878 = vmatpush2.msra.mxu0 0.0
    %879 = vmatprep.subr.mxu0 0.0
    %880 = vmatpush2.msra.mxu0 0.0
    %881 = vmatprep.subr.mxu0 0.0
    %882 = vmatpush2.msra.mxu0 0.0
    %883 = vmatprep.subr.mxu0 0.0
    %884 = vmatpush2.msra.mxu0 0.0
    %885 = vmatprep.subr.mxu0 0.0
    %886 = vmatpush2.msra.mxu0 0.0
    %887 = vmatprep.subr.mxu0 0.0
    %888 = vmatpush2.msra.mxu0 0.0
    %889 = vmatprep.subr.mxu0 0.0
    %890 = vmatpush2.msra.mxu0 0.0
    %891 = vmatprep.subr.mxu0 0.0
    %892 = vmatpush2.msra.mxu0 0.0
    %893 = vmatprep.subr.mxu0 0.0
    %894 = vmatpush2.msra.mxu0 0.0
    %895 = vmatprep.subr.mxu0 0.0
    %896 = vmatpush2.msra.mxu0 0.0
    %897 = vmatprep.subr.mxu0 0.0
    %898 = vmatpush2.msra.mxu0 0.0
    %899 = vmatprep.mubr.f32.mxu0 0.0
    %900 = vmatmul.mubr.f32.gmra.mxu0 %v830
    %v901 = vpop.f32.mrf.mxu0
    %v902 = vadd.f32 %v827, %v901
    %v903 = vpop.f32.mrf.mxu0
    %904 = vdwg.mxu0
    %vm905 = vcmask 59392
    %906 = vst.msk [vmem:[#allocation6] sm:$0x7] %vm905, %v529
    %vm907 = vcmask 57344
    %908 = vst.msk [vmem:[#allocation8] sm:$0x1] %vm907, %v426
    %909 = vst.msk [vmem:[#allocation10] sm:$0x1] %vm907, %v332
    %910 = vst.msk [vmem:[#allocation11] sm:$0x1] %vm907, %v420
    %911 = vst.msk [vmem:[#allocation13] sm:$0x1] %vm907, %v416
    %vm912 = vcmask 58368
    %913 = vst.msk [vmem:[#allocation14] sm:$0x3] %vm912, %v902
    %914 = vst.msk [vmem:[#allocation16] sm:$0x1] %vm907, %v799
    %915 = vst.msk [vmem:[#allocation17] sm:$0x1] %vm907, %v705
    %916 = vst.msk [vmem:[#allocation19] sm:$0x1] %vm907, %v793
    %917 = vst.msk [vmem:[#allocation20] sm:$0x1] %vm907, %v789
    %v918 = vld [vmem:[%s1] sm:$0x7]
    %v919 = vld [vmem:[%s49] sm:$0xff]
    %v920 = vld [vmem:[%s49 + $0x8] sm:$0xff]
    %v921 = vld [vmem:[%s49 + $0x10] sm:$0xff]
    %v922 = vld [vmem:[%s49 + $0x18] sm:$0xff]
    %v923 = vld [vmem:[%s49 + $0x20] sm:$0xff]
    %v924 = vld [vmem:[%s49 + $0x28] sm:$0xff]
    %v925 = vld [vmem:[%s49 + $0x30] sm:$0xff]
    %v926 = vld [vmem:[%s49 + $0x38] sm:$0xff]
    %v927 = vld [vmem:[%s49 + $0x40] sm:$0xff]
    %v928 = vld [vmem:[%s49 + $0x48] sm:$0xff]
    %v929 = vld [vmem:[%s49 + $0x50] sm:$0xff]
    %v930 = vld [vmem:[%s49 + $0x58] sm:$0xff]
    %v931 = vld [vmem:[%s49 + $0x60] sm:$0xff]
    %v932 = vld [vmem:[%s49 + $0x68] sm:$0xff]
    %v933 = vld [vmem:[%s49 + $0x70] sm:$0xff]
    %v934 = vld [vmem:[%s49 + $0x78] sm:$0xff]
    %v935 = vld [vmem:[%s49 + $0x80] sm:$0xff]
    %v936 = vld [vmem:[%s49 + $0x88] sm:$0xff]
    %v937 = vld [vmem:[%s49 + $0x90] sm:$0xff]
    %v938 = vld [vmem:[%s49 + $0x98] sm:$0xff]
    %v939 = vld [vmem:[%s49 + $0xa0] sm:$0xff]
    %v940 = vld [vmem:[%s49 + $0xa8] sm:$0xff]
    %v941 = vld [vmem:[%s49 + $0xb0] sm:$0xff]
    %v942 = vld [vmem:[%s49 + $0xb8] sm:$0xff]
    %v943 = vld [vmem:[%s51] sm:$0xff]
    %v944 = vld [vmem:[%s51 + $0x8] sm:$0xff]
    %v945 = vld [vmem:[%s51 + $0x10] sm:$0xff]
    %v946 = vld [vmem:[%s51 + $0x18] sm:$0xff]
    %v947 = vld [vmem:[%s51 + $0x20] sm:$0xff]
    %v948 = vld [vmem:[%s51 + $0x28] sm:$0xff]
    %v949 = vld [vmem:[%s51 + $0x30] sm:$0xff]
    %v950 = vld [vmem:[%s51 + $0x38] sm:$0xff]
    %v951 = vld [vmem:[%s51 + $0x40] sm:$0xff]
    %v952 = vld [vmem:[%s51 + $0x48] sm:$0xff]
    %v953 = vld [vmem:[%s51 + $0x50] sm:$0xff]
    %v954 = vld [vmem:[%s51 + $0x58] sm:$0xff]
    %v955 = vld [vmem:[%s51 + $0x60] sm:$0xff]
    %v956 = vld [vmem:[%s51 + $0x68] sm:$0xff]
    %v957 = vld [vmem:[%s51 + $0x70] sm:$0xff]
    %v958 = vld [vmem:[%s51 + $0x78] sm:$0xff]
    %v959 = vld [vmem:[%s51 + $0x80] sm:$0xff]
    %v960 = vld [vmem:[%s51 + $0x88] sm:$0xff]
    %v961 = vld [vmem:[%s51 + $0x90] sm:$0xff]
    %v962 = vld [vmem:[%s51 + $0x98] sm:$0xff]
    %v963 = vld [vmem:[%s51 + $0xa0] sm:$0xff]
    %v964 = vld [vmem:[%s51 + $0xa8] sm:$0xff]
    %v965 = vld [vmem:[%s51 + $0xb0] sm:$0xff]
    %v966 = vld [vmem:[%s51 + $0xb8] sm:$0xff]
    %968 = vset.pattern.permute.xlu0 0
    %969 = vperm.xlu0 %968, %v943
    %v970 = vpop.permute.xlu0 %969
    %973 = vset.pattern.permute.xlu0 0
    %974 = vperm.xlu0 %973, %v944
    %v975 = vpop.permute.xlu0 %974
    %978 = vset.pattern.permute.xlu0 0
    %979 = vperm.xlu0 %978, %v945
    %v980 = vpop.permute.xlu0 %979
    %983 = vset.pattern.permute.xlu0 0
    %984 = vperm.xlu0 %983, %v946
    %v985 = vpop.permute.xlu0 %984
    %988 = vset.pattern.permute.xlu0 0
    %989 = vperm.xlu0 %988, %v947
    %v990 = vpop.permute.xlu0 %989
    %993 = vset.pattern.permute.xlu0 0
    %994 = vperm.xlu0 %993, %v948
    %v995 = vpop.permute.xlu0 %994
    %998 = vset.pattern.permute.xlu0 0
    %999 = vperm.xlu0 %998, %v949
    %v1000 = vpop.permute.xlu0 %999
    %1003 = vset.pattern.permute.xlu0 0
    %1004 = vperm.xlu0 %1003, %v950
    %v1005 = vpop.permute.xlu0 %1004
    %1008 = vset.pattern.permute.xlu0 0
    %1009 = vperm.xlu0 %1008, %v951
    %v1010 = vpop.permute.xlu0 %1009
    %1013 = vset.pattern.permute.xlu0 0
    %1014 = vperm.xlu0 %1013, %v952
    %v1015 = vpop.permute.xlu0 %1014
    %1018 = vset.pattern.permute.xlu0 0
    %1019 = vperm.xlu0 %1018, %v953
    %v1020 = vpop.permute.xlu0 %1019
    %1023 = vset.pattern.permute.xlu0 0
    %1024 = vperm.xlu0 %1023, %v954
    %v1025 = vpop.permute.xlu0 %1024
    %1028 = vset.pattern.permute.xlu0 0
    %1029 = vperm.xlu0 %1028, %v955
    %v1030 = vpop.permute.xlu0 %1029
    %1033 = vset.pattern.permute.xlu0 0
    %1034 = vperm.xlu0 %1033, %v956
    %v1035 = vpop.permute.xlu0 %1034
    %1038 = vset.pattern.permute.xlu0 0
    %1039 = vperm.xlu0 %1038, %v957
    %v1040 = vpop.permute.xlu0 %1039
    %1043 = vset.pattern.permute.xlu0 0
    %1044 = vperm.xlu0 %1043, %v958
    %v1045 = vpop.permute.xlu0 %1044
    %1048 = vset.pattern.permute.xlu0 0
    %1049 = vperm.xlu0 %1048, %v959
    %v1050 = vpop.permute.xlu0 %1049
    %1053 = vset.pattern.permute.xlu0 0
    %1054 = vperm.xlu0 %1053, %v960
    %v1055 = vpop.permute.xlu0 %1054
    %1058 = vset.pattern.permute.xlu0 0
    %1059 = vperm.xlu0 %1058, %v961
    %v1060 = vpop.permute.xlu0 %1059
    %1063 = vset.pattern.permute.xlu0 0
    %1064 = vperm.xlu0 %1063, %v962
    %v1065 = vpop.permute.xlu0 %1064
    %1068 = vset.pattern.permute.xlu0 0
    %1069 = vperm.xlu0 %1068, %v963
    %v1070 = vpop.permute.xlu0 %1069
    %1073 = vset.pattern.permute.xlu0 0
    %1074 = vperm.xlu0 %1073, %v964
    %v1075 = vpop.permute.xlu0 %1074
    %1078 = vset.pattern.permute.xlu0 0
    %1079 = vperm.xlu0 %1078, %v965
    %v1080 = vpop.permute.xlu0 %1079
    %1083 = vset.pattern.permute.xlu0 0
    %1084 = vperm.xlu0 %1083, %v966
    %v1085 = vpop.permute.xlu0 %1084
    %v1088 = vsel %vm169, %v919, 0
    %v1091 = vsel %vm169, %v920, 0
    %v1094 = vsel %vm169, %v921, 0
    %v1097 = vsel %vm169, %v922, 0
    %v1100 = vsel %vm169, %v923, 0
    %v1103 = vsel %vm169, %v924, 0
    %v1106 = vsel %vm169, %v925, 0
    %v1109 = vsel %vm169, %v926, 0
    %v1112 = vsel %vm169, %v927, 0
    %v1115 = vsel %vm169, %v928, 0
    %v1118 = vsel %vm169, %v929, 0
    %v1121 = vsel %vm169, %v930, 0
    %v1124 = vsel %vm169, %v931, 0
    %v1127 = vsel %vm169, %v932, 0
    %v1130 = vsel %vm169, %v933, 0
    %v1133 = vsel %vm169, %v934, 0
    %v1136 = vsel %vm169, %v935, 0
    %v1139 = vsel %vm169, %v936, 0
    %v1142 = vsel %vm169, %v937, 0
    %v1145 = vsel %vm169, %v938, 0
    %v1148 = vsel %vm169, %v939, 0
    %v1151 = vsel %vm169, %v940, 0
    %v1154 = vsel %vm169, %v941, 0
    %v1157 = vsel %vm169, %v942, 0
    %v1160 = vsel %vm173, %v918, 0
    %1162 = vmatprep.subr.mxu0 0.0
    %1163 = vmatpush1.msra.mxu0 0.0
    %1164 = vmatprep.subr.mxu0 0.0
    %1165 = vmatpush1.msra.mxu0 0.0
    %1166 = vmatprep.subr.mxu0 0.0
    %1167 = vmatpush1.msra.mxu0 0.0
    %1168 = vmatprep.subr.mxu0 0.0
    %1169 = vmatpush1.msra.mxu0 0.0
    %1170 = vmatprep.subr.mxu0 0.0
    %1171 = vmatpush1.msra.mxu0 0.0
    %1172 = vmatprep.subr.mxu0 0.0
    %1173 = vmatpush1.msra.mxu0 0.0
    %1174 = vmatprep.subr.mxu0 0.0
    %1175 = vmatpush1.msra.mxu0 0.0
    %1176 = vmatprep.subr.mxu0 0.0
    %1177 = vmatpush1.msra.mxu0 0.0
    %1178 = vmatprep.subr.mxu0 0.0
    %1179 = vmatpush1.msra.mxu0 0.0
    %1180 = vmatprep.subr.mxu0 0.0
    %1181 = vmatpush1.msra.mxu0 0.0
    %1182 = vmatprep.subr.mxu0 0.0
    %1183 = vmatpush1.msra.mxu0 0.0
    %1184 = vmatprep.subr.mxu0 0.0
    %1185 = vmatpush1.msra.mxu0 0.0
    %1186 = vmatprep.subr.mxu0 0.0
    %1187 = vmatpush1.msra.mxu0 0.0
    %1188 = vmatprep.subr.mxu0 0.0
    %1189 = vmatpush1.msra.mxu0 0.0
    %1190 = vmatprep.subr.mxu0 0.0
    %1191 = vmatpush1.msra.mxu0 0.0
    %1192 = vmatprep.subr.mxu0 0.0
    %1193 = vmatpush1.msra.mxu0 %v1160
    %1194 = vmatprep.subr.mxu0 0.0
    %1195 = vmatpush2.msra.mxu0 0.0
    %1196 = vmatprep.subr.mxu0 0.0
    %1197 = vmatpush2.msra.mxu0 0.0
    %1198 = vmatprep.subr.mxu0 0.0
    %1199 = vmatpush2.msra.mxu0 0.0
    %1200 = vmatprep.subr.mxu0 0.0
    %1201 = vmatpush2.msra.mxu0 0.0
    %1202 = vmatprep.subr.mxu0 0.0
    %1203 = vmatpush2.msra.mxu0 0.0
    %1204 = vmatprep.subr.mxu0 0.0
    %1205 = vmatpush2.msra.mxu0 0.0
    %1206 = vmatprep.subr.mxu0 0.0
    %1207 = vmatpush2.msra.mxu0 0.0
    %1208 = vmatprep.subr.mxu0 0.0
    %1209 = vmatpush2.msra.mxu0 0.0
    %1210 = vmatprep.subr.mxu0 0.0
    %1211 = vmatpush2.msra.mxu0 0.0
    %1212 = vmatprep.subr.mxu0 0.0
    %1213 = vmatpush2.msra.mxu0 0.0
    %1214 = vmatprep.subr.mxu0 0.0
    %1215 = vmatpush2.msra.mxu0 0.0
    %1216 = vmatprep.subr.mxu0 0.0
    %1217 = vmatpush2.msra.mxu0 0.0
    %1218 = vmatprep.subr.mxu0 0.0
    %1219 = vmatpush2.msra.mxu0 0.0
    %1220 = vmatprep.subr.mxu0 0.0
    %1221 = vmatpush2.msra.mxu0 0.0
    %1222 = vmatprep.subr.mxu0 0.0
    %1223 = vmatpush2.msra.mxu0 0.0
    %1224 = vmatprep.subr.mxu0 0.0
    %1225 = vmatpush2.msra.mxu0 0.0
    %1226 = vmatprep.mubr.f32.mxu0 0.0
    %1227 = vmatmul.mubr.f32.gmra.mxu0 %v1088
    %v1228 = vpop.f32.mrf.mxu0
    %v1229 = vadd.f32 %v970, %v1228
    %v1230 = vpop.f32.mrf.mxu0
    %1231 = vmatprep.mubr.f32.mxu0 0.0
    %1232 = vmatmul.mubr.f32.gmra.mxu0 %v1091
    %v1233 = vpop.f32.mrf.mxu0
    %v1234 = vadd.f32 %v975, %v1233
    %v1235 = vpop.f32.mrf.mxu0
    %1236 = vmatprep.mubr.f32.mxu0 0.0
    %1237 = vmatmul.mubr.f32.gmra.mxu0 %v1094
    %v1238 = vpop.f32.mrf.mxu0
    %v1239 = vadd.f32 %v980, %v1238
    %v1240 = vpop.f32.mrf.mxu0
    %1241 = vmatprep.mubr.f32.mxu0 0.0
    %1242 = vmatmul.mubr.f32.gmra.mxu0 %v1097
    %v1243 = vpop.f32.mrf.mxu0
    %v1244 = vadd.f32 %v985, %v1243
    %v1245 = vpop.f32.mrf.mxu0
    %1246 = vmatprep.mubr.f32.mxu0 0.0
    %1247 = vmatmul.mubr.f32.gmra.mxu0 %v1100
    %v1248 = vpop.f32.mrf.mxu0
    %v1249 = vadd.f32 %v990, %v1248
    %v1250 = vpop.f32.mrf.mxu0
    %1251 = vmatprep.mubr.f32.mxu0 0.0
    %1252 = vmatmul.mubr.f32.gmra.mxu0 %v1103
    %v1253 = vpop.f32.mrf.mxu0
    %v1254 = vadd.f32 %v995, %v1253
    %v1255 = vpop.f32.mrf.mxu0
    %1256 = vmatprep.mubr.f32.mxu0 0.0
    %1257 = vmatmul.mubr.f32.gmra.mxu0 %v1106
    %v1258 = vpop.f32.mrf.mxu0
    %v1259 = vadd.f32 %v1000, %v1258
    %v1260 = vpop.f32.mrf.mxu0
    %1261 = vmatprep.mubr.f32.mxu0 0.0
    %1262 = vmatmul.mubr.f32.gmra.mxu0 %v1109
    %v1263 = vpop.f32.mrf.mxu0
    %v1264 = vadd.f32 %v1005, %v1263
    %v1265 = vpop.f32.mrf.mxu0
    %1266 = vmatprep.mubr.f32.mxu0 0.0
    %1267 = vmatmul.mubr.f32.gmra.mxu0 %v1112
    %v1268 = vpop.f32.mrf.mxu0
    %v1269 = vadd.f32 %v1010, %v1268
    %v1270 = vpop.f32.mrf.mxu0
    %1271 = vmatprep.mubr.f32.mxu0 0.0
    %1272 = vmatmul.mubr.f32.gmra.mxu0 %v1115
    %v1273 = vpop.f32.mrf.mxu0
    %v1274 = vadd.f32 %v1015, %v1273
    %v1275 = vpop.f32.mrf.mxu0
    %1276 = vmatprep.mubr.f32.mxu0 0.0
    %1277 = vmatmul.mubr.f32.gmra.mxu0 %v1118
    %v1278 = vpop.f32.mrf.mxu0
    %v1279 = vadd.f32 %v1020, %v1278
    %v1280 = vpop.f32.mrf.mxu0
    %1281 = vmatprep.mubr.f32.mxu0 0.0
    %1282 = vmatmul.mubr.f32.gmra.mxu0 %v1121
    %v1283 = vpop.f32.mrf.mxu0
    %v1284 = vadd.f32 %v1025, %v1283
    %v1285 = vpop.f32.mrf.mxu0
    %1286 = vmatprep.mubr.f32.mxu0 0.0
    %1287 = vmatmul.mubr.f32.gmra.mxu0 %v1124
    %v1288 = vpop.f32.mrf.mxu0
    %v1289 = vadd.f32 %v1030, %v1288
    %v1290 = vpop.f32.mrf.mxu0
    %1291 = vmatprep.mubr.f32.mxu0 0.0
    %1292 = vmatmul.mubr.f32.gmra.mxu0 %v1127
    %v1293 = vpop.f32.mrf.mxu0
    %v1294 = vadd.f32 %v1035, %v1293
    %v1295 = vpop.f32.mrf.mxu0
    %1296 = vmatprep.mubr.f32.mxu0 0.0
    %1297 = vmatmul.mubr.f32.gmra.mxu0 %v1130
    %v1298 = vpop.f32.mrf.mxu0
    %v1299 = vadd.f32 %v1040, %v1298
    %v1300 = vpop.f32.mrf.mxu0
    %1301 = vmatprep.mubr.f32.mxu0 0.0
    %1302 = vmatmul.mubr.f32.gmra.mxu0 %v1133
    %v1303 = vpop.f32.mrf.mxu0
    %v1304 = vadd.f32 %v1045, %v1303
    %v1305 = vpop.f32.mrf.mxu0
    %1306 = vmatprep.mubr.f32.mxu0 0.0
    %1307 = vmatmul.mubr.f32.gmra.mxu0 %v1136
    %v1308 = vpop.f32.mrf.mxu0
    %v1309 = vadd.f32 %v1050, %v1308
    %v1310 = vpop.f32.mrf.mxu0
    %1311 = vmatprep.mubr.f32.mxu0 0.0
    %1312 = vmatmul.mubr.f32.gmra.mxu0 %v1139
    %v1313 = vpop.f32.mrf.mxu0
    %v1314 = vadd.f32 %v1055, %v1313
    %v1315 = vpop.f32.mrf.mxu0
    %1316 = vmatprep.mubr.f32.mxu0 0.0
    %1317 = vmatmul.mubr.f32.gmra.mxu0 %v1142
    %v1318 = vpop.f32.mrf.mxu0
    %v1319 = vadd.f32 %v1060, %v1318
    %v1320 = vpop.f32.mrf.mxu0
    %1321 = vmatprep.mubr.f32.mxu0 0.0
    %1322 = vmatmul.mubr.f32.gmra.mxu0 %v1145
    %v1323 = vpop.f32.mrf.mxu0
    %v1324 = vadd.f32 %v1065, %v1323
    %v1325 = vpop.f32.mrf.mxu0
    %1326 = vmatprep.mubr.f32.mxu0 0.0
    %1327 = vmatmul.mubr.f32.gmra.mxu0 %v1148
    %v1328 = vpop.f32.mrf.mxu0
    %v1329 = vadd.f32 %v1070, %v1328
    %v1330 = vpop.f32.mrf.mxu0
    %1331 = vmatprep.mubr.f32.mxu0 0.0
    %1332 = vmatmul.mubr.f32.gmra.mxu0 %v1151
    %v1333 = vpop.f32.mrf.mxu0
    %v1334 = vadd.f32 %v1075, %v1333
    %v1335 = vpop.f32.mrf.mxu0
    %1336 = vmatprep.mubr.f32.mxu0 0.0
    %1337 = vmatmul.mubr.f32.gmra.mxu0 %v1154
    %v1338 = vpop.f32.mrf.mxu0
    %v1339 = vadd.f32 %v1080, %v1338
    %v1340 = vpop.f32.mrf.mxu0
    %1341 = vmatprep.mubr.f32.mxu0 0.0
    %1342 = vmatmul.mubr.f32.gmra.mxu0 %v1157
    %v1343 = vpop.f32.mrf.mxu0
    %v1344 = vadd.f32 %v1085, %v1343
    %v1345 = vpop.f32.mrf.mxu0
    %1346 = vdwg.mxu0
    %v1347 = vmax.f32 %v1229, 0.0
    %v1348 = vmax.f32 %v1234, 0.0
    %v1349 = vmax.f32 %v1239, 0.0
    %v1350 = vmax.f32 %v1244, 0.0
    %v1351 = vmax.f32 %v1249, 0.0
    %v1352 = vmax.f32 %v1254, 0.0
    %v1353 = vmax.f32 %v1259, 0.0
    %v1354 = vmax.f32 %v1264, 0.0
    %v1355 = vmax.f32 %v1269, 0.0
    %v1356 = vmax.f32 %v1274, 0.0
    %v1357 = vmax.f32 %v1279, 0.0
    %v1358 = vmax.f32 %v1284, 0.0
    %v1359 = vmax.f32 %v1289, 0.0
    %v1360 = vmax.f32 %v1294, 0.0
    %v1361 = vmax.f32 %v1299, 0.0
    %v1362 = vmax.f32 %v1304, 0.0
    %v1363 = vmax.f32 %v1309, 0.0
    %v1364 = vmax.f32 %v1314, 0.0
    %v1365 = vmax.f32 %v1319, 0.0
    %v1366 = vmax.f32 %v1324, 0.0
    %v1367 = vmax.f32 %v1329, 0.0
    %v1368 = vmax.f32 %v1334, 0.0
    %v1369 = vmax.f32 %v1339, 0.0
    %v1370 = vmax.f32 %v1344, 0.0
    %v1371 = vld [vmem:[%s53] sm:$0xff]
    %v1372 = vld [vmem:[%s53 + $0x8] sm:$0xff]
    %v1373 = vld [vmem:[%s53 + $0x10] sm:$0xff]
    %v1374 = vld [vmem:[%s53 + $0x18] sm:$0xff]
    %v1375 = vld [vmem:[%s53 + $0x20] sm:$0xff]
    %v1376 = vld [vmem:[%s53 + $0x28] sm:$0xff]
    %v1377 = vld [vmem:[%s53 + $0x30] sm:$0xff]
    %v1378 = vld [vmem:[%s53 + $0x38] sm:$0xff]
    %v1379 = vld [vmem:[%s53 + $0x40] sm:$0xff]
    %v1380 = vld [vmem:[%s53 + $0x48] sm:$0xff]
    %v1381 = vld [vmem:[%s53 + $0x50] sm:$0xff]
    %v1382 = vld [vmem:[%s53 + $0x58] sm:$0xff]
    %v1383 = vld [vmem:[%s53 + $0x60] sm:$0xff]
    %v1384 = vld [vmem:[%s53 + $0x68] sm:$0xff]
    %v1385 = vld [vmem:[%s53 + $0x70] sm:$0xff]
    %v1386 = vld [vmem:[%s53 + $0x78] sm:$0xff]
    %v1387 = vld [vmem:[%s53 + $0x80] sm:$0xff]
    %v1388 = vld [vmem:[%s53 + $0x88] sm:$0xff]
    %v1389 = vld [vmem:[%s53 + $0x90] sm:$0xff]
    %v1390 = vld [vmem:[%s53 + $0x98] sm:$0xff]
    %v1391 = vld [vmem:[%s53 + $0xa0] sm:$0xff]
    %v1392 = vld [vmem:[%s53 + $0xa8] sm:$0xff]
    %v1393 = vld [vmem:[%s53 + $0xb0] sm:$0xff]
    %v1394 = vld [vmem:[%s53 + $0xb8] sm:$0xff]
    %v1395 = vld [vmem:[%s53 + $0xc0] sm:$0xff]
    %v1396 = vld [vmem:[%s53 + $0xc8] sm:$0xff]
    %v1397 = vld [vmem:[%s53 + $0xd0] sm:$0xff]
    %v1398 = vld [vmem:[%s53 + $0xd8] sm:$0xff]
    %v1399 = vld [vmem:[%s53 + $0xe0] sm:$0xff]
    %v1400 = vld [vmem:[%s53 + $0xe8] sm:$0xff]
    %v1401 = vld [vmem:[%s53 + $0xf0] sm:$0xff]
    %v1402 = vld [vmem:[%s53 + $0xf8] sm:$0xff]
    %v1403 = vld [vmem:[%s53 + $0x100] sm:$0xff]
    %v1404 = vld [vmem:[%s53 + $0x108] sm:$0xff]
    %v1405 = vld [vmem:[%s53 + $0x110] sm:$0xff]
    %v1406 = vld [vmem:[%s53 + $0x118] sm:$0xff]
    %v1407 = vld [vmem:[%s53 + $0x120] sm:$0xff]
    %v1408 = vld [vmem:[%s53 + $0x128] sm:$0xff]
    %v1409 = vld [vmem:[%s53 + $0x130] sm:$0xff]
    %v1410 = vld [vmem:[%s53 + $0x138] sm:$0xff]
    %v1411 = vld [vmem:[%s53 + $0x140] sm:$0xff]
    %v1412 = vld [vmem:[%s53 + $0x148] sm:$0xff]
    %v1413 = vld [vmem:[%s53 + $0x150] sm:$0xff]
    %v1414 = vld [vmem:[%s53 + $0x158] sm:$0xff]
    %v1415 = vld [vmem:[%s53 + $0x160] sm:$0xff]
    %v1416 = vld [vmem:[%s53 + $0x168] sm:$0xff]
    %v1417 = vld [vmem:[%s53 + $0x170] sm:$0xff]
    %v1418 = vld [vmem:[%s53 + $0x178] sm:$0xff]
    %v1419 = vld [vmem:[%s55] sm:$0xff]
    %v1420 = vld [vmem:[%s55 + $0x8] sm:$0xff]
    %v1421 = vld [vmem:[%s55 + $0x10] sm:$0xff]
    %v1422 = vld [vmem:[%s55 + $0x18] sm:$0xff]
    %v1423 = vld [vmem:[%s55 + $0x20] sm:$0xff]
    %v1424 = vld [vmem:[%s55 + $0x28] sm:$0xff]
    %v1425 = vld [vmem:[%s55 + $0x30] sm:$0xff]
    %v1426 = vld [vmem:[%s55 + $0x38] sm:$0xff]
    %v1427 = vld [vmem:[%s55 + $0x40] sm:$0xff]
    %v1428 = vld [vmem:[%s55 + $0x48] sm:$0xff]
    %v1429 = vld [vmem:[%s55 + $0x50] sm:$0xff]
    %v1430 = vld [vmem:[%s55 + $0x58] sm:$0xff]
    %v1431 = vld [vmem:[%s55 + $0x60] sm:$0xff]
    %v1432 = vld [vmem:[%s55 + $0x68] sm:$0xff]
    %v1433 = vld [vmem:[%s55 + $0x70] sm:$0xff]
    %v1434 = vld [vmem:[%s55 + $0x78] sm:$0xff]
    %v1435 = vld [vmem:[%s55 + $0x80] sm:$0xff]
    %v1436 = vld [vmem:[%s55 + $0x88] sm:$0xff]
    %v1437 = vld [vmem:[%s55 + $0x90] sm:$0xff]
    %v1438 = vld [vmem:[%s55 + $0x98] sm:$0xff]
    %v1439 = vld [vmem:[%s55 + $0xa0] sm:$0xff]
    %v1440 = vld [vmem:[%s55 + $0xa8] sm:$0xff]
    %v1441 = vld [vmem:[%s55 + $0xb0] sm:$0xff]
    %v1442 = vld [vmem:[%s55 + $0xb8] sm:$0xff]
    %1444 = vset.pattern.permute.xlu0 0
    %1445 = vperm.xlu0 %1444, %v1419
    %v1446 = vpop.permute.xlu0 %1445
    %1449 = vset.pattern.permute.xlu0 0
    %1450 = vperm.xlu0 %1449, %v1420
    %v1451 = vpop.permute.xlu0 %1450
    %1454 = vset.pattern.permute.xlu0 0
    %1455 = vperm.xlu0 %1454, %v1421
    %v1456 = vpop.permute.xlu0 %1455
    %1459 = vset.pattern.permute.xlu0 0
    %1460 = vperm.xlu0 %1459, %v1422
    %v1461 = vpop.permute.xlu0 %1460
    %1464 = vset.pattern.permute.xlu0 0
    %1465 = vperm.xlu0 %1464, %v1423
    %v1466 = vpop.permute.xlu0 %1465
    %1469 = vset.pattern.permute.xlu0 0
    %1470 = vperm.xlu0 %1469, %v1424
    %v1471 = vpop.permute.xlu0 %1470
    %1474 = vset.pattern.permute.xlu0 0
    %1475 = vperm.xlu0 %1474, %v1425
    %v1476 = vpop.permute.xlu0 %1475
    %1479 = vset.pattern.permute.xlu0 0
    %1480 = vperm.xlu0 %1479, %v1426
    %v1481 = vpop.permute.xlu0 %1480
    %1484 = vset.pattern.permute.xlu0 0
    %1485 = vperm.xlu0 %1484, %v1427
    %v1486 = vpop.permute.xlu0 %1485
    %1489 = vset.pattern.permute.xlu0 0
    %1490 = vperm.xlu0 %1489, %v1428
    %v1491 = vpop.permute.xlu0 %1490
    %1494 = vset.pattern.permute.xlu0 0
    %1495 = vperm.xlu0 %1494, %v1429
    %v1496 = vpop.permute.xlu0 %1495
    %1499 = vset.pattern.permute.xlu0 0
    %1500 = vperm.xlu0 %1499, %v1430
    %v1501 = vpop.permute.xlu0 %1500
    %1504 = vset.pattern.permute.xlu0 0
    %1505 = vperm.xlu0 %1504, %v1431
    %v1506 = vpop.permute.xlu0 %1505
    %1509 = vset.pattern.permute.xlu0 0
    %1510 = vperm.xlu0 %1509, %v1432
    %v1511 = vpop.permute.xlu0 %1510
    %1514 = vset.pattern.permute.xlu0 0
    %1515 = vperm.xlu0 %1514, %v1433
    %v1516 = vpop.permute.xlu0 %1515
    %1519 = vset.pattern.permute.xlu0 0
    %1520 = vperm.xlu0 %1519, %v1434
    %v1521 = vpop.permute.xlu0 %1520
    %1524 = vset.pattern.permute.xlu0 0
    %1525 = vperm.xlu0 %1524, %v1435
    %v1526 = vpop.permute.xlu0 %1525
    %1529 = vset.pattern.permute.xlu0 0
    %1530 = vperm.xlu0 %1529, %v1436
    %v1531 = vpop.permute.xlu0 %1530
    %1534 = vset.pattern.permute.xlu0 0
    %1535 = vperm.xlu0 %1534, %v1437
    %v1536 = vpop.permute.xlu0 %1535
    %1539 = vset.pattern.permute.xlu0 0
    %1540 = vperm.xlu0 %1539, %v1438
    %v1541 = vpop.permute.xlu0 %1540
    %1544 = vset.pattern.permute.xlu0 0
    %1545 = vperm.xlu0 %1544, %v1439
    %v1546 = vpop.permute.xlu0 %1545
    %1549 = vset.pattern.permute.xlu0 0
    %1550 = vperm.xlu0 %1549, %v1440
    %v1551 = vpop.permute.xlu0 %1550
    %1554 = vset.pattern.permute.xlu0 0
    %1555 = vperm.xlu0 %1554, %v1441
    %v1556 = vpop.permute.xlu0 %1555
    %1559 = vset.pattern.permute.xlu0 0
    %1560 = vperm.xlu0 %1559, %v1442
    %v1561 = vpop.permute.xlu0 %1560
    %vm1563 = vcmask 523264
    %v1565 = vsel %vm1563, %v1372, 0
    %v1568 = vsel %vm1563, %v1374, 0
    %v1571 = vsel %vm1563, %v1376, 0
    %v1574 = vsel %vm1563, %v1378, 0
    %v1577 = vsel %vm1563, %v1380, 0
    %v1580 = vsel %vm1563, %v1382, 0
    %v1583 = vsel %vm1563, %v1384, 0
    %v1586 = vsel %vm1563, %v1386, 0
    %v1589 = vsel %vm1563, %v1388, 0
    %v1592 = vsel %vm1563, %v1390, 0
    %v1595 = vsel %vm1563, %v1392, 0
    %v1598 = vsel %vm1563, %v1394, 0
    %v1601 = vsel %vm1563, %v1396, 0
    %v1604 = vsel %vm1563, %v1398, 0
    %v1607 = vsel %vm1563, %v1400, 0
    %v1610 = vsel %vm1563, %v1402, 0
    %v1613 = vsel %vm1563, %v1404, 0
    %v1616 = vsel %vm1563, %v1406, 0
    %v1619 = vsel %vm1563, %v1408, 0
    %v1622 = vsel %vm1563, %v1410, 0
    %v1625 = vsel %vm1563, %v1412, 0
    %v1628 = vsel %vm1563, %v1414, 0
    %v1631 = vsel %vm1563, %v1416, 0
    %v1634 = vsel %vm1563, %v1418, 0
    %1636 = vmatprep.subr.mxu0 0.0
    %1637 = vmatpush1.msra.mxu0 %v1362
    %1638 = vmatprep.subr.mxu0 0.0
    %1639 = vmatpush1.msra.mxu0 %v1361
    %1640 = vmatprep.subr.mxu0 0.0
    %1641 = vmatpush1.msra.mxu0 %v1360
    %1642 = vmatprep.subr.mxu0 0.0
    %1643 = vmatpush1.msra.mxu0 %v1359
    %1644 = vmatprep.subr.mxu0 0.0
    %1645 = vmatpush1.msra.mxu0 %v1358
    %1646 = vmatprep.subr.mxu0 0.0
    %1647 = vmatpush1.msra.mxu0 %v1357
    %1648 = vmatprep.subr.mxu0 0.0
    %1649 = vmatpush1.msra.mxu0 %v1356
    %1650 = vmatprep.subr.mxu0 0.0
    %1651 = vmatpush1.msra.mxu0 %v1355
    %1652 = vmatprep.subr.mxu0 0.0
    %1653 = vmatpush1.msra.mxu0 %v1354
    %1654 = vmatprep.subr.mxu0 0.0
    %1655 = vmatpush1.msra.mxu0 %v1353
    %1656 = vmatprep.subr.mxu0 0.0
    %1657 = vmatpush1.msra.mxu0 %v1352
    %1658 = vmatprep.subr.mxu0 0.0
    %1659 = vmatpush1.msra.mxu0 %v1351
    %1660 = vmatprep.subr.mxu0 0.0
    %1661 = vmatpush1.msra.mxu0 %v1350
    %1662 = vmatprep.subr.mxu0 0.0
    %1663 = vmatpush1.msra.mxu0 %v1349
    %1664 = vmatprep.subr.mxu0 0.0
    %1665 = vmatpush1.msra.mxu0 %v1348
    %1666 = vmatprep.subr.mxu0 0.0
    %1667 = vmatpush1.msra.mxu0 %v1347
    %1668 = vmatprep.subr.mxu0 0.0
    %1669 = vmatpush2.msra.mxu0 0.0
    %1670 = vmatprep.subr.mxu0 0.0
    %1671 = vmatpush2.msra.mxu0 0.0
    %1672 = vmatprep.subr.mxu0 0.0
    %1673 = vmatpush2.msra.mxu0 0.0
    %1674 = vmatprep.subr.mxu0 0.0
    %1675 = vmatpush2.msra.mxu0 0.0
    %1676 = vmatprep.subr.mxu0 0.0
    %1677 = vmatpush2.msra.mxu0 0.0
    %1678 = vmatprep.subr.mxu0 0.0
    %1679 = vmatpush2.msra.mxu0 0.0
    %1680 = vmatprep.subr.mxu0 0.0
    %1681 = vmatpush2.msra.mxu0 0.0
    %1682 = vmatprep.subr.mxu0 0.0
    %1683 = vmatpush2.msra.mxu0 0.0
    %1684 = vmatprep.subr.mxu0 0.0
    %1685 = vmatpush2.msra.mxu0 %v1370
    %1686 = vmatprep.subr.mxu0 0.0
    %1687 = vmatpush2.msra.mxu0 %v1369
    %1688 = vmatprep.subr.mxu0 0.0
    %1689 = vmatpush2.msra.mxu0 %v1368
    %1690 = vmatprep.subr.mxu0 0.0
    %1691 = vmatpush2.msra.mxu0 %v1367
    %1692 = vmatprep.subr.mxu0 0.0
    %1693 = vmatpush2.msra.mxu0 %v1366
    %1694 = vmatprep.subr.mxu0 0.0
    %1695 = vmatpush2.msra.mxu0 %v1365
    %1696 = vmatprep.subr.mxu0 0.0
    %1697 = vmatpush2.msra.mxu0 %v1364
    %1698 = vmatprep.subr.mxu0 0.0
    %1699 = vmatpush2.msra.mxu0 %v1363
    %1700 = vmatprep.mubr.f32.mxu0 %v1565
    %1701 = vmatmul.mubr.f32.gmra.mxu0 %v1371
    %v1702 = vpop.f32.mrf.mxu0
    %v1703 = vadd.f32 %v1446, %v1702
    %v1704 = vpop.f32.mrf.mxu0
    %1705 = vmatprep.mubr.f32.mxu0 %v1568
    %1706 = vmatmul.mubr.f32.gmra.mxu0 %v1373
    %v1707 = vpop.f32.mrf.mxu0
    %v1708 = vadd.f32 %v1451, %v1707
    %v1709 = vpop.f32.mrf.mxu0
    %1710 = vmatprep.mubr.f32.mxu0 %v1571
    %1711 = vmatmul.mubr.f32.gmra.mxu0 %v1375
    %v1712 = vpop.f32.mrf.mxu0
    %v1713 = vadd.f32 %v1456, %v1712
    %v1714 = vpop.f32.mrf.mxu0
    %1715 = vmatprep.mubr.f32.mxu0 %v1574
    %1716 = vmatmul.mubr.f32.gmra.mxu0 %v1377
    %v1717 = vpop.f32.mrf.mxu0
    %v1718 = vadd.f32 %v1461, %v1717
    %v1719 = vpop.f32.mrf.mxu0
    %1720 = vmatprep.mubr.f32.mxu0 %v1577
    %1721 = vmatmul.mubr.f32.gmra.mxu0 %v1379
    %v1722 = vpop.f32.mrf.mxu0
    %v1723 = vadd.f32 %v1466, %v1722
    %v1724 = vpop.f32.mrf.mxu0
    %1725 = vmatprep.mubr.f32.mxu0 %v1580
    %1726 = vmatmul.mubr.f32.gmra.mxu0 %v1381
    %v1727 = vpop.f32.mrf.mxu0
    %v1728 = vadd.f32 %v1471, %v1727
    %v1729 = vpop.f32.mrf.mxu0
    %1730 = vmatprep.mubr.f32.mxu0 %v1583
    %1731 = vmatmul.mubr.f32.gmra.mxu0 %v1383
    %v1732 = vpop.f32.mrf.mxu0
    %v1733 = vadd.f32 %v1476, %v1732
    %v1734 = vpop.f32.mrf.mxu0
    %1735 = vmatprep.mubr.f32.mxu0 %v1586
    %1736 = vmatmul.mubr.f32.gmra.mxu0 %v1385
    %v1737 = vpop.f32.mrf.mxu0
    %v1738 = vadd.f32 %v1481, %v1737
    %v1739 = vpop.f32.mrf.mxu0
    %1740 = vmatprep.mubr.f32.mxu0 %v1589
    %1741 = vmatmul.mubr.f32.gmra.mxu0 %v1387
    %v1742 = vpop.f32.mrf.mxu0
    %v1743 = vadd.f32 %v1486, %v1742
    %v1744 = vpop.f32.mrf.mxu0
    %1745 = vmatprep.mubr.f32.mxu0 %v1592
    %1746 = vmatmul.mubr.f32.gmra.mxu0 %v1389
    %v1747 = vpop.f32.mrf.mxu0
    %v1748 = vadd.f32 %v1491, %v1747
    %v1749 = vpop.f32.mrf.mxu0
    %1750 = vmatprep.mubr.f32.mxu0 %v1595
    %1751 = vmatmul.mubr.f32.gmra.mxu0 %v1391
    %v1752 = vpop.f32.mrf.mxu0
    %v1753 = vadd.f32 %v1496, %v1752
    %v1754 = vpop.f32.mrf.mxu0
    %1755 = vmatprep.mubr.f32.mxu0 %v1598
    %1756 = vmatmul.mubr.f32.gmra.mxu0 %v1393
    %v1757 = vpop.f32.mrf.mxu0
    %v1758 = vadd.f32 %v1501, %v1757
    %v1759 = vpop.f32.mrf.mxu0
    %1760 = vmatprep.mubr.f32.mxu0 %v1601
    %1761 = vmatmul.mubr.f32.gmra.mxu0 %v1395
    %v1762 = vpop.f32.mrf.mxu0
    %v1763 = vadd.f32 %v1506, %v1762
    %v1764 = vpop.f32.mrf.mxu0
    %1765 = vmatprep.mubr.f32.mxu0 %v1604
    %1766 = vmatmul.mubr.f32.gmra.mxu0 %v1397
    %v1767 = vpop.f32.mrf.mxu0
    %v1768 = vadd.f32 %v1511, %v1767
    %v1769 = vpop.f32.mrf.mxu0
    %1770 = vmatprep.mubr.f32.mxu0 %v1607
    %1771 = vmatmul.mubr.f32.gmra.mxu0 %v1399
    %v1772 = vpop.f32.mrf.mxu0
    %v1773 = vadd.f32 %v1516, %v1772
    %v1774 = vpop.f32.mrf.mxu0
    %1775 = vmatprep.mubr.f32.mxu0 %v1610
    %1776 = vmatmul.mubr.f32.gmra.mxu0 %v1401
    %v1777 = vpop.f32.mrf.mxu0
    %v1778 = vadd.f32 %v1521, %v1777
    %v1779 = vpop.f32.mrf.mxu0
    %1780 = vmatprep.mubr.f32.mxu0 %v1613
    %1781 = vmatmul.mubr.f32.gmra.mxu0 %v1403
    %v1782 = vpop.f32.mrf.mxu0
    %v1783 = vadd.f32 %v1526, %v1782
    %v1784 = vpop.f32.mrf.mxu0
    %1785 = vmatprep.mubr.f32.mxu0 %v1616
    %1786 = vmatmul.mubr.f32.gmra.mxu0 %v1405
    %v1787 = vpop.f32.mrf.mxu0
    %v1788 = vadd.f32 %v1531, %v1787
    %v1789 = vpop.f32.mrf.mxu0
    %1790 = vmatprep.mubr.f32.mxu0 %v1619
    %1791 = vmatmul.mubr.f32.gmra.mxu0 %v1407
    %v1792 = vpop.f32.mrf.mxu0
    %v1793 = vadd.f32 %v1536, %v1792
    %v1794 = vpop.f32.mrf.mxu0
    %1795 = vmatprep.mubr.f32.mxu0 %v1622
    %1796 = vmatmul.mubr.f32.gmra.mxu0 %v1409
    %v1797 = vpop.f32.mrf.mxu0
    %v1798 = vadd.f32 %v1541, %v1797
    %v1799 = vpop.f32.mrf.mxu0
    %1800 = vmatprep.mubr.f32.mxu0 %v1625
    %1801 = vmatmul.mubr.f32.gmra.mxu0 %v1411
    %v1802 = vpop.f32.mrf.mxu0
    %v1803 = vadd.f32 %v1546, %v1802
    %v1804 = vpop.f32.mrf.mxu0
    %1805 = vmatprep.mubr.f32.mxu0 %v1628
    %1806 = vmatmul.mubr.f32.gmra.mxu0 %v1413
    %v1807 = vpop.f32.mrf.mxu0
    %v1808 = vadd.f32 %v1551, %v1807
    %v1809 = vpop.f32.mrf.mxu0
    %1810 = vmatprep.mubr.f32.mxu0 %v1631
    %1811 = vmatmul.mubr.f32.gmra.mxu0 %v1415
    %v1812 = vpop.f32.mrf.mxu0
    %v1813 = vadd.f32 %v1556, %v1812
    %v1814 = vpop.f32.mrf.mxu0
    %1815 = vmatprep.mubr.f32.mxu0 %v1634
    %1816 = vmatmul.mubr.f32.gmra.mxu0 %v1417
    %v1817 = vpop.f32.mrf.mxu0
    %v1818 = vadd.f32 %v1561, %v1817
    %v1819 = vpop.f32.mrf.mxu0
    %1820 = vdwg.mxu0
    %v1821 = vmax.f32 %v1703, 0.0
    %v1822 = vmax.f32 %v1708, 0.0
    %v1823 = vmax.f32 %v1713, 0.0
    %v1824 = vmax.f32 %v1718, 0.0
    %v1825 = vmax.f32 %v1723, 0.0
    %v1826 = vmax.f32 %v1728, 0.0
    %v1827 = vmax.f32 %v1733, 0.0
    %v1828 = vmax.f32 %v1738, 0.0
    %v1829 = vmax.f32 %v1743, 0.0
    %v1830 = vmax.f32 %v1748, 0.0
    %v1831 = vmax.f32 %v1753, 0.0
    %v1832 = vmax.f32 %v1758, 0.0
    %v1833 = vmax.f32 %v1763, 0.0
    %v1834 = vmax.f32 %v1768, 0.0
    %v1835 = vmax.f32 %v1773, 0.0
    %v1836 = vmax.f32 %v1778, 0.0
    %v1837 = vmax.f32 %v1783, 0.0
    %v1838 = vmax.f32 %v1788, 0.0
    %v1839 = vmax.f32 %v1793, 0.0
    %v1840 = vmax.f32 %v1798, 0.0
    %v1841 = vmax.f32 %v1803, 0.0
    %v1842 = vmax.f32 %v1808, 0.0
    %v1843 = vmax.f32 %v1813, 0.0
    %v1844 = vmax.f32 %v1818, 0.0
    %v1845 = vld [vmem:[%s57] sm:$0x3f]
    %v1846 = vld [vmem:[%s57 + $0x8] sm:$0x3f]
    %v1847 = vld [vmem:[%s59] sm:$0x3f]
    %1849 = vset.pattern.permute.xlu0 0
    %1850 = vperm.xlu0 %1849, %v1847
    %v1851 = vpop.permute.xlu0 %1850
    %v1854 = vsel %vm1563, %v1846, 0
    %1856 = vmatprep.subr.mxu0 0.0
    %1857 = vmatpush1.msra.mxu0 %v1836
    %1858 = vmatprep.subr.mxu0 0.0
    %1859 = vmatpush1.msra.mxu0 %v1835
    %1860 = vmatprep.subr.mxu0 0.0
    %1861 = vmatpush1.msra.mxu0 %v1834
    %1862 = vmatprep.subr.mxu0 0.0
    %1863 = vmatpush1.msra.mxu0 %v1833
    %1864 = vmatprep.subr.mxu0 0.0
    %1865 = vmatpush1.msra.mxu0 %v1832
    %1866 = vmatprep.subr.mxu0 0.0
    %1867 = vmatpush1.msra.mxu0 %v1831
    %1868 = vmatprep.subr.mxu0 0.0
    %1869 = vmatpush1.msra.mxu0 %v1830
    %1870 = vmatprep.subr.mxu0 0.0
    %1871 = vmatpush1.msra.mxu0 %v1829
    %1872 = vmatprep.subr.mxu0 0.0
    %1873 = vmatpush1.msra.mxu0 %v1828
    %1874 = vmatprep.subr.mxu0 0.0
    %1875 = vmatpush1.msra.mxu0 %v1827
    %1876 = vmatprep.subr.mxu0 0.0
    %1877 = vmatpush1.msra.mxu0 %v1826
    %1878 = vmatprep.subr.mxu0 0.0
    %1879 = vmatpush1.msra.mxu0 %v1825
    %1880 = vmatprep.subr.mxu0 0.0
    %1881 = vmatpush1.msra.mxu0 %v1824
    %1882 = vmatprep.subr.mxu0 0.0
    %1883 = vmatpush1.msra.mxu0 %v1823
    %1884 = vmatprep.subr.mxu0 0.0
    %1885 = vmatpush1.msra.mxu0 %v1822
    %1886 = vmatprep.subr.mxu0 0.0
    %1887 = vmatpush1.msra.mxu0 %v1821
    %1888 = vmatprep.subr.mxu0 0.0
    %1889 = vmatpush2.msra.mxu0 0.0
    %1890 = vmatprep.subr.mxu0 0.0
    %1891 = vmatpush2.msra.mxu0 0.0
    %1892 = vmatprep.subr.mxu0 0.0
    %1893 = vmatpush2.msra.mxu0 0.0
    %1894 = vmatprep.subr.mxu0 0.0
    %1895 = vmatpush2.msra.mxu0 0.0
    %1896 = vmatprep.subr.mxu0 0.0
    %1897 = vmatpush2.msra.mxu0 0.0
    %1898 = vmatprep.subr.mxu0 0.0
    %1899 = vmatpush2.msra.mxu0 0.0
    %1900 = vmatprep.subr.mxu0 0.0
    %1901 = vmatpush2.msra.mxu0 0.0
    %1902 = vmatprep.subr.mxu0 0.0
    %1903 = vmatpush2.msra.mxu0 0.0
    %1904 = vmatprep.subr.mxu0 0.0
    %1905 = vmatpush2.msra.mxu0 %v1844
    %1906 = vmatprep.subr.mxu0 0.0
    %1907 = vmatpush2.msra.mxu0 %v1843
    %1908 = vmatprep.subr.mxu0 0.0
    %1909 = vmatpush2.msra.mxu0 %v1842
    %1910 = vmatprep.subr.mxu0 0.0
    %1911 = vmatpush2.msra.mxu0 %v1841
    %1912 = vmatprep.subr.mxu0 0.0
    %1913 = vmatpush2.msra.mxu0 %v1840
    %1914 = vmatprep.subr.mxu0 0.0
    %1915 = vmatpush2.msra.mxu0 %v1839
    %1916 = vmatprep.subr.mxu0 0.0
    %1917 = vmatpush2.msra.mxu0 %v1838
    %1918 = vmatprep.subr.mxu0 0.0
    %1919 = vmatpush2.msra.mxu0 %v1837
    %1920 = vmatprep.mubr.f32.mxu0 %v1854
    %1921 = vmatmul.mubr.f32.gmra.mxu0 %v1845
    %v1922 = vpop.f32.mrf.mxu0
    %v1923 = vadd.f32 %v1851, %v1922
    %v1924 = vpop.f32.mrf.mxu0
    %1925 = vdwg.mxu0
    %v1926 = vmul.f32 %v1923, %v799
    %v1928 = vrot.slane %v1923, 3
    %v1930 = vadd.f32 %v1926, %v1928
    %v1931 = vmax.f32 %v1930, 0.0
    %v1933 = vrot.slane %v1931, 7
    %v1935 = vmul.f32 %v1923, %v1933
    %v1936 = vadd.f32 %v1935, %v1928
    %v1938 = vrot.slane %v799, 7
    %v1940 = vadd.f32 %v1936, %v1938
    %v1941 = vmul.f32 %v1923, %v1940
    %v1942 = vadd.f32 %v1941, %v1928
    %v1943 = vmax.f32 %v1942, 0.0
    %v1945 = vrot.slane %v1943, 7
    %v1947 = vmul.f32 %v1923, %v1945
    %v1948 = vadd.f32 %v1947, %v1928
    %v1950 = vrot.slane %v1940, 7
    %v1952 = vadd.f32 %v1948, %v1950
    %vm1953 = vcmask 59394
    %1954 = vst.msk [vmem:[%s81 - $0x2] sm:$0x4] %vm1953, %v1952
    // Predicated region
    $region122: #{deep_idw_forward.2} parent=1 // pred_check
      _
    $region123: #{deep_idw_forward.2} parent=1 // pred_check_branch
      %1956 = sbr.rel (0) target = $region125
    $region124: #{deep_idw_forward.2} parent=1 // pred_region
      %s1958 = ssub.s32 64, 64
      %1959 = vsyncadd [#allocation7], %s1958
      %s1961 = sshll.u32 [#allocation6], 4
      %s1962 = int_to_ptr.vmem [resolvable:$true] %s1961
      %1964 = dma.vmem_to_hbm [thread:$0]  %s1962, 64, %s61, [#allocation7]
    $region125: #{deep_idw_forward.2} parent=1 // pred_fallthru
      _
    // Predicated region
    $region126: #{deep_idw_forward.2} parent=1 // pred_check
      _
    $region127: #{deep_idw_forward.2} parent=1 // pred_check_branch
      %1966 = sbr.rel (0) target = $region129
    $region128: #{deep_idw_forward.2} parent=1 // pred_region
      %s1968 = ssub.s32 16, 16
      %1969 = vsyncadd [#allocation9], %s1968
      %s1971 = sshll.u32 [#allocation8], 4
      %s1972 = int_to_ptr.vmem [resolvable:$true] %s1971
      %1974 = dma.vmem_to_hbm [thread:$0]  %s1972, 16, %s63, [#allocation9]
    $region129: #{deep_idw_forward.2} parent=1 // pred_fallthru
      _
    // Predicated region
    $region130: #{deep_idw_forward.2} parent=1 // pred_check
      _
    $region131: #{deep_idw_forward.2} parent=1 // pred_check_branch
      %1976 = sbr.rel (0) target = $region133
    $region132: #{deep_idw_forward.2} parent=1 // pred_region
      %s1978 = ssub.s32 16, 16
      %1979 = vsyncadd [#allocation9], %s1978
      %s1981 = sshll.u32 [#allocation10], 4
      %s1982 = int_to_ptr.vmem [resolvable:$true] %s1981
      %1984 = dma.vmem_to_hbm [thread:$0]  %s1982, 16, %s65, [#allocation9]
    $region133: #{deep_idw_forward.2} parent=1 // pred_fallthru
      _
    // Predicated region
    $region134: #{deep_idw_forward.2} parent=1 // pred_check
      _
    $region135: #{deep_idw_forward.2} parent=1 // pred_check_branch
      %1986 = sbr.rel (0) target = $region137
    $region136: #{deep_idw_forward.2} parent=1 // pred_region
      %s1988 = ssub.s32 16, 16
      %1989 = vsyncadd [#allocation12], %s1988
      %s1991 = sshll.u32 [#allocation11], 4
      %s1992 = int_to_ptr.vmem [resolvable:$true] %s1991
      %1994 = dma.vmem_to_hbm [thread:$0]  %s1992, 16, %s67, [#allocation12]
    $region137: #{deep_idw_forward.2} parent=1 // pred_fallthru
      _
    // Predicated region
    $region138: #{deep_idw_forward.2} parent=1 // pred_check
      _
    $region139: #{deep_idw_forward.2} parent=1 // pred_check_branch
      %1996 = sbr.rel (0) target = $region141
    $region140: #{deep_idw_forward.2} parent=1 // pred_region
      %s1998 = ssub.s32 16, 16
      %1999 = vsyncadd [#allocation12], %s1998
      %s2001 = sshll.u32 [#allocation13], 4
      %s2002 = int_to_ptr.vmem [resolvable:$true] %s2001
      %2004 = dma.vmem_to_hbm [thread:$0]  %s2002, 16, %s69, [#allocation12]
    $region141: #{deep_idw_forward.2} parent=1 // pred_fallthru
      _
    // Predicated region
    $region142: #{deep_idw_forward.2} parent=1 // pred_check
      _
    $region143: #{deep_idw_forward.2} parent=1 // pred_check_branch
      %2006 = sbr.rel (0) target = $region145
    $region144: #{deep_idw_forward.2} parent=1 // pred_region
      %s2008 = ssub.s32 32, 32
      %2009 = vsyncadd [#allocation15], %s2008
      %s2011 = sshll.u32 [#allocation14], 4
      %s2012 = int_to_ptr.vmem [resolvable:$true] %s2011
      %2014 = dma.vmem_to_hbm [thread:$0]  %s2012, 32, %s71, [#allocation15]
    $region145: #{deep_idw_forward.2} parent=1 // pred_fallthru
      _
    // Predicated region
    $region146: #{deep_idw_forward.2} parent=1 // pred_check
      _
    $region147: #{deep_idw_forward.2} parent=1 // pred_check_branch
      %2016 = sbr.rel (0) target = $region149
    $region148: #{deep_idw_forward.2} parent=1 // pred_region
      %s2018 = ssub.s32 16, 16
      %2019 = vsyncadd [#allocation15], %s2018
      %s2021 = sshll.u32 [#allocation16], 4
      %s2022 = int_to_ptr.vmem [resolvable:$true] %s2021
      %2024 = dma.vmem_to_hbm [thread:$0]  %s2022, 16, %s73, [#allocation15]
    $region149: #{deep_idw_forward.2} parent=1 // pred_fallthru
      _
    // Predicated region
    $region150: #{deep_idw_forward.2} parent=1 // pred_check
      _
    $region151: #{deep_idw_forward.2} parent=1 // pred_check_branch
      %2026 = sbr.rel (0) target = $region153
    $region152: #{deep_idw_forward.2} parent=1 // pred_region
      %s2028 = ssub.s32 16, 16
      %2029 = vsyncadd [#allocation18], %s2028
      %s2031 = sshll.u32 [#allocation17], 4
      %s2032 = int_to_ptr.vmem [resolvable:$true] %s2031
      %2034 = dma.vmem_to_hbm [thread:$0]  %s2032, 16, %s75, [#allocation18]
    $region153: #{deep_idw_forward.2} parent=1 // pred_fallthru
      _
    // Predicated region
    $region154: #{deep_idw_forward.2} parent=1 // pred_check
      _
    $region155: #{deep_idw_forward.2} parent=1 // pred_check_branch
      %2036 = sbr.rel (0) target = $region157
    $region156: #{deep_idw_forward.2} parent=1 // pred_region
      %s2038 = ssub.s32 16, 16
      %2039 = vsyncadd [#allocation18], %s2038
      %s2041 = sshll.u32 [#allocation19], 4
      %s2042 = int_to_ptr.vmem [resolvable:$true] %s2041
      %2044 = dma.vmem_to_hbm [thread:$0]  %s2042, 16, %s77, [#allocation18]
    $region157: #{deep_idw_forward.2} parent=1 // pred_fallthru
      _
    // Predicated region
    $region158: #{deep_idw_forward.2} parent=1 // pred_check
      _
    $region159: #{deep_idw_forward.2} parent=1 // pred_check_branch
      %2046 = sbr.rel (0) target = $region161
    $region160: #{deep_idw_forward.2} parent=1 // pred_region
      %s2048 = ssub.s32 16, 16
      %2049 = vsyncadd [#allocation21], %s2048
      %s2051 = sshll.u32 [#allocation20], 4
      %s2052 = int_to_ptr.vmem [resolvable:$true] %s2051
      %2054 = dma.vmem_to_hbm [thread:$0]  %s2052, 16, %s79, [#allocation21]
    $region161: #{deep_idw_forward.2} parent=1 // pred_fallthru
      _
    // Predicated region
    $region162: #{deep_idw_forward.2} parent=1 // pred_check
      _
    $region163: #{deep_idw_forward.2} parent=1 // pred_check_branch
      %2056 = sbr.rel (0) target = $region165
    $region164: #{deep_idw_forward.2} parent=1 // pred_region
      _
    $region165: #{deep_idw_forward.2} parent=1 // pred_fallthru
      _
    // Predicated region
    $region166: #{deep_idw_forward.2} parent=1 // pred_check
      _
    $region167: #{deep_idw_forward.2} parent=1 // pred_check_branch
      %2058 = sbr.rel (0) target = $region169
    $region168: #{deep_idw_forward.2} parent=1 // pred_region
      %2059 = dma.done [#allocation7], 64
    $region169: #{deep_idw_forward.2} parent=1 // pred_fallthru
      _
    // Predicated region
    $region170: #{deep_idw_forward.2} parent=1 // pred_check
      _
    $region171: #{deep_idw_forward.2} parent=1 // pred_check_branch
      %2061 = sbr.rel (0) target = $region173
    $region172: #{deep_idw_forward.2} parent=1 // pred_region
      %2062 = dma.done [#allocation9], 16
    $region173: #{deep_idw_forward.2} parent=1 // pred_fallthru
      _
    // Predicated region
    $region174: #{deep_idw_forward.2} parent=1 // pred_check
      _
    $region175: #{deep_idw_forward.2} parent=1 // pred_check_branch
      %2064 = sbr.rel (0) target = $region177
    $region176: #{deep_idw_forward.2} parent=1 // pred_region
      %2065 = dma.done [#allocation9], 16
    $region177: #{deep_idw_forward.2} parent=1 // pred_fallthru
      _
    // Predicated region
    $region178: #{deep_idw_forward.2} parent=1 // pred_check
      _
    $region179: #{deep_idw_forward.2} parent=1 // pred_check_branch
      %2067 = sbr.rel (0) target = $region181
    $region180: #{deep_idw_forward.2} parent=1 // pred_region
      %2068 = dma.done [#allocation12], 16
    $region181: #{deep_idw_forward.2} parent=1 // pred_fallthru
      _
    // Predicated region
    $region182: #{deep_idw_forward.2} parent=1 // pred_check
      _
    $region183: #{deep_idw_forward.2} parent=1 // pred_check_branch
      %2070 = sbr.rel (0) target = $region185
    $region184: #{deep_idw_forward.2} parent=1 // pred_region
      %2071 = dma.done [#allocation12], 16
    $region185: #{deep_idw_forward.2} parent=1 // pred_fallthru
      _
    // Predicated region
    $region186: #{deep_idw_forward.2} parent=1 // pred_check
      _
    $region187: #{deep_idw_forward.2} parent=1 // pred_check_branch
      %2073 = sbr.rel (0) target = $region189
    $region188: #{deep_idw_forward.2} parent=1 // pred_region
      %2074 = dma.done [#allocation15], 32
    $region189: #{deep_idw_forward.2} parent=1 // pred_fallthru
      _
    // Predicated region
    $region190: #{deep_idw_forward.2} parent=1 // pred_check
      _
    $region191: #{deep_idw_forward.2} parent=1 // pred_check_branch
      %2076 = sbr.rel (0) target = $region193
    $region192: #{deep_idw_forward.2} parent=1 // pred_region
      %2077 = dma.done [#allocation15], 16
    $region193: #{deep_idw_forward.2} parent=1 // pred_fallthru
      _
    // Predicated region
    $region194: #{deep_idw_forward.2} parent=1 // pred_check
      _
    $region195: #{deep_idw_forward.2} parent=1 // pred_check_branch
      %2079 = sbr.rel (0) target = $region197
    $region196: #{deep_idw_forward.2} parent=1 // pred_region
      %2080 = dma.done [#allocation18], 16
    $region197: #{deep_idw_forward.2} parent=1 // pred_fallthru
      _
    // Predicated region
    $region198: #{deep_idw_forward.2} parent=1 // pred_check
      _
    $region199: #{deep_idw_forward.2} parent=1 // pred_check_branch
      %2082 = sbr.rel (0) target = $region201
    $region200: #{deep_idw_forward.2} parent=1 // pred_region
      %2083 = dma.done [#allocation18], 16
    $region201: #{deep_idw_forward.2} parent=1 // pred_fallthru
      _
    // Predicated region
    $region202: #{deep_idw_forward.2} parent=1 // pred_check
      _
    $region203: #{deep_idw_forward.2} parent=1 // pred_check_branch
      %2085 = sbr.rel (0) target = $region205
    $region204: #{deep_idw_forward.2} parent=1 // pred_region
      %2086 = dma.done [#allocation21], 16
    $region205: #{deep_idw_forward.2} parent=1 // pred_fallthru
      _
    // Predicated region
    $region206: #{deep_idw_forward.2} parent=1 // pred_check
      _
    $region207: #{deep_idw_forward.2} parent=1 // pred_check_branch
      %2088 = sbr.rel (0) target = $region209
    $region208: #{deep_idw_forward.2} parent=1 // pred_region
      _
    $region209: #{deep_idw_forward.2} parent=1 // pred_fallthru
      _
    %2089 = vsyncpa [#allocation7], 1
    %2090 = vsyncpa [#allocation9], 1
    %2091 = vsyncpa [#allocation12], 1
    %2092 = vsyncpa [#allocation15], 1
    %2093 = vsyncpa [#allocation18], 1
    %2094 = vsyncpa [#allocation21], 1

</llo_original>
